<compile_context>
chip_gen: v6e
topology: v6e:2x2x1
jax: 0.10.0
libtpu: 0.0.40
codegen_flags: <defaults>
</compile_context>

<pallas_src>
import functools
import numpy as np
import jax
import jax.numpy as jnp
from jax import lax
from jax.experimental import pallas as pl
from jax.experimental.pallas import tpu as pltpu


def _relu(x):
    return jnp.maximum(x, 0.0)


def _mm(a, w):
    """MXU matmul: cast the activation to the weight dtype (bf16 in production),
    accumulate in f32."""
    return jnp.dot(a.astype(w.dtype), w, preferred_element_type=jnp.float32)


def _lift3(x, w, b):
    """3->64 'conv' on the VPU as 3 column-broadcast FMAs.  A K=3 matmul would
    waste MXU push slots for ~0.1% of the FLOPs.  x:(TN,3), w:(3,64), b:(1,64),
    all f32 (VPU path)."""
    return (x[:, 0:1] * w[0:1, :]
            + x[:, 1:2] * w[1:2, :]
            + x[:, 2:3] * w[2:3, :]
            + b)


def _tpu_config():
    """(default row tile, vmem_limit_bytes) tuned per TPU generation."""
    try:
        vmem_cap = pltpu.get_tpu_info().vmem_capacity_bytes
    except Exception:
        vmem_cap = None
    if vmem_cap is None:
        # Unknown chip: conservative settings that are safe on v7x (64 MiB/TC).
        return 1024, 40 * 1024 * 1024
    if vmem_cap <= 80 * 1024 * 1024:
        # v7x-class: 64 MiB per TensorCore.
        return 1024, 44 * 1024 * 1024
    # v5e / v6e: 128 MiB physical VMEM.
    return 2048, 64 * 1024 * 1024


# ------------------- pass 1: STN conv chain + max over points -------------------

def _stn_conv_max_kernel(x_ref, w1, b1, w2, b2, w3, b3, o_ref, *, n_total, tn):
    n_idx = pl.program_id(1)

    @pl.when(n_idx == 0)
    def _():
        o_ref[...] = jnp.full_like(o_ref, -jnp.inf)

    x = x_ref[0]                                     # (TN, 3) f32
    h = _relu(_lift3(x, w1[...], b1[...]))           # (TN, 64)   VPU
    h = _relu(_mm(h, w2[...]) + b2[...])             # (TN, 128)  MXU bf16
    h = _relu(_mm(h, w3[...]) + b3[...])             # (TN, 1024) MXU bf16

    def _update(hv):
        o_ref[0] = jnp.maximum(o_ref[0], jnp.max(hv, axis=0, keepdims=True))

    if n_total % tn != 0:
        last = pl.num_programs(1) - 1

        @pl.when(n_idx == last)                      # mask ragged tail rows only here
        def _():
            rows = n_idx * tn + lax.broadcasted_iota(jnp.int32, (tn, 1), 0)
            _update(jnp.where(rows < n_total, h, -jnp.inf))

        @pl.when(n_idx != last)
        def _():
            _update(h)
    else:
        _update(h)


def stn_conv_maxpool(x, kp, *, tn, vmem_limit):
    B, N, _ = x.shape
    nt = pl.cdiv(N, tn)
    out = pl.pallas_call(
        functools.partial(_stn_conv_max_kernel, n_total=N, tn=tn),
        out_shape=jax.ShapeDtypeStruct((B, 1, 1024), jnp.float32),
        grid=(B, nt),
        in_specs=[
            pl.BlockSpec((1, tn, 3), lambda b, n: (b, n, 0)),
            pl.BlockSpec((3, 64), lambda b, n: (0, 0)),
            pl.BlockSpec((1, 64), lambda b, n: (0, 0)),
            pl.BlockSpec((64, 128), lambda b, n: (0, 0)),
            pl.BlockSpec((1, 128), lambda b, n: (0, 0)),
            pl.BlockSpec((128, 1024), lambda b, n: (0, 0)),
            pl.BlockSpec((1, 1024), lambda b, n: (0, 0)),
        ],
        out_specs=pl.BlockSpec((1, 1, 1024), lambda b, n: (b, 0, 0)),
        compiler_params=pltpu.CompilerParams(
            dimension_semantics=("parallel", "arbitrary"),
            vmem_limit_bytes=vmem_limit),
    )(x, kp['stn_w1'], kp['stn_b1'], kp['stn_w2'], kp['stn_b2'],
      kp['stn_w3'], kp['stn_b3'])
    return out[:, 0, :]                              # (B, 1024)


# ------------------- pass 2: feature conv chain + max over points -------------------

def _feat_conv_max_kernel(x_ref, weff_ref, b1, w2, b2, w3, b3, w4, b4, o_ref,
                          *, n_total, tn):
    n_idx = pl.program_id(1)

    @pl.when(n_idx == 0)
    def _():
        o_ref[...] = jnp.full_like(o_ref, -jnp.inf)

    x = x_ref[0]                                     # (TN, 3)
    h = _relu(_lift3(x, weff_ref[0], b1[...]))       # (TN, 64)   VPU; bmm folded in W_eff
    h = _relu(_mm(h, w2[...]) + b2[...])             # (TN, 64)   (= pointfeat)
    h = _relu(_mm(h, w3[...]) + b3[...])             # (TN, 128)
    h = _mm(h, w4[...]) + b4[...]                    # (TN, 1024), no relu

    def _update(hv):
        o_ref[0] = jnp.maximum(o_ref[0], jnp.max(hv, axis=0, keepdims=True))

    if n_total % tn != 0:
        last = pl.num_programs(1) - 1

        @pl.when(n_idx == last)                      # pad rows must be -inf (no relu)
        def _():
            rows = n_idx * tn + lax.broadcasted_iota(jnp.int32, (tn, 1), 0)
            _update(jnp.where(rows < n_total, h, -jnp.inf))

        @pl.when(n_idx != last)
        def _():
            _update(h)
    else:
        _update(h)


def feat_conv_maxpool(x, w_eff, kp, *, tn, vmem_limit):
    B, N, _ = x.shape
    nt = pl.cdiv(N, tn)
    out = pl.pallas_call(
        functools.partial(_feat_conv_max_kernel, n_total=N, tn=tn),
        out_shape=jax.ShapeDtypeStruct((B, 1, 1024), jnp.float32),
        grid=(B, nt),
        in_specs=[
            pl.BlockSpec((1, tn, 3), lambda b, n: (b, n, 0)),
            pl.BlockSpec((1, 3, 64), lambda b, n: (b, 0, 0)),
            pl.BlockSpec((1, 64), lambda b, n: (0, 0)),
            pl.BlockSpec((64, 64), lambda b, n: (0, 0)),
            pl.BlockSpec((1, 64), lambda b, n: (0, 0)),
            pl.BlockSpec((64, 128), lambda b, n: (0, 0)),
            pl.BlockSpec((1, 128), lambda b, n: (0, 0)),
            pl.BlockSpec((128, 1024), lambda b, n: (0, 0)),
            pl.BlockSpec((1, 1024), lambda b, n: (0, 0)),
        ],
        out_specs=pl.BlockSpec((1, 1, 1024), lambda b, n: (b, 0, 0)),
        compiler_params=pltpu.CompilerParams(
            dimension_semantics=("parallel", "arbitrary"),
            vmem_limit_bytes=vmem_limit),
    )(x, w_eff, kp['feat_b1'], kp['feat_w2'], kp['feat_b2'],
      kp['feat_w3'], kp['feat_b3'], kp['feat_w4'], kp['feat_b4'])
    return out[:, 0, :]                              # (B, 1024)


# ------------------------- pass 3: segmentation head -------------------------

def _seg_head_kernel(x_ref, weff_ref, b1, w2, b2, gc1_ref, wp, wc2, bc2,
                     wc3, bc3, wc4, bc4, o_ref, *, k):
    x = x_ref[0]                                     # (TN, 3)
    # recompute pointfeat in-VMEM instead of round-tripping it through HBM
    h = _relu(_lift3(x, weff_ref[0], b1[...]))       # (TN, 64)  VPU
    pf = _relu(_mm(h, w2[...]) + b2[...])            # (TN, 64)  pointfeat
    # head conv1 split: glob @ W_glob + bias arrives precomputed per batch
    y = _relu(_mm(pf, wp[...]) + gc1_ref[0])         # (TN, 512)
    y = _relu(_mm(y, wc2[...]) + bc2[...])           # (TN, 256)
    y = _relu(_mm(y, wc3[...]) + bc3[...])           # (TN, 128)
    logits = _mm(y, wc4[...]) + bc4[...]             # (TN, k)
    if k == 2:
        # element-wise log-softmax: no XLU reduce over a 2-wide lane axis
        l0 = logits[:, 0:1]
        l1 = logits[:, 1:2]
        m = jnp.maximum(l0, l1)
        lse = m + jnp.log(jnp.exp(l0 - m) + jnp.exp(l1 - m))
        o_ref[0] = logits - lse
    else:
        m = jnp.max(logits, axis=-1, keepdims=True)
        z = logits - m
        lse = jnp.log(jnp.sum(jnp.exp(z), axis=-1, keepdims=True))
        o_ref[0] = z - lse


def seg_head(x, w_eff, glob_c1, kp, k, *, tn, vmem_limit):
    B, N, _ = x.shape
    nt = pl.cdiv(N, tn)
    return pl.pallas_call(
        functools.partial(_seg_head_kernel, k=k),
        out_shape=jax.ShapeDtypeStruct((B, N, k), jnp.float32),
        grid=(B, nt),
        in_specs=[
            pl.BlockSpec((1, tn, 3), lambda b, n: (b, n, 0)),
            pl.BlockSpec((1, 3, 64), lambda b, n: (b, 0, 0)),
            pl.BlockSpec((1, 64), lambda b, n: (0, 0)),
            pl.BlockSpec((64, 64), lambda b, n: (0, 0)),
            pl.BlockSpec((1, 64), lambda b, n: (0, 0)),
            pl.BlockSpec((1, 1, 512), lambda b, n: (b, 0, 0)),
            pl.BlockSpec((64, 512), lambda b, n: (0, 0)),
            pl.BlockSpec((512, 256), lambda b, n: (0, 0)),
            pl.BlockSpec((1, 256), lambda b, n: (0, 0)),
            pl.BlockSpec((256, 128), lambda b, n: (0, 0)),
            pl.BlockSpec((1, 128), lambda b, n: (0, 0)),
            pl.BlockSpec((128, k), lambda b, n: (0, 0)),
            pl.BlockSpec((1, k), lambda b, n: (0, 0)),
        ],
        out_specs=pl.BlockSpec((1, tn, k), lambda b, n: (b, n, 0)),
        compiler_params=pltpu.CompilerParams(
            dimension_semantics=("parallel", "parallel"),
            vmem_limit_bytes=vmem_limit),
    )(x, w_eff, kp['feat_b1'], kp['feat_w2'], kp['feat_b2'], glob_c1,
      kp['head_wp'], kp['head_w2'], kp['head_b2'],
      kp['head_w3'], kp['head_b3'], kp['head_w4'], kp['head_b4'])


# --------------------------- parameters (synthetic) ---------------------------

def init_params(key, k=2):
    """PyTorch-style uniform(+-1/sqrt(fan_in)) init; weights stored (Cin, Cout),
    biases stored (1, Cout); STN3d '+ identity' folded into its fc3 bias."""
    def layer(key, cin, cout):
        kw, kb = jax.random.split(key)
        bound = 1.0 / np.sqrt(cin)
        w = jax.random.uniform(kw, (cin, cout), jnp.float32, -bound, bound)
        b = jax.random.uniform(kb, (1, cout), jnp.float32, -bound, bound)
        return w, b

    keys = jax.random.split(key, 14)
    p = {}
    p['stn_c1'] = layer(keys[0], 3, 64)
    p['stn_c2'] = layer(keys[1], 64, 128)
    p['stn_c3'] = layer(keys[2], 128, 1024)
    p['stn_fc1'] = layer(keys[3], 1024, 512)
    p['stn_fc2'] = layer(keys[4], 512, 256)
    w, b = layer(keys[5], 256, 9)
    p['stn_fc3'] = (w, b + jnp.eye(3, dtype=jnp.float32).reshape(1, 9))
    p['feat_c1'] = layer(keys[6], 3, 64)
    p['feat_c2'] = layer(keys[7], 64, 64)
    p['feat_c3'] = layer(keys[8], 64, 128)
    p['feat_c4'] = layer(keys[9], 128, 1024)
    p['c1'] = layer(keys[10], 1088, 512)   # channel order [1024 glob | 64 pointfeat]
    p['c2'] = layer(keys[11], 512, 256)
    p['c3'] = layer(keys[12], 256, 128)
    p['c4'] = layer(keys[13], 128, k)
    return p


def prep_kernel_params(p, use_bf16=True):
    """Cast the MXU weights to bf16 once (halves weight VMEM/DMA; bf16-native
    MXU).  Biases and the VPU 3->64 weights stay f32."""
    mmdt = jnp.bfloat16 if use_bf16 else jnp.float32
    kp = {}
    # pass 1 (STN conv chain)
    kp['stn_w1'] = p['stn_c1'][0]                       # (3,64)  f32, VPU
    kp['stn_b1'] = p['stn_c1'][1]
    kp['stn_w2'] = p['stn_c2'][0].astype(mmdt)
    kp['stn_b2'] = p['stn_c2'][1]
    kp['stn_w3'] = p['stn_c3'][0].astype(mmdt)
    kp['stn_b3'] = p['stn_c3'][1]
    # passes 2/3 (feature chain, shared with seg head)
    kp['feat_b1'] = p['feat_c1'][1]
    kp['feat_w2'] = p['feat_c2'][0].astype(mmdt)
    kp['feat_b2'] = p['feat_c2'][1]
    kp['feat_w3'] = p['feat_c3'][0].astype(mmdt)
    kp['feat_b3'] = p['feat_c3'][1]
    kp['feat_w4'] = p['feat_c4'][0].astype(mmdt)
    kp['feat_b4'] = p['feat_c4'][1]
    # pass 3 (segmentation head)
    kp['head_wp'] = p['c1'][0][1024:].astype(mmdt)      # (64,512) point part of conv1
    kp['head_w2'] = p['c2'][0].astype(mmdt)
    kp['head_b2'] = p['c2'][1]
    kp['head_w3'] = p['c3'][0].astype(mmdt)
    kp['head_b3'] = p['c3'][1]
    kp['head_w4'] = p['c4'][0].astype(mmdt)
    kp['head_b4'] = p['c4'][1]
    return kp


# ------------------------------- forward pass -------------------------------

def _stn_fc_xla(g, p):
    """Tiny (M=B) FC head 1024->512->256->9 — left to XLA; a dedicated kernel
    launch plus ~2.5 MB weight DMA buys nothing at this size."""
    w1, b1 = p['stn_fc1']
    w2, b2 = p['stn_fc2']
    w3, b3 = p['stn_fc3']
    h = jnp.maximum(g @ w1 + b1, 0.0)
    h = jnp.maximum(h @ w2 + b2, 0.0)
    return h @ w3 + b3          # identity already folded into b3


def pointnet_densecls(params, x_bcn, k=2, tn=None, use_bf16=True):
    """x_bcn: (B, 3, N) float32, PyTorch NCW convention."""
    B, C, N = x_bcn.shape
    assert C == 3
    default_tn, vmem_limit = _tpu_config()
    if tn is None:
        tn = default_tn
    if tn >= N:
        tn = N                               # full-extent block is always legal
    else:
        tn = max(8, (tn // 8) * 8)           # keep the sublane dim a multiple of 8

    kp = prep_kernel_params(params, use_bf16=use_bf16)
    x = jnp.transpose(x_bcn, (0, 2, 1)).astype(jnp.float32)      # (B, N, 3)

    # --- STN3d ---
    stn_g = stn_conv_maxpool(x, kp, tn=tn, vmem_limit=vmem_limit)    # (B, 1024)
    trans = _stn_fc_xla(stn_g, params).reshape(B, 3, 3)              # (B, 3, 3)

    # fold torch.bmm(x, trans) into feat conv1: (x @ trans) @ W = x @ (trans @ W)
    w_feat1, _ = params['feat_c1']
    w_eff = jnp.einsum('bij,jk->bik', trans, w_feat1)            # (B, 3, 64) f32, VPU

    # --- PointNetfeat conv chain + global max-pool ---
    glob = feat_conv_maxpool(x, w_eff, kp, tn=tn, vmem_limit=vmem_limit)   # (B, 1024)

    # global half of head conv1, per batch (replaces broadcast + 1088-concat)
    w_head1, b_head1 = params['c1']
    glob_c1 = glob @ w_head1[:1024] + b_head1                    # (B, 512), tiny

    # --- segmentation head (pointfeat recomputed in-kernel) ---
    logp = seg_head(x, w_eff, glob_c1[:, None, :], kp, k,
                    tn=tn, vmem_limit=vmem_limit)                # (B, N, k)

    # trans_feat is None because feature_transform=False
    return logp, trans, None


# --------------------------- pure-JAX reference ---------------------------

def pointnet_ref(params, x_bcn, k=2):
    B, _, N = x_bcn.shape
    x = jnp.transpose(x_bcn, (0, 2, 1)).astype(jnp.float32)

    def lin(h, wb, relu=True):
        w, b = wb
        y = h @ w + b
        return jnp.maximum(y, 0.0) if relu else y

    h = lin(x.reshape(B * N, 3), params['stn_c1'])
    h = lin(h, params['stn_c2'])
    h = lin(h, params['stn_c3'])
    g = jnp.max(h.reshape(B, N, 1024), axis=1)
    g = lin(g, params['stn_fc1'])
    g = lin(g, params['stn_fc2'])
    trans = lin(g, params['stn_fc3'], relu=False).reshape(B, 3, 3)

    xt = jnp.einsum('bnd,bde->bne', x, trans)
    h = lin(xt.reshape(B * N, 3), params['feat_c1'])
    pf = lin(h, params['feat_c2'])
    h = lin(pf, params['feat_c3'])
    h = lin(h, params['feat_c4'], relu=False)
    glob = jnp.max(h.reshape(B, N, 1024), axis=1)

    feat = jnp.concatenate(
        [jnp.broadcast_to(glob[:, None, :], (B, N, 1024)), pf.reshape(B, N, 64)],
        axis=-1)
    h = lin(feat.reshape(B * N, 1088), params['c1'])
    h = lin(h, params['c2'])
    h = lin(h, params['c3'])
    logits = lin(h, params['c4'], relu=False)
    logp = jax.nn.log_softmax(logits, axis=-1)
    return logp.reshape(B, N, k), trans


# ----------------------------------- main -----------------------------------

if __name__ == "__main__":
    B, N, K_CLASSES = 2, 64, 2
    key = jax.random.PRNGKey(0)
    kx, kparam = jax.random.split(key)
    x = jax.random.normal(kx, (B, 3, N), dtype=jnp.float32)   # PyTorch NCW input
    params = init_params(kparam, k=K_CLASSES)

    ref_logp, ref_trans = pointnet_ref(params, x, k=K_CLASSES)

    # tn=48 deliberately exercises multi-tile max accumulation + last-tile-only
    # ragged masking + partial output blocks at this small test size.

    # 1) f32-matmul path: tight structural check of the fusion math.
    fwd_f32 = jax.jit(functools.partial(
        pointnet_densecls, k=K_CLASSES, tn=48, use_bf16=False))
    logp32, trans32, tf32 = fwd_f32(params, x)
    jax.block_until_ready((logp32, trans32))
    assert tf32 is None
    assert logp32.shape == (B, N, K_CLASSES)
    assert trans32.shape == (B, 3, 3)
    assert bool(jnp.allclose(trans32, ref_trans, atol=2e-3, rtol=2e-3))
    assert bool(jnp.allclose(logp32, ref_logp, atol=2e-3, rtol=2e-3))

    # 2) production bf16-MXU path: looser tolerance vs. the f32 reference.
    fwd = jax.jit(functools.partial(
        pointnet_densecls, k=K_CLASSES, tn=48, use_bf16=True))
    logp, trans, trans_feat = fwd(params, x)
    jax.block_until_ready((logp, trans))
    assert trans_feat is None
    assert logp.shape == (B, N, K_CLASSES)
    # log-softmax rows should exponentiate-and-sum to ~1
    assert bool(jnp.allclose(jnp.sum(jnp.exp(logp), axis=-1), 1.0, atol=1e-3))
    assert bool(jnp.allclose(trans, ref_trans, atol=5e-2, rtol=5e-2))
    assert bool(jnp.allclose(logp, ref_logp, atol=2.5e-1, rtol=1e-1))

    print("KERNEL_OK")
</pallas_src>

<mosaic_0001>
module attributes {stable_mosaic.version = 11 : i64} {
  func.func @_stn_conv_max_kernel(%arg0: i32, %arg1: i32, %arg2: memref<1x48x3xf32, #tpu.memory_space<vmem>>, %arg3: memref<3x64xf32, #tpu.memory_space<vmem>>, %arg4: memref<1x64xf32, #tpu.memory_space<vmem>>, %arg5: memref<64x128xf32, #tpu.memory_space<vmem>>, %arg6: memref<1x128xf32, #tpu.memory_space<vmem>>, %arg7: memref<128x1024xf32, #tpu.memory_space<vmem>>, %arg8: memref<1x1024xf32, #tpu.memory_space<vmem>>, %arg9: memref<1x1x1024xf32, #tpu.memory_space<vmem>>) attributes {dimension_semantics = [#tpu.dimension_semantics<parallel>, #tpu.dimension_semantics<arbitrary>], iteration_bounds = array<i64: 2, 2>, scalar_prefetch = 0 : i64, scratch_operands = 0 : i64, tpu.core_type = #tpu.core_type<tc>, window_params = [{transform_indices = @transform_0, window_bounds = array<i64: 1, 48, 3>}, {pipeline_mode = #tpu.pipeline_mode<synchronous>, transform_indices = @transform_1, window_bounds = array<i64: 3, 64>}, {pipeline_mode = #tpu.pipeline_mode<synchronous>, transform_indices = @transform_2, window_bounds = array<i64: 1, 64>}, {pipeline_mode = #tpu.pipeline_mode<synchronous>, transform_indices = @transform_3, window_bounds = array<i64: 64, 128>}, {pipeline_mode = #tpu.pipeline_mode<synchronous>, transform_indices = @transform_4, window_bounds = array<i64: 1, 128>}, {pipeline_mode = #tpu.pipeline_mode<synchronous>, transform_indices = @transform_5, window_bounds = array<i64: 128, 1024>}, {pipeline_mode = #tpu.pipeline_mode<synchronous>, transform_indices = @transform_6, window_bounds = array<i64: 1, 1024>}, {transform_indices = @transform_7, window_bounds = array<i64: 1, 1, 1024>}]} {
    %c0_i32 = arith.constant 0 : i32
    %0 = arith.cmpi eq, %arg1, %c0_i32 : i32
    %1 = arith.extui %0 : i1 to i32
    %c0_i32_0 = arith.constant 0 : i32
    %2 = arith.cmpi ne, %1, %c0_i32_0 : i32
    scf.if %2 {
      %cst_22 = arith.constant 0xFF800000 : f32
      %48 = vector.broadcast %cst_22 : f32 to vector<1x1x1024xf32>
      %c0_23 = arith.constant 0 : index
      %c0_24 = arith.constant 0 : index
      %c0_25 = arith.constant 0 : index
      %49 = vector.load %arg9[%c0_23, %c0_24, %c0_25] : memref<1x1x1024xf32, #tpu.memory_space<vmem>>, vector<1x1x1024xf32>
      tpu.vector_store %arg9[%c0_23, %c0_24, %c0_25], %48 {strides = array<i32>} : memref<1x1x1024xf32, #tpu.memory_space<vmem>>, vector<1x1x1024xf32>,
    } else {
    }
    %c0 = arith.constant 0 : index
    %c0_1 = arith.constant 0 : index
    %c0_2 = arith.constant 0 : index
    %3 = vector.load %arg2[%c0, %c0_1, %c0_2] : memref<1x48x3xf32, #tpu.memory_space<vmem>>, vector<1x48x3xf32>
    %4 = vector.shape_cast %3 : vector<1x48x3xf32> to vector<48x3xf32>
    %c0_3 = arith.constant 0 : index
    %c0_4 = arith.constant 0 : index
    %5 = vector.load %arg3[%c0_3, %c0_4] : memref<3x64xf32, #tpu.memory_space<vmem>>, vector<3x64xf32>
    %c0_5 = arith.constant 0 : index
    %c0_6 = arith.constant 0 : index
    %6 = vector.load %arg4[%c0_5, %c0_6] : memref<1x64xf32, #tpu.memory_space<vmem>>, vector<1x64xf32>
    %7 = vector.extract_strided_slice %4 {offsets = [0, 0], sizes = [48, 1], strides = [1, 1]} : vector<48x3xf32> to vector<48x1xf32>
    %8 = vector.extract_strided_slice %5 {offsets = [0, 0], sizes = [1, 64], strides = [1, 1]} : vector<3x64xf32> to vector<1x64xf32>
    %9 = vector.broadcast %7 : vector<48x1xf32> to vector<48x64xf32>
    %10 = vector.broadcast %8 : vector<1x64xf32> to vector<48x64xf32>
    %11 = arith.mulf %9, %10 : vector<48x64xf32>
    %12 = vector.extract_strided_slice %4 {offsets = [0, 1], sizes = [48, 1], strides = [1, 1]} : vector<48x3xf32> to vector<48x1xf32>
    %13 = vector.extract_strided_slice %5 {offsets = [1, 0], sizes = [1, 64], strides = [1, 1]} : vector<3x64xf32> to vector<1x64xf32>
    %14 = vector.broadcast %12 : vector<48x1xf32> to vector<48x64xf32>
    %15 = vector.broadcast %13 : vector<1x64xf32> to vector<48x64xf32>
    %16 = arith.mulf %14, %15 : vector<48x64xf32>
    %17 = arith.addf %11, %16 : vector<48x64xf32>
    %18 = vector.extract_strided_slice %4 {offsets = [0, 2], sizes = [48, 1], strides = [1, 1]} : vector<48x3xf32> to vector<48x1xf32>
    %19 = vector.extract_strided_slice %5 {offsets = [2, 0], sizes = [1, 64], strides = [1, 1]} : vector<3x64xf32> to vector<1x64xf32>
    %20 = vector.broadcast %18 : vector<48x1xf32> to vector<48x64xf32>
    %21 = vector.broadcast %19 : vector<1x64xf32> to vector<48x64xf32>
    %22 = arith.mulf %20, %21 : vector<48x64xf32>
    %23 = arith.addf %17, %22 : vector<48x64xf32>
    %24 = vector.broadcast %6 : vector<1x64xf32> to vector<48x64xf32>
    %25 = arith.addf %23, %24 : vector<48x64xf32>
    %cst = arith.constant 0.000000e+00 : f32
    %26 = vector.broadcast %cst : f32 to vector<48x64xf32>
    %27 = arith.maximumf %25, %26 : vector<48x64xf32>
    %c0_7 = arith.constant 0 : index
    %c0_8 = arith.constant 0 : index
    %28 = vector.load %arg5[%c0_7, %c0_8] : memref<64x128xf32, #tpu.memory_space<vmem>>, vector<64x128xf32>
    %cst_9 = arith.constant dense<0.000000e+00> : vector<48x128xf32>
    %29 = tpu.matmul %27, %28, %cst_9 {dimension_numbers = #tpu.dot_dimension_numbers<[1], [0], [0], [1], [0, 0, 1, 1], [], []>} : vector<48x64xf32>, vector<64x128xf32>, vector<48x128xf32> -> vector<48x128xf32>
    %c0_10 = arith.constant 0 : index
    %c0_11 = arith.constant 0 : index
    %30 = vector.load %arg6[%c0_10, %c0_11] : memref<1x128xf32, #tpu.memory_space<vmem>>, vector<1x128xf32>
    %31 = vector.broadcast %30 : vector<1x128xf32> to vector<48x128xf32>
    %32 = arith.addf %29, %31 : vector<48x128xf32>
    %cst_12 = arith.constant 0.000000e+00 : f32
    %33 = vector.broadcast %cst_12 : f32 to vector<48x128xf32>
    %34 = arith.maximumf %32, %33 : vector<48x128xf32>
    %c0_13 = arith.constant 0 : index
    %c0_14 = arith.constant 0 : index
    %35 = vector.load %arg7[%c0_13, %c0_14] : memref<128x1024xf32, #tpu.memory_space<vmem>>, vector<128x1024xf32>
    %cst_15 = arith.constant dense<0.000000e+00> : vector<48x1024xf32>
    %36 = tpu.matmul %34, %35, %cst_15 {dimension_numbers = #tpu.dot_dimension_numbers<[1], [0], [0], [1], [0, 0, 1, 1], [], []>} : vector<48x128xf32>, vector<128x1024xf32>, vector<48x1024xf32> -> vector<48x1024xf32>
    %c0_16 = arith.constant 0 : index
    %c0_17 = arith.constant 0 : index
    %37 = vector.load %arg8[%c0_16, %c0_17] : memref<1x1024xf32, #tpu.memory_space<vmem>>, vector<1x1024xf32>
    %38 = vector.broadcast %37 : vector<1x1024xf32> to vector<48x1024xf32>
    %39 = arith.addf %36, %38 : vector<48x1024xf32>
    %cst_18 = arith.constant 0.000000e+00 : f32
    %40 = vector.broadcast %cst_18 : f32 to vector<48x1024xf32>
    %41 = arith.maximumf %39, %40 : vector<48x1024xf32>
    %c1_i32 = arith.constant 1 : i32
    %42 = arith.cmpi eq, %arg1, %c1_i32 : i32
    %43 = arith.extui %42 : i1 to i32
    %c0_i32_19 = arith.constant 0 : i32
    %44 = arith.cmpi ne, %43, %c0_i32_19 : i32
    scf.if %44 {
      %c48_i32 = arith.constant 48 : i32
      %48 = arith.muli %arg1, %c48_i32 : i32
      %49 = tpu.iota {dimensions = array<i32: 0>} : vector<48x1xi32>
      %50 = vector.broadcast %48 : i32 to vector<48x1xi32>
      %51 = arith.addi %50, %49 : vector<48x1xi32>
      %c64_i32 = arith.constant 64 : i32
      %52 = vector.broadcast %c64_i32 : i32 to vector<48x1xi32>
      %53 = arith.cmpi slt, %51, %52 : vector<48x1xi32>
      %cst_22 = arith.constant 0xFF800000 : f32
      %54 = vector.shape_cast %53 : vector<48x1xi1> to vector<48x1xi1>
      %55 = vector.broadcast %54 : vector<48x1xi1> to vector<48x1024xi1>
      %56 = vector.broadcast %cst_22 : f32 to vector<48x1024xf32>
      %57 = arith.select %55, %41, %56 : vector<48x1024xi1>, vector<48x1024xf32>
      %c0_23 = arith.constant 0 : index
      %c0_24 = arith.constant 0 : index
      %c0_25 = arith.constant 0 : index
      %58 = vector.load %arg9[%c0_23, %c0_24, %c0_25] : memref<1x1x1024xf32, #tpu.memory_space<vmem>>, vector<1x1x1024xf32>
      %59 = vector.shape_cast %58 : vector<1x1x1024xf32> to vector<1x1024xf32>
      %cst_26 = arith.constant dense<0xFF800000> : vector<1024xf32>
      %60 = vector.multi_reduction <maximumf>, %57, %cst_26 [0] : vector<48x1024xf32> to vector<1024xf32>
      %61 = vector.shape_cast %60 : vector<1024xf32> to vector<1x1024xf32>
      %62 = arith.maximumf %59, %61 : vector<1x1024xf32>
      %c0_27 = arith.constant 0 : index
      %c0_28 = arith.constant 0 : index
      %c0_29 = arith.constant 0 : index
      %63 = vector.load %arg9[%c0_27, %c0_28, %c0_29] : memref<1x1x1024xf32, #tpu.memory_space<vmem>>, vector<1x1x1024xf32>
      %64 = vector.shape_cast %63 : vector<1x1x1024xf32> to vector<1x1024xf32>
      %65 = vector.shape_cast %62 : vector<1x1024xf32> to vector<1x1x1024xf32>
      tpu.vector_store %arg9[%c0_27, %c0_28, %c0_29], %65 {strides = array<i32>} : memref<1x1x1024xf32, #tpu.memory_space<vmem>>, vector<1x1x1024xf32>,
    } else {
    }
    %c1_i32_20 = arith.constant 1 : i32
    %45 = arith.cmpi ne, %arg1, %c1_i32_20 : i32
    %46 = arith.extui %45 : i1 to i32
    %c0_i32_21 = arith.constant 0 : i32
    %47 = arith.cmpi ne, %46, %c0_i32_21 : i32
    scf.if %47 {
      %c0_22 = arith.constant 0 : index
      %c0_23 = arith.constant 0 : index
      %c0_24 = arith.constant 0 : index
      %48 = vector.load %arg9[%c0_22, %c0_23, %c0_24] : memref<1x1x1024xf32, #tpu.memory_space<vmem>>, vector<1x1x1024xf32>
      %49 = vector.shape_cast %48 : vector<1x1x1024xf32> to vector<1x1024xf32>
      %cst_25 = arith.constant dense<0xFF800000> : vector<1024xf32>
      %50 = vector.multi_reduction <maximumf>, %41, %cst_25 [0] : vector<48x1024xf32> to vector<1024xf32>
      %51 = vector.shape_cast %50 : vector<1024xf32> to vector<1x1024xf32>
      %52 = arith.maximumf %49, %51 : vector<1x1024xf32>
      %c0_26 = arith.constant 0 : index
      %c0_27 = arith.constant 0 : index
      %c0_28 = arith.constant 0 : index
      %53 = vector.load %arg9[%c0_26, %c0_27, %c0_28] : memref<1x1x1024xf32, #tpu.memory_space<vmem>>, vector<1x1x1024xf32>
      %54 = vector.shape_cast %53 : vector<1x1x1024xf32> to vector<1x1024xf32>
      %55 = vector.shape_cast %52 : vector<1x1024xf32> to vector<1x1x1024xf32>
      tpu.vector_store %arg9[%c0_26, %c0_27, %c0_28], %55 {strides = array<i32>} : memref<1x1x1024xf32, #tpu.memory_space<vmem>>, vector<1x1x1024xf32>,
    } else {
    }
    return
  }
  func.func @transform_0(%arg0: i32, %arg1: i32) -> (i32, i32, i32) {
    %c0_i32 = arith.constant 0 : i32
    %c0_i32_0 = arith.constant 0 : i32
    return %arg0, %arg1, %c0_i32 : i32, i32, i32
  }
  func.func @transform_1(%arg0: i32, %arg1: i32) -> (i32, i32) {
    %c0_i32 = arith.constant 0 : i32
    %c0_i32_0 = arith.constant 0 : i32
    %c0_i32_1 = arith.constant 0 : i32
    return %c0_i32, %c0_i32_0 : i32, i32
  }
  func.func @transform_2(%arg0: i32, %arg1: i32) -> (i32, i32) {
    %c0_i32 = arith.constant 0 : i32
    %c0_i32_0 = arith.constant 0 : i32
    %c0_i32_1 = arith.constant 0 : i32
    return %c0_i32, %c0_i32_0 : i32, i32
  }
  func.func @transform_3(%arg0: i32, %arg1: i32) -> (i32, i32) {
    %c0_i32 = arith.constant 0 : i32
    %c0_i32_0 = arith.constant 0 : i32
    %c0_i32_1 = arith.constant 0 : i32
    return %c0_i32, %c0_i32_0 : i32, i32
  }
  func.func @transform_4(%arg0: i32, %arg1: i32) -> (i32, i32) {
    %c0_i32 = arith.constant 0 : i32
    %c0_i32_0 = arith.constant 0 : i32
    %c0_i32_1 = arith.constant 0 : i32
    return %c0_i32, %c0_i32_0 : i32, i32
  }
  func.func @transform_5(%arg0: i32, %arg1: i32) -> (i32, i32) {
    %c0_i32 = arith.constant 0 : i32
    %c0_i32_0 = arith.constant 0 : i32
    %c0_i32_1 = arith.constant 0 : i32
    return %c0_i32, %c0_i32_0 : i32, i32
  }
  func.func @transform_6(%arg0: i32, %arg1: i32) -> (i32, i32) {
    %c0_i32 = arith.constant 0 : i32
    %c0_i32_0 = arith.constant 0 : i32
    %c0_i32_1 = arith.constant 0 : i32
    return %c0_i32, %c0_i32_0 : i32, i32
  }
  func.func @transform_7(%arg0: i32, %arg1: i32) -> (i32, i32, i32) {
    %c0_i32 = arith.constant 0 : i32
    %c0_i32_0 = arith.constant 0 : i32
    %c0_i32_1 = arith.constant 0 : i32
    return %arg0, %c0_i32, %c0_i32_0 : i32, i32, i32
  }
}

module attributes {stable_mosaic.version = 11 : i64} {
  func.func @_feat_conv_max_kernel(%arg0: i32, %arg1: i32, %arg2: memref<1x48x3xf32, #tpu.memory_space<vmem>>, %arg3: memref<1x3x64xf32, #tpu.memory_space<vmem>>, %arg4: memref<1x64xf32, #tpu.memory_space<vmem>>, %arg5: memref<64x64xf32, #tpu.memory_space<vmem>>, %arg6: memref<1x64xf32, #tpu.memory_space<vmem>>, %arg7: memref<64x128xf32, #tpu.memory_space<vmem>>, %arg8: memref<1x128xf32, #tpu.memory_space<vmem>>, %arg9: memref<128x1024xf32, #tpu.memory_space<vmem>>, %arg10: memref<1x1024xf32, #tpu.memory_space<vmem>>, %arg11: memref<1x1x1024xf32, #tpu.memory_space<vmem>>) attributes {dimension_semantics = [#tpu.dimension_semantics<parallel>, #tpu.dimension_semantics<arbitrary>], iteration_bounds = array<i64: 2, 2>, scalar_prefetch = 0 : i64, scratch_operands = 0 : i64, tpu.core_type = #tpu.core_type<tc>, window_params = [{transform_indices = @transform_0, window_bounds = array<i64: 1, 48, 3>}, {transform_indices = @transform_1, window_bounds = array<i64: 1, 3, 64>}, {pipeline_mode = #tpu.pipeline_mode<synchronous>, transform_indices = @transform_2, window_bounds = array<i64: 1, 64>}, {pipeline_mode = #tpu.pipeline_mode<synchronous>, transform_indices = @transform_3, window_bounds = array<i64: 64, 64>}, {pipeline_mode = #tpu.pipeline_mode<synchronous>, transform_indices = @transform_4, window_bounds = array<i64: 1, 64>}, {pipeline_mode = #tpu.pipeline_mode<synchronous>, transform_indices = @transform_5, window_bounds = array<i64: 64, 128>}, {pipeline_mode = #tpu.pipeline_mode<synchronous>, transform_indices = @transform_6, window_bounds = array<i64: 1, 128>}, {pipeline_mode = #tpu.pipeline_mode<synchronous>, transform_indices = @transform_7, window_bounds = array<i64: 128, 1024>}, {pipeline_mode = #tpu.pipeline_mode<synchronous>, transform_indices = @transform_8, window_bounds = array<i64: 1, 1024>}, {transform_indices = @transform_9, window_bounds = array<i64: 1, 1, 1024>}]} {
    %c0_i32 = arith.constant 0 : i32
    %0 = arith.cmpi eq, %arg1, %c0_i32 : i32
    %1 = arith.extui %0 : i1 to i32
    %c0_i32_0 = arith.constant 0 : i32
    %2 = arith.cmpi ne, %1, %c0_i32_0 : i32
    scf.if %2 {
      %cst_28 = arith.constant 0xFF800000 : f32
      %54 = vector.broadcast %cst_28 : f32 to vector<1x1x1024xf32>
      %c0_29 = arith.constant 0 : index
      %c0_30 = arith.constant 0 : index
      %c0_31 = arith.constant 0 : index
      %55 = vector.load %arg11[%c0_29, %c0_30, %c0_31] : memref<1x1x1024xf32, #tpu.memory_space<vmem>>, vector<1x1x1024xf32>
      tpu.vector_store %arg11[%c0_29, %c0_30, %c0_31], %54 {strides = array<i32>} : memref<1x1x1024xf32, #tpu.memory_space<vmem>>, vector<1x1x1024xf32>,
    } else {
    }
    %c0 = arith.constant 0 : index
    %c0_1 = arith.constant 0 : index
    %c0_2 = arith.constant 0 : index
    %3 = vector.load %arg2[%c0, %c0_1, %c0_2] : memref<1x48x3xf32, #tpu.memory_space<vmem>>, vector<1x48x3xf32>
    %4 = vector.shape_cast %3 : vector<1x48x3xf32> to vector<48x3xf32>
    %c0_3 = arith.constant 0 : index
    %c0_4 = arith.constant 0 : index
    %c0_5 = arith.constant 0 : index
    %5 = vector.load %arg3[%c0_3, %c0_4, %c0_5] : memref<1x3x64xf32, #tpu.memory_space<vmem>>, vector<1x3x64xf32>
    %6 = vector.shape_cast %5 : vector<1x3x64xf32> to vector<3x64xf32>
    %c0_6 = arith.constant 0 : index
    %c0_7 = arith.constant 0 : index
    %7 = vector.load %arg4[%c0_6, %c0_7] : memref<1x64xf32, #tpu.memory_space<vmem>>, vector<1x64xf32>
    %8 = vector.extract_strided_slice %4 {offsets = [0, 0], sizes = [48, 1], strides = [1, 1]} : vector<48x3xf32> to vector<48x1xf32>
    %9 = vector.extract_strided_slice %6 {offsets = [0, 0], sizes = [1, 64], strides = [1, 1]} : vector<3x64xf32> to vector<1x64xf32>
    %10 = vector.broadcast %8 : vector<48x1xf32> to vector<48x64xf32>
    %11 = vector.broadcast %9 : vector<1x64xf32> to vector<48x64xf32>
    %12 = arith.mulf %10, %11 : vector<48x64xf32>
    %13 = vector.extract_strided_slice %4 {offsets = [0, 1], sizes = [48, 1], strides = [1, 1]} : vector<48x3xf32> to vector<48x1xf32>
    %14 = vector.extract_strided_slice %6 {offsets = [1, 0], sizes = [1, 64], strides = [1, 1]} : vector<3x64xf32> to vector<1x64xf32>
    %15 = vector.broadcast %13 : vector<48x1xf32> to vector<48x64xf32>
    %16 = vector.broadcast %14 : vector<1x64xf32> to vector<48x64xf32>
    %17 = arith.mulf %15, %16 : vector<48x64xf32>
    %18 = arith.addf %12, %17 : vector<48x64xf32>
    %19 = vector.extract_strided_slice %4 {offsets = [0, 2], sizes = [48, 1], strides = [1, 1]} : vector<48x3xf32> to vector<48x1xf32>
    %20 = vector.extract_strided_slice %6 {offsets = [2, 0], sizes = [1, 64], strides = [1, 1]} : vector<3x64xf32> to vector<1x64xf32>
    %21 = vector.broadcast %19 : vector<48x1xf32> to vector<48x64xf32>
    %22 = vector.broadcast %20 : vector<1x64xf32> to vector<48x64xf32>
    %23 = arith.mulf %21, %22 : vector<48x64xf32>
    %24 = arith.addf %18, %23 : vector<48x64xf32>
    %25 = vector.broadcast %7 : vector<1x64xf32> to vector<48x64xf32>
    %26 = arith.addf %24, %25 : vector<48x64xf32>
    %cst = arith.constant 0.000000e+00 : f32
    %27 = vector.broadcast %cst : f32 to vector<48x64xf32>
    %28 = arith.maximumf %26, %27 : vector<48x64xf32>
    %c0_8 = arith.constant 0 : index
    %c0_9 = arith.constant 0 : index
    %29 = vector.load %arg5[%c0_8, %c0_9] : memref<64x64xf32, #tpu.memory_space<vmem>>, vector<64x64xf32>
    %cst_10 = arith.constant dense<0.000000e+00> : vector<48x64xf32>
    %30 = tpu.matmul %28, %29, %cst_10 {dimension_numbers = #tpu.dot_dimension_numbers<[1], [0], [0], [1], [0, 0, 1, 1], [], []>} : vector<48x64xf32>, vector<64x64xf32>, vector<48x64xf32> -> vector<48x64xf32>
    %c0_11 = arith.constant 0 : index
    %c0_12 = arith.constant 0 : index
    %31 = vector.load %arg6[%c0_11, %c0_12] : memref<1x64xf32, #tpu.memory_space<vmem>>, vector<1x64xf32>
    %32 = vector.broadcast %31 : vector<1x64xf32> to vector<48x64xf32>
    %33 = arith.addf %30, %32 : vector<48x64xf32>
    %cst_13 = arith.constant 0.000000e+00 : f32
    %34 = vector.broadcast %cst_13 : f32 to vector<48x64xf32>
    %35 = arith.maximumf %33, %34 : vector<48x64xf32>
    %c0_14 = arith.constant 0 : index
    %c0_15 = arith.constant 0 : index
    %36 = vector.load %arg7[%c0_14, %c0_15] : memref<64x128xf32, #tpu.memory_space<vmem>>, vector<64x128xf32>
    %cst_16 = arith.constant dense<0.000000e+00> : vector<48x128xf32>
    %37 = tpu.matmul %35, %36, %cst_16 {dimension_numbers = #tpu.dot_dimension_numbers<[1], [0], [0], [1], [0, 0, 1, 1], [], []>} : vector<48x64xf32>, vector<64x128xf32>, vector<48x128xf32> -> vector<48x128xf32>
    %c0_17 = arith.constant 0 : index
    %c0_18 = arith.constant 0 : index
    %38 = vector.load %arg8[%c0_17, %c0_18] : memref<1x128xf32, #tpu.memory_space<vmem>>, vector<1x128xf32>
    %39 = vector.broadcast %38 : vector<1x128xf32> to vector<48x128xf32>
    %40 = arith.addf %37, %39 : vector<48x128xf32>
    %cst_19 = arith.constant 0.000000e+00 : f32
    %41 = vector.broadcast %cst_19 : f32 to vector<48x128xf32>
    %42 = arith.maximumf %40, %41 : vector<48x128xf32>
    %c0_20 = arith.constant 0 : index
    %c0_21 = arith.constant 0 : index
    %43 = vector.load %arg9[%c0_20, %c0_21] : memref<128x1024xf32, #tpu.memory_space<vmem>>, vector<128x1024xf32>
    %cst_22 = arith.constant dense<0.000000e+00> : vector<48x1024xf32>
    %44 = tpu.matmul %42, %43, %cst_22 {dimension_numbers = #tpu.dot_dimension_numbers<[1], [0], [0], [1], [0, 0, 1, 1], [], []>} : vector<48x128xf32>, vector<128x1024xf32>, vector<48x1024xf32> -> vector<48x1024xf32>
    %c0_23 = arith.constant 0 : index
    %c0_24 = arith.constant 0 : index
    %45 = vector.load %arg10[%c0_23, %c0_24] : memref<1x1024xf32, #tpu.memory_space<vmem>>, vector<1x1024xf32>
    %46 = vector.broadcast %45 : vector<1x1024xf32> to vector<48x1024xf32>
    %47 = arith.addf %44, %46 : vector<48x1024xf32>
    %c1_i32 = arith.constant 1 : i32
    %48 = arith.cmpi eq, %arg1, %c1_i32 : i32
    %49 = arith.extui %48 : i1 to i32
    %c0_i32_25 = arith.constant 0 : i32
    %50 = arith.cmpi ne, %49, %c0_i32_25 : i32
    scf.if %50 {
      %c48_i32 = arith.constant 48 : i32
      %54 = arith.muli %arg1, %c48_i32 : i32
      %55 = tpu.iota {dimensions = array<i32: 0>} : vector<48x1xi32>
      %56 = vector.broadcast %54 : i32 to vector<48x1xi32>
      %57 = arith.addi %56, %55 : vector<48x1xi32>
      %c64_i32 = arith.constant 64 : i32
      %58 = vector.broadcast %c64_i32 : i32 to vector<48x1xi32>
      %59 = arith.cmpi slt, %57, %58 : vector<48x1xi32>
      %cst_28 = arith.constant 0xFF800000 : f32
      %60 = vector.shape_cast %59 : vector<48x1xi1> to vector<48x1xi1>
      %61 = vector.broadcast %60 : vector<48x1xi1> to vector<48x1024xi1>
      %62 = vector.broadcast %cst_28 : f32 to vector<48x1024xf32>
      %63 = arith.select %61, %47, %62 : vector<48x1024xi1>, vector<48x1024xf32>
      %c0_29 = arith.constant 0 : index
      %c0_30 = arith.constant 0 : index
      %c0_31 = arith.constant 0 : index
      %64 = vector.load %arg11[%c0_29, %c0_30, %c0_31] : memref<1x1x1024xf32, #tpu.memory_space<vmem>>, vector<1x1x1024xf32>
      %65 = vector.shape_cast %64 : vector<1x1x1024xf32> to vector<1x1024xf32>
      %cst_32 = arith.constant dense<0xFF800000> : vector<1024xf32>
      %66 = vector.multi_reduction <maximumf>, %63, %cst_32 [0] : vector<48x1024xf32> to vector<1024xf32>
      %67 = vector.shape_cast %66 : vector<1024xf32> to vector<1x1024xf32>
      %68 = arith.maximumf %65, %67 : vector<1x1024xf32>
      %c0_33 = arith.constant 0 : index
      %c0_34 = arith.constant 0 : index
      %c0_35 = arith.constant 0 : index
      %69 = vector.load %arg11[%c0_33, %c0_34, %c0_35] : memref<1x1x1024xf32, #tpu.memory_space<vmem>>, vector<1x1x1024xf32>
      %70 = vector.shape_cast %69 : vector<1x1x1024xf32> to vector<1x1024xf32>
      %71 = vector.shape_cast %68 : vector<1x1024xf32> to vector<1x1x1024xf32>
      tpu.vector_store %arg11[%c0_33, %c0_34, %c0_35], %71 {strides = array<i32>} : memref<1x1x1024xf32, #tpu.memory_space<vmem>>, vector<1x1x1024xf32>,
    } else {
    }
    %c1_i32_26 = arith.constant 1 : i32
    %51 = arith.cmpi ne, %arg1, %c1_i32_26 : i32
    %52 = arith.extui %51 : i1 to i32
    %c0_i32_27 = arith.constant 0 : i32
    %53 = arith.cmpi ne, %52, %c0_i32_27 : i32
    scf.if %53 {
      %c0_28 = arith.constant 0 : index
      %c0_29 = arith.constant 0 : index
      %c0_30 = arith.constant 0 : index
      %54 = vector.load %arg11[%c0_28, %c0_29, %c0_30] : memref<1x1x1024xf32, #tpu.memory_space<vmem>>, vector<1x1x1024xf32>
      %55 = vector.shape_cast %54 : vector<1x1x1024xf32> to vector<1x1024xf32>
      %cst_31 = arith.constant dense<0xFF800000> : vector<1024xf32>
      %56 = vector.multi_reduction <maximumf>, %47, %cst_31 [0] : vector<48x1024xf32> to vector<1024xf32>
      %57 = vector.shape_cast %56 : vector<1024xf32> to vector<1x1024xf32>
      %58 = arith.maximumf %55, %57 : vector<1x1024xf32>
      %c0_32 = arith.constant 0 : index
      %c0_33 = arith.constant 0 : index
      %c0_34 = arith.constant 0 : index
      %59 = vector.load %arg11[%c0_32, %c0_33, %c0_34] : memref<1x1x1024xf32, #tpu.memory_space<vmem>>, vector<1x1x1024xf32>
      %60 = vector.shape_cast %59 : vector<1x1x1024xf32> to vector<1x1024xf32>
      %61 = vector.shape_cast %58 : vector<1x1024xf32> to vector<1x1x1024xf32>
      tpu.vector_store %arg11[%c0_32, %c0_33, %c0_34], %61 {strides = array<i32>} : memref<1x1x1024xf32, #tpu.memory_space<vmem>>, vector<1x1x1024xf32>,
    } else {
    }
    return
  }
  func.func @transform_0(%arg0: i32, %arg1: i32) -> (i32, i32, i32) {
    %c0_i32 = arith.constant 0 : i32
    %c0_i32_0 = arith.constant 0 : i32
    return %arg0, %arg1, %c0_i32 : i32, i32, i32
  }
  func.func @transform_1(%arg0: i32, %arg1: i32) -> (i32, i32, i32) {
    %c0_i32 = arith.constant 0 : i32
    %c0_i32_0 = arith.constant 0 : i32
    %c0_i32_1 = arith.constant 0 : i32
    return %arg0, %c0_i32, %c0_i32_0 : i32, i32, i32
  }
  func.func @transform_2(%arg0: i32, %arg1: i32) -> (i32, i32) {
    %c0_i32 = arith.constant 0 : i32
    %c0_i32_0 = arith.constant 0 : i32
    %c0_i32_1 = arith.constant 0 : i32
    return %c0_i32, %c0_i32_0 : i32, i32
  }
  func.func @transform_3(%arg0: i32, %arg1: i32) -> (i32, i32) {
    %c0_i32 = arith.constant 0 : i32
    %c0_i32_0 = arith.constant 0 : i32
    %c0_i32_1 = arith.constant 0 : i32
    return %c0_i32, %c0_i32_0 : i32, i32
  }
  func.func @transform_4(%arg0: i32, %arg1: i32) -> (i32, i32) {
    %c0_i32 = arith.constant 0 : i32
    %c0_i32_0 = arith.constant 0 : i32
    %c0_i32_1 = arith.constant 0 : i32
    return %c0_i32, %c0_i32_0 : i32, i32
  }
  func.func @transform_5(%arg0: i32, %arg1: i32) -> (i32, i32) {
    %c0_i32 = arith.constant 0 : i32
    %c0_i32_0 = arith.constant 0 : i32
    %c0_i32_1 = arith.constant 0 : i32
    return %c0_i32, %c0_i32_0 : i32, i32
  }
  func.func @transform_6(%arg0: i32, %arg1: i32) -> (i32, i32) {
    %c0_i32 = arith.constant 0 : i32
    %c0_i32_0 = arith.constant 0 : i32
    %c0_i32_1 = arith.constant 0 : i32
    return %c0_i32, %c0_i32_0 : i32, i32
  }
  func.func @transform_7(%arg0: i32, %arg1: i32) -> (i32, i32) {
    %c0_i32 = arith.constant 0 : i32
    %c0_i32_0 = arith.constant 0 : i32
    %c0_i32_1 = arith.constant 0 : i32
    return %c0_i32, %c0_i32_0 : i32, i32
  }
  func.func @transform_8(%arg0: i32, %arg1: i32) -> (i32, i32) {
    %c0_i32 = arith.constant 0 : i32
    %c0_i32_0 = arith.constant 0 : i32
    %c0_i32_1 = arith.constant 0 : i32
    return %c0_i32, %c0_i32_0 : i32, i32
  }
  func.func @transform_9(%arg0: i32, %arg1: i32) -> (i32, i32, i32) {
    %c0_i32 = arith.constant 0 : i32
    %c0_i32_0 = arith.constant 0 : i32
    %c0_i32_1 = arith.constant 0 : i32
    return %arg0, %c0_i32, %c0_i32_0 : i32, i32, i32
  }
}

module attributes {stable_mosaic.version = 11 : i64} {
  func.func @_seg_head_kernel(%arg0: i32, %arg1: i32, %arg2: memref<1x48x3xf32, #tpu.memory_space<vmem>>, %arg3: memref<1x3x64xf32, #tpu.memory_space<vmem>>, %arg4: memref<1x64xf32, #tpu.memory_space<vmem>>, %arg5: memref<64x64xf32, #tpu.memory_space<vmem>>, %arg6: memref<1x64xf32, #tpu.memory_space<vmem>>, %arg7: memref<1x1x512xf32, #tpu.memory_space<vmem>>, %arg8: memref<64x512xf32, #tpu.memory_space<vmem>>, %arg9: memref<512x256xf32, #tpu.memory_space<vmem>>, %arg10: memref<1x256xf32, #tpu.memory_space<vmem>>, %arg11: memref<256x128xf32, #tpu.memory_space<vmem>>, %arg12: memref<1x128xf32, #tpu.memory_space<vmem>>, %arg13: memref<128x2xf32, #tpu.memory_space<vmem>>, %arg14: memref<1x2xf32, #tpu.memory_space<vmem>>, %arg15: memref<1x48x2xf32, #tpu.memory_space<vmem>>) attributes {dimension_semantics = [#tpu.dimension_semantics<parallel>, #tpu.dimension_semantics<parallel>], iteration_bounds = array<i64: 2, 2>, scalar_prefetch = 0 : i64, scratch_operands = 0 : i64, tpu.core_type = #tpu.core_type<tc>, window_params = [{transform_indices = @transform_0, window_bounds = array<i64: 1, 48, 3>}, {transform_indices = @transform_1, window_bounds = array<i64: 1, 3, 64>}, {pipeline_mode = #tpu.pipeline_mode<synchronous>, transform_indices = @transform_2, window_bounds = array<i64: 1, 64>}, {pipeline_mode = #tpu.pipeline_mode<synchronous>, transform_indices = @transform_3, window_bounds = array<i64: 64, 64>}, {pipeline_mode = #tpu.pipeline_mode<synchronous>, transform_indices = @transform_4, window_bounds = array<i64: 1, 64>}, {transform_indices = @transform_5, window_bounds = array<i64: 1, 1, 512>}, {pipeline_mode = #tpu.pipeline_mode<synchronous>, transform_indices = @transform_6, window_bounds = array<i64: 64, 512>}, {pipeline_mode = #tpu.pipeline_mode<synchronous>, transform_indices = @transform_7, window_bounds = array<i64: 512, 256>}, {pipeline_mode = #tpu.pipeline_mode<synchronous>, transform_indices = @transform_8, window_bounds = array<i64: 1, 256>}, {pipeline_mode = #tpu.pipeline_mode<synchronous>, transform_indices = @transform_9, window_bounds = array<i64: 256, 128>}, {pipeline_mode = #tpu.pipeline_mode<synchronous>, transform_indices = @transform_10, window_bounds = array<i64: 1, 128>}, {pipeline_mode = #tpu.pipeline_mode<synchronous>, transform_indices = @transform_11, window_bounds = array<i64: 128, 2>}, {pipeline_mode = #tpu.pipeline_mode<synchronous>, transform_indices = @transform_12, window_bounds = array<i64: 1, 2>}, {transform_indices = @transform_13, window_bounds = array<i64: 1, 48, 2>}]} {
    %c0 = arith.constant 0 : index
    %c0_0 = arith.constant 0 : index
    %c0_1 = arith.constant 0 : index
    %0 = vector.load %arg2[%c0, %c0_0, %c0_1] : memref<1x48x3xf32, #tpu.memory_space<vmem>>, vector<1x48x3xf32>
    %1 = vector.shape_cast %0 : vector<1x48x3xf32> to vector<48x3xf32>
    %c0_2 = arith.constant 0 : index
    %c0_3 = arith.constant 0 : index
    %c0_4 = arith.constant 0 : index
    %2 = vector.load %arg3[%c0_2, %c0_3, %c0_4] : memref<1x3x64xf32, #tpu.memory_space<vmem>>, vector<1x3x64xf32>
    %3 = vector.shape_cast %2 : vector<1x3x64xf32> to vector<3x64xf32>
    %c0_5 = arith.constant 0 : index
    %c0_6 = arith.constant 0 : index
    %4 = vector.load %arg4[%c0_5, %c0_6] : memref<1x64xf32, #tpu.memory_space<vmem>>, vector<1x64xf32>
    %5 = vector.extract_strided_slice %1 {offsets = [0, 0], sizes = [48, 1], strides = [1, 1]} : vector<48x3xf32> to vector<48x1xf32>
    %6 = vector.extract_strided_slice %3 {offsets = [0, 0], sizes = [1, 64], strides = [1, 1]} : vector<3x64xf32> to vector<1x64xf32>
    %7 = vector.broadcast %5 : vector<48x1xf32> to vector<48x64xf32>
    %8 = vector.broadcast %6 : vector<1x64xf32> to vector<48x64xf32>
    %9 = arith.mulf %7, %8 : vector<48x64xf32>
    %10 = vector.extract_strided_slice %1 {offsets = [0, 1], sizes = [48, 1], strides = [1, 1]} : vector<48x3xf32> to vector<48x1xf32>
    %11 = vector.extract_strided_slice %3 {offsets = [1, 0], sizes = [1, 64], strides = [1, 1]} : vector<3x64xf32> to vector<1x64xf32>
    %12 = vector.broadcast %10 : vector<48x1xf32> to vector<48x64xf32>
    %13 = vector.broadcast %11 : vector<1x64xf32> to vector<48x64xf32>
    %14 = arith.mulf %12, %13 : vector<48x64xf32>
    %15 = arith.addf %9, %14 : vector<48x64xf32>
    %16 = vector.extract_strided_slice %1 {offsets = [0, 2], sizes = [48, 1], strides = [1, 1]} : vector<48x3xf32> to vector<48x1xf32>
    %17 = vector.extract_strided_slice %3 {offsets = [2, 0], sizes = [1, 64], strides = [1, 1]} : vector<3x64xf32> to vector<1x64xf32>
    %18 = vector.broadcast %16 : vector<48x1xf32> to vector<48x64xf32>
    %19 = vector.broadcast %17 : vector<1x64xf32> to vector<48x64xf32>
    %20 = arith.mulf %18, %19 : vector<48x64xf32>
    %21 = arith.addf %15, %20 : vector<48x64xf32>
    %22 = vector.broadcast %4 : vector<1x64xf32> to vector<48x64xf32>
    %23 = arith.addf %21, %22 : vector<48x64xf32>
    %cst = arith.constant 0.000000e+00 : f32
    %24 = vector.broadcast %cst : f32 to vector<48x64xf32>
    %25 = arith.maximumf %23, %24 : vector<48x64xf32>
    %c0_7 = arith.constant 0 : index
    %c0_8 = arith.constant 0 : index
    %26 = vector.load %arg5[%c0_7, %c0_8] : memref<64x64xf32, #tpu.memory_space<vmem>>, vector<64x64xf32>
    %cst_9 = arith.constant dense<0.000000e+00> : vector<48x64xf32>
    %27 = tpu.matmul %25, %26, %cst_9 {dimension_numbers = #tpu.dot_dimension_numbers<[1], [0], [0], [1], [0, 0, 1, 1], [], []>} : vector<48x64xf32>, vector<64x64xf32>, vector<48x64xf32> -> vector<48x64xf32>
    %c0_10 = arith.constant 0 : index
    %c0_11 = arith.constant 0 : index
    %28 = vector.load %arg6[%c0_10, %c0_11] : memref<1x64xf32, #tpu.memory_space<vmem>>, vector<1x64xf32>
    %29 = vector.broadcast %28 : vector<1x64xf32> to vector<48x64xf32>
    %30 = arith.addf %27, %29 : vector<48x64xf32>
    %cst_12 = arith.constant 0.000000e+00 : f32
    %31 = vector.broadcast %cst_12 : f32 to vector<48x64xf32>
    %32 = arith.maximumf %30, %31 : vector<48x64xf32>
    %c0_13 = arith.constant 0 : index
    %c0_14 = arith.constant 0 : index
    %33 = vector.load %arg8[%c0_13, %c0_14] : memref<64x512xf32, #tpu.memory_space<vmem>>, vector<64x512xf32>
    %cst_15 = arith.constant dense<0.000000e+00> : vector<48x512xf32>
    %34 = tpu.matmul %32, %33, %cst_15 {dimension_numbers = #tpu.dot_dimension_numbers<[1], [0], [0], [1], [0, 0, 1, 1], [], []>} : vector<48x64xf32>, vector<64x512xf32>, vector<48x512xf32> -> vector<48x512xf32>
    %c0_16 = arith.constant 0 : index
    %c0_17 = arith.constant 0 : index
    %c0_18 = arith.constant 0 : index
    %35 = vector.load %arg7[%c0_16, %c0_17, %c0_18] : memref<1x1x512xf32, #tpu.memory_space<vmem>>, vector<1x1x512xf32>
    %36 = vector.shape_cast %35 : vector<1x1x512xf32> to vector<1x512xf32>
    %37 = vector.broadcast %36 : vector<1x512xf32> to vector<48x512xf32>
    %38 = arith.addf %34, %37 : vector<48x512xf32>
    %cst_19 = arith.constant 0.000000e+00 : f32
    %39 = vector.broadcast %cst_19 : f32 to vector<48x512xf32>
    %40 = arith.maximumf %38, %39 : vector<48x512xf32>
    %c0_20 = arith.constant 0 : index
    %c0_21 = arith.constant 0 : index
    %41 = vector.load %arg9[%c0_20, %c0_21] : memref<512x256xf32, #tpu.memory_space<vmem>>, vector<512x256xf32>
    %cst_22 = arith.constant dense<0.000000e+00> : vector<48x256xf32>
    %42 = tpu.matmul %40, %41, %cst_22 {dimension_numbers = #tpu.dot_dimension_numbers<[1], [0], [0], [1], [0, 0, 1, 1], [], []>} : vector<48x512xf32>, vector<512x256xf32>, vector<48x256xf32> -> vector<48x256xf32>
    %c0_23 = arith.constant 0 : index
    %c0_24 = arith.constant 0 : index
    %43 = vector.load %arg10[%c0_23, %c0_24] : memref<1x256xf32, #tpu.memory_space<vmem>>, vector<1x256xf32>
    %44 = vector.broadcast %43 : vector<1x256xf32> to vector<48x256xf32>
    %45 = arith.addf %42, %44 : vector<48x256xf32>
    %cst_25 = arith.constant 0.000000e+00 : f32
    %46 = vector.broadcast %cst_25 : f32 to vector<48x256xf32>
    %47 = arith.maximumf %45, %46 : vector<48x256xf32>
    %c0_26 = arith.constant 0 : index
    %c0_27 = arith.constant 0 : index
    %48 = vector.load %arg11[%c0_26, %c0_27] : memref<256x128xf32, #tpu.memory_space<vmem>>, vector<256x128xf32>
    %cst_28 = arith.constant dense<0.000000e+00> : vector<48x128xf32>
    %49 = tpu.matmul %47, %48, %cst_28 {dimension_numbers = #tpu.dot_dimension_numbers<[1], [0], [0], [1], [0, 0, 1, 1], [], []>} : vector<48x256xf32>, vector<256x128xf32>, vector<48x128xf32> -> vector<48x128xf32>
    %c0_29 = arith.constant 0 : index
    %c0_30 = arith.constant 0 : index
    %50 = vector.load %arg12[%c0_29, %c0_30] : memref<1x128xf32, #tpu.memory_space<vmem>>, vector<1x128xf32>
    %51 = vector.broadcast %50 : vector<1x128xf32> to vector<48x128xf32>
    %52 = arith.addf %49, %51 : vector<48x128xf32>
    %cst_31 = arith.constant 0.000000e+00 : f32
    %53 = vector.broadcast %cst_31 : f32 to vector<48x128xf32>
    %54 = arith.maximumf %52, %53 : vector<48x128xf32>
    %c0_32 = arith.constant 0 : index
    %c0_33 = arith.constant 0 : index
    %55 = vector.load %arg13[%c0_32, %c0_33] : memref<128x2xf32, #tpu.memory_space<vmem>>, vector<128x2xf32>
    %cst_34 = arith.constant dense<0.000000e+00> : vector<48x2xf32>
    %56 = tpu.matmul %54, %55, %cst_34 {dimension_numbers = #tpu.dot_dimension_numbers<[1], [0], [0], [1], [0, 0, 1, 1], [], []>} : vector<48x128xf32>, vector<128x2xf32>, vector<48x2xf32> -> vector<48x2xf32>
    %c0_35 = arith.constant 0 : index
    %c0_36 = arith.constant 0 : index
    %57 = vector.load %arg14[%c0_35, %c0_36] : memref<1x2xf32, #tpu.memory_space<vmem>>, vector<1x2xf32>
    %58 = vector.broadcast %57 : vector<1x2xf32> to vector<48x2xf32>
    %59 = arith.addf %56, %58 : vector<48x2xf32>
    %60 = vector.extract_strided_slice %59 {offsets = [0, 0], sizes = [48, 1], strides = [1, 1]} : vector<48x2xf32> to vector<48x1xf32>
    %61 = vector.extract_strided_slice %59 {offsets = [0, 1], sizes = [48, 1], strides = [1, 1]} : vector<48x2xf32> to vector<48x1xf32>
    %62 = arith.maximumf %60, %61 : vector<48x1xf32>
    %63 = arith.subf %60, %62 : vector<48x1xf32>
    %64 = math.exp %63 : vector<48x1xf32>
    %65 = arith.subf %61, %62 : vector<48x1xf32>
    %66 = math.exp %65 : vector<48x1xf32>
    %67 = arith.addf %64, %66 : vector<48x1xf32>
    %68 = math.log %67 : vector<48x1xf32>
    %69 = arith.addf %62, %68 : vector<48x1xf32>
    %70 = vector.broadcast %69 : vector<48x1xf32> to vector<48x2xf32>
    %71 = arith.subf %59, %70 : vector<48x2xf32>
    %c0_37 = arith.constant 0 : index
    %c0_38 = arith.constant 0 : index
    %c0_39 = arith.constant 0 : index
    %72 = vector.load %arg15[%c0_37, %c0_38, %c0_39] : memref<1x48x2xf32, #tpu.memory_space<vmem>>, vector<1x48x2xf32>
    %73 = vector.shape_cast %72 : vector<1x48x2xf32> to vector<48x2xf32>
    %74 = vector.shape_cast %71 : vector<48x2xf32> to vector<1x48x2xf32>
    tpu.vector_store %arg15[%c0_37, %c0_38, %c0_39], %74 {strides = array<i32>} : memref<1x48x2xf32, #tpu.memory_space<vmem>>, vector<1x48x2xf32>,
    return
  }
  func.func @transform_0(%arg0: i32, %arg1: i32) -> (i32, i32, i32) {
    %c0_i32 = arith.constant 0 : i32
    %c0_i32_0 = arith.constant 0 : i32
    return %arg0, %arg1, %c0_i32 : i32, i32, i32
  }
  func.func @transform_1(%arg0: i32, %arg1: i32) -> (i32, i32, i32) {
    %c0_i32 = arith.constant 0 : i32
    %c0_i32_0 = arith.constant 0 : i32
    %c0_i32_1 = arith.constant 0 : i32
    return %arg0, %c0_i32, %c0_i32_0 : i32, i32, i32
  }
  func.func @transform_2(%arg0: i32, %arg1: i32) -> (i32, i32) {
    %c0_i32 = arith.constant 0 : i32
    %c0_i32_0 = arith.constant 0 : i32
    %c0_i32_1 = arith.constant 0 : i32
    return %c0_i32, %c0_i32_0 : i32, i32
  }
  func.func @transform_3(%arg0: i32, %arg1: i32) -> (i32, i32) {
    %c0_i32 = arith.constant 0 : i32
    %c0_i32_0 = arith.constant 0 : i32
    %c0_i32_1 = arith.constant 0 : i32
    return %c0_i32, %c0_i32_0 : i32, i32
  }
  func.func @transform_4(%arg0: i32, %arg1: i32) -> (i32, i32) {
    %c0_i32 = arith.constant 0 : i32
    %c0_i32_0 = arith.constant 0 : i32
    %c0_i32_1 = arith.constant 0 : i32
    return %c0_i32, %c0_i32_0 : i32, i32
  }
  func.func @transform_5(%arg0: i32, %arg1: i32) -> (i32, i32, i32) {
    %c0_i32 = arith.constant 0 : i32
    %c0_i32_0 = arith.constant 0 : i32
    %c0_i32_1 = arith.constant 0 : i32
    return %arg0, %c0_i32, %c0_i32_0 : i32, i32, i32
  }
  func.func @transform_6(%arg0: i32, %arg1: i32) -> (i32, i32) {
    %c0_i32 = arith.constant 0 : i32
    %c0_i32_0 = arith.constant 0 : i32
    %c0_i32_1 = arith.constant 0 : i32
    return %c0_i32, %c0_i32_0 : i32, i32
  }
  func.func @transform_7(%arg0: i32, %arg1: i32) -> (i32, i32) {
    %c0_i32 = arith.constant 0 : i32
    %c0_i32_0 = arith.constant 0 : i32
    %c0_i32_1 = arith.constant 0 : i32
    return %c0_i32, %c0_i32_0 : i32, i32
  }
  func.func @transform_8(%arg0: i32, %arg1: i32) -> (i32, i32) {
    %c0_i32 = arith.constant 0 : i32
    %c0_i32_0 = arith.constant 0 : i32
    %c0_i32_1 = arith.constant 0 : i32
    return %c0_i32, %c0_i32_0 : i32, i32
  }
  func.func @transform_9(%arg0: i32, %arg1: i32) -> (i32, i32) {
    %c0_i32 = arith.constant 0 : i32
    %c0_i32_0 = arith.constant 0 : i32
    %c0_i32_1 = arith.constant 0 : i32
    return %c0_i32, %c0_i32_0 : i32, i32
  }
  func.func @transform_10(%arg0: i32, %arg1: i32) -> (i32, i32) {
    %c0_i32 = arith.constant 0 : i32
    %c0_i32_0 = arith.constant 0 : i32
    %c0_i32_1 = arith.constant 0 : i32
    return %c0_i32, %c0_i32_0 : i32, i32
  }
  func.func @transform_11(%arg0: i32, %arg1: i32) -> (i32, i32) {
    %c0_i32 = arith.constant 0 : i32
    %c0_i32_0 = arith.constant 0 : i32
    %c0_i32_1 = arith.constant 0 : i32
    return %c0_i32, %c0_i32_0 : i32, i32
  }
  func.func @transform_12(%arg0: i32, %arg1: i32) -> (i32, i32) {
    %c0_i32 = arith.constant 0 : i32
    %c0_i32_0 = arith.constant 0 : i32
    %c0_i32_1 = arith.constant 0 : i32
    return %c0_i32, %c0_i32_0 : i32, i32
  }
  func.func @transform_13(%arg0: i32, %arg1: i32) -> (i32, i32, i32) {
    %c0_i32 = arith.constant 0 : i32
    %c0_i32_0 = arith.constant 0 : i32
    return %arg0, %arg1, %c0_i32 : i32, i32, i32
  }
}

</mosaic_0001>

<llo_original>
// kernel: pointnet_densecls.3
$region0: #{pointnet_densecls.3}
  #allocation0 [shape = 'u32[]', space=smem, size = 0x4, offset = 0x4, fixed_abs, tag = 'smem constant byte address 0x4 - core index']
  #allocation1 [shape = 'u32[144,128]{1,0:T(1,128)}', space=vmem, size = 0x12000, scoped, tag = 'internal scratch']
  %s0 = inlined_call_operand.vmem [shape: f32[2,64,3], index: 0, kind: input, shape index: {}]
  %s1 = inlined_call_operand.hbm [shape: f32[3,64], index: 1, kind: input, shape index: {}]
  %s2 = inlined_call_operand.hbm [shape: f32[1,64], index: 2, kind: input, shape index: {}]
  %s3 = inlined_call_operand.hbm [shape: f32[64,128], index: 3, kind: input, shape index: {}]
  %s4 = inlined_call_operand.hbm [shape: f32[1,128], index: 4, kind: input, shape index: {}]
  %s5 = inlined_call_operand.hbm [shape: f32[128,1024], index: 5, kind: input, shape index: {}]
  %s6 = inlined_call_operand.hbm [shape: f32[1,1024], index: 6, kind: input, shape index: {}]
  %s7 = inlined_call_operand.vmem [shape: f32[2,1,1024], index: 7, kind: output, shape index: {}]
  %s8 = sld [smem:[#allocation0]]
  $region97: #{pointnet_densecls.3} parent=0
    _
  %s10 = ssub.s32 1, %s8
  %s11 = scalar_select 0, %s10, %s8
  $region1: #{pointnet_densecls.3} parent=0
    #allocation2 [shape = 'u8[2048]{0}', space=vmem, size = 0x800, scoped, tag = 'input window, operand 1, single buffered']
    #allocation3 [shape = 's32[2]{0}', space=sflag, size = 0x8, scoped, tag = 'scoped memory for pointnet_densecls.3']
    #allocation4 [shape = 'u8[512]{0}', space=vmem, size = 0x400, scoped, tag = 'input window, operand 2, single buffered']
    #allocation5 [shape = 's32[1]{0}', space=sflag, size = 0x4, scoped, tag = 'scoped memory for pointnet_densecls.3']
    #allocation6 [shape = 'u8[32768]{0}', space=vmem, size = 0x8000, scoped, tag = 'input window, operand 3, single buffered']
    #allocation7 [shape = 'u8[512]{0}', space=vmem, size = 0x400, scoped, tag = 'input window, operand 4, single buffered']
    #allocation8 [shape = 's32[1]{0}', space=sflag, size = 0x4, scoped, tag = 'scoped memory for pointnet_densecls.3']
    #allocation9 [shape = 'u8[524288]{0}', space=vmem, size = 0x80000, scoped, tag = 'input window, operand 5, single buffered']
    #allocation10 [shape = 'u8[4096]{0}', space=vmem, size = 0x1000, scoped, tag = 'input window, operand 6, single buffered']
    #allocation11 [shape = 's32[1]{0}', space=sflag, size = 0x4, scoped, tag = 'scoped memory for pointnet_densecls.3']
    %12 = vsyncpa [#allocation3], 0
    %13 = vsyncpa [#allocation5], 0
    %14 = vsyncpa [#allocation8], 0
    %15 = vsyncpa [#allocation11], 0
    loop: start=0, step=1, limit=6
    $region2: #{pointnet_densecls.3} parent=1 // loop_pre_header
      _
    $region3: #{pointnet_densecls.3} parent=1 // loop_header
      %s17 = sphi 0, %s21
      %p18 = scmp.ge.s32.totalorder %s17, 6
      %s24 = sphi 0, %s36
      %s25 = sphi 0, %s32
      %s26 = sphi 0, %s24
      %s27 = sphi 0, %s25
      %s28 = sphi 0, %s26
      %s29 = sphi 0, %s27
      %s41 = sphi 0, %s43
      %s44 = sphi 0, %s41
      %s45 = sphi 0, %s44
      %s61 = sphi 0, %s45
      %s65 = sphi 0, %s65
      %s67 = sphi 0, %s65
      %s68 = sphi 0, %s67
      %s82 = sphi 0, %s68
      %s86 = sphi 0, %s86
      %s88 = sphi 0, %s86
      %s89 = sphi 0, %s88
      %s103 = sphi 0, %s89
      %s107 = sphi 0, %s107
      %s109 = sphi 0, %s107
      %s110 = sphi 0, %s109
      %s124 = sphi 0, %s110
      %s128 = sphi 0, %s128
      %s130 = sphi 0, %s128
      %s131 = sphi 0, %s130
      %s145 = sphi 0, %s131
      %s149 = sphi 0, %s149
      %s151 = sphi 0, %s149
      %s152 = sphi 0, %s151
      %s166 = sphi 0, %s152
      %s170 = sphi 0, %s170
      %s172 = sphi 0, %s170
      %s173 = sphi 0, %s172
      %s187 = sphi 0, %s173
      %s193 = sphi 0, %s195
      %s196 = sphi 0, %s193
      %s197 = sphi 0, %s196
      %s213 = sphi 0, %s197
    $region4: #{pointnet_densecls.3} parent=1 // loop_header_branch
      %20 = sbr.rel (%p18) target = $region8
    $region5: #{pointnet_densecls.3} parent=1 // loop_body
      %s22 = ssub.s32 %s17, 1
      %s23 = ssub.s32 %s17, 2
      %s30 = sadd.s32 1, %s25
      %p31 = scmp.ge.s32.totalorder %s30, 2
      %s32 = scalar_select %p31, 0, %s30
      %s33 = sadd.s32 1, %s24
      %s34 = scalar_select %p31, %s33, %s24
      %p35 = scmp.ge.s32.totalorder %s34, 2
      %s36 = scalar_select %p35, 0, %s34
      %s37 = ssub.s32 %s24, %s36
      %s38 = ssub.s32 %s25, %s32
      %s39 = sor.u32 %s37, %s38
      %p40 = scmp.eq.s32.totalorder %s39, 0
      %s42 = sadd.s32 %s41, 1
      %s43 = scalar_select %p40, %s41, %s42
      %p46 = pneg %p40
      %p47 = scmp.eq.s32.totalorder %s17, 3
      %p48 = por %p46, %p47
      %p49 = scmp.ne.s32.totalorder %s41, %s44
      %p50 = scmp.eq.s32.totalorder %s17, 0
      %p51 = por %p49, %p50
      %p52 = scmp.ne.s32.totalorder %s41, %s44
      %p53 = scmp.eq.s32.totalorder %s22, 3
      %p54 = por %p52, %p53
      %p55 = scmp.ne.s32.totalorder %s44, %s45
      %p56 = scmp.eq.s32.totalorder %s22, 0
      %p57 = por %p55, %p56
      %p58 = scmp.ne.s32.totalorder %s44, %s45
      %p59 = scmp.eq.s32.totalorder %s23, 3
      %p60 = por %p58, %p59
      %p62 = scmp.ne.s32.totalorder %s45, %s61
      %p63 = scmp.eq.s32.totalorder %s23, 0
      %p64 = por %p62, %p63
      %s66 = sadd.s32 %s65, 1
      %p69 = scmp.eq.s32.totalorder %s17, 3
      %p70 = scmp.ne.s32.totalorder %s65, %s67
      %p71 = scmp.eq.s32.totalorder %s17, 0
      %p72 = por %p70, %p71
      %p73 = scmp.ne.s32.totalorder %s65, %s67
      %p74 = scmp.eq.s32.totalorder %s22, 3
      %p75 = por %p73, %p74
      %p76 = scmp.ne.s32.totalorder %s67, %s68
      %p77 = scmp.eq.s32.totalorder %s22, 0
      %p78 = por %p76, %p77
      %p79 = scmp.ne.s32.totalorder %s67, %s68
      %p80 = scmp.eq.s32.totalorder %s23, 3
      %p81 = por %p79, %p80
      %p83 = scmp.ne.s32.totalorder %s68, %s82
      %p84 = scmp.eq.s32.totalorder %s23, 0
      %p85 = por %p83, %p84
      %s87 = sadd.s32 %s86, 1
      %p90 = scmp.eq.s32.totalorder %s17, 3
      %p91 = scmp.ne.s32.totalorder %s86, %s88
      %p92 = scmp.eq.s32.totalorder %s17, 0
      %p93 = por %p91, %p92
      %p94 = scmp.ne.s32.totalorder %s86, %s88
      %p95 = scmp.eq.s32.totalorder %s22, 3
      %p96 = por %p94, %p95
      %p97 = scmp.ne.s32.totalorder %s88, %s89
      %p98 = scmp.eq.s32.totalorder %s22, 0
      %p99 = por %p97, %p98
      %p100 = scmp.ne.s32.totalorder %s88, %s89
      %p101 = scmp.eq.s32.totalorder %s23, 3
      %p102 = por %p100, %p101
      %p104 = scmp.ne.s32.totalorder %s89, %s103
      %p105 = scmp.eq.s32.totalorder %s23, 0
      %p106 = por %p104, %p105
      %s108 = sadd.s32 %s107, 1
      %p111 = scmp.eq.s32.totalorder %s17, 3
      %p112 = scmp.ne.s32.totalorder %s107, %s109
      %p113 = scmp.eq.s32.totalorder %s17, 0
      %p114 = por %p112, %p113
      %p115 = scmp.ne.s32.totalorder %s107, %s109
      %p116 = scmp.eq.s32.totalorder %s22, 3
      %p117 = por %p115, %p116
      %p118 = scmp.ne.s32.totalorder %s109, %s110
      %p119 = scmp.eq.s32.totalorder %s22, 0
      %p120 = por %p118, %p119
      %p121 = scmp.ne.s32.totalorder %s109, %s110
      %p122 = scmp.eq.s32.totalorder %s23, 3
      %p123 = por %p121, %p122
      %p125 = scmp.ne.s32.totalorder %s110, %s124
      %p126 = scmp.eq.s32.totalorder %s23, 0
      %p127 = por %p125, %p126
      %s129 = sadd.s32 %s128, 1
      %p132 = scmp.eq.s32.totalorder %s17, 3
      %p133 = scmp.ne.s32.totalorder %s128, %s130
      %p134 = scmp.eq.s32.totalorder %s17, 0
      %p135 = por %p133, %p134
      %p136 = scmp.ne.s32.totalorder %s128, %s130
      %p137 = scmp.eq.s32.totalorder %s22, 3
      %p138 = por %p136, %p137
      %p139 = scmp.ne.s32.totalorder %s130, %s131
      %p140 = scmp.eq.s32.totalorder %s22, 0
      %p141 = por %p139, %p140
      %p142 = scmp.ne.s32.totalorder %s130, %s131
      %p143 = scmp.eq.s32.totalorder %s23, 3
      %p144 = por %p142, %p143
      %p146 = scmp.ne.s32.totalorder %s131, %s145
      %p147 = scmp.eq.s32.totalorder %s23, 0
      %p148 = por %p146, %p147
      %s150 = sadd.s32 %s149, 1
      %p153 = scmp.eq.s32.totalorder %s17, 3
      %p154 = scmp.ne.s32.totalorder %s149, %s151
      %p155 = scmp.eq.s32.totalorder %s17, 0
      %p156 = por %p154, %p155
      %p157 = scmp.ne.s32.totalorder %s149, %s151
      %p158 = scmp.eq.s32.totalorder %s22, 3
      %p159 = por %p157, %p158
      %p160 = scmp.ne.s32.totalorder %s151, %s152
      %p161 = scmp.eq.s32.totalorder %s22, 0
      %p162 = por %p160, %p161
      %p163 = scmp.ne.s32.totalorder %s151, %s152
      %p164 = scmp.eq.s32.totalorder %s23, 3
      %p165 = por %p163, %p164
      %p167 = scmp.ne.s32.totalorder %s152, %s166
      %p168 = scmp.eq.s32.totalorder %s23, 0
      %p169 = por %p167, %p168
      %s171 = sadd.s32 %s170, 1
      %p174 = scmp.eq.s32.totalorder %s17, 3
      %p175 = scmp.ne.s32.totalorder %s170, %s172
      %p176 = scmp.eq.s32.totalorder %s17, 0
      %p177 = por %p175, %p176
      %p178 = scmp.ne.s32.totalorder %s170, %s172
      %p179 = scmp.eq.s32.totalorder %s22, 3
      %p180 = por %p178, %p179
      %p181 = scmp.ne.s32.totalorder %s172, %s173
      %p182 = scmp.eq.s32.totalorder %s22, 0
      %p183 = por %p181, %p182
      %p184 = scmp.ne.s32.totalorder %s172, %s173
      %p185 = scmp.eq.s32.totalorder %s23, 3
      %p186 = por %p184, %p185
      %p188 = scmp.ne.s32.totalorder %s173, %s187
      %p189 = scmp.eq.s32.totalorder %s23, 0
      %p190 = por %p188, %p189
      %s191 = ssub.s32 %s24, %s36
      %p192 = scmp.eq.s32.totalorder %s191, 0
      %s194 = sadd.s32 %s193, 1
      %s195 = scalar_select %p192, %s193, %s194
      %p198 = pneg %p192
      %p199 = scmp.eq.s32.totalorder %s17, 3
      %p200 = por %p198, %p199
      %p201 = scmp.ne.s32.totalorder %s193, %s196
      %p202 = scmp.eq.s32.totalorder %s17, 0
      %p203 = por %p201, %p202
      %p204 = scmp.ne.s32.totalorder %s193, %s196
      %p205 = scmp.eq.s32.totalorder %s22, 3
      %p206 = por %p204, %p205
      %p207 = scmp.ne.s32.totalorder %s196, %s197
      %p208 = scmp.eq.s32.totalorder %s22, 0
      %p209 = por %p207, %p208
      %p210 = scmp.ne.s32.totalorder %s196, %s197
      %p211 = scmp.eq.s32.totalorder %s23, 3
      %p212 = por %p210, %p211
      %p214 = scmp.ne.s32.totalorder %s197, %s213
      %p215 = scmp.eq.s32.totalorder %s23, 0
      %p216 = por %p214, %p215
      %p217 = scmp.le.s32.totalorder 1, %s17
      %p218 = scmp.lt.s32.totalorder %s17, 5
      %p219 = pnand %p217, %p218
      %p220 = pneg %p219
      // Predicated region
      $region9: #{pointnet_densecls.3} parent=5 // pred_check
        _
      $region10: #{pointnet_densecls.3} parent=5 // pred_check_branch
        %222 = sbr.rel (%p219) target = $region12
      $region11: #{pointnet_densecls.3} parent=5 // pred_region
        %s223 = ssub.s32 %s17, 1
        // Predicated region
        $region13: #{pointnet_densecls.3} parent=11 // pred_check
          %p224 = pneg %p78
        $region14: #{pointnet_densecls.3} parent=11 // pred_check_branch
          %226 = sbr.rel (%p224) target = $region16
        $region15: #{pointnet_densecls.3} parent=11 // pred_region
          %s228 = ssub.s32 64, 64
          %229 = vsyncadd [#allocation3], %s228
          %s231 = sshll.u32 [#allocation2], 4
          %s232 = int_to_ptr.vmem [resolvable:$true] %s231
          %234 = dma.hbm_to_vmem [thread:$0]  %s1, 64, %s232, [#allocation3]
        $region16: #{pointnet_densecls.3} parent=11 // pred_fallthru
          _
        // Predicated region
        $region17: #{pointnet_densecls.3} parent=11 // pred_check
          %p235 = pneg %p99
        $region18: #{pointnet_densecls.3} parent=11 // pred_check_branch
          %237 = sbr.rel (%p235) target = $region20
        $region19: #{pointnet_densecls.3} parent=11 // pred_region
          %s239 = ssub.s32 16, 16
          %240 = vsyncadd [#allocation5], %s239
          %s242 = sshll.u32 [#allocation4], 4
          %s243 = int_to_ptr.vmem [resolvable:$true] %s242
          %245 = dma.hbm_to_vmem [thread:$0]  %s2, 16, %s243, [#allocation5]
        $region20: #{pointnet_densecls.3} parent=11 // pred_fallthru
          _
        // Predicated region
        $region21: #{pointnet_densecls.3} parent=11 // pred_check
          %p246 = pneg %p120
        $region22: #{pointnet_densecls.3} parent=11 // pred_check_branch
          %248 = sbr.rel (%p246) target = $region24
        $region23: #{pointnet_densecls.3} parent=11 // pred_region
          %s250 = ssub.s32 1024, 1024
          %251 = vsyncadd [#allocation5], %s250
          %s252 = sshll.u32 [#allocation6], 4
          %s253 = int_to_ptr.vmem [resolvable:$true] %s252
          %258 = dma.hbm_to_vmem [thread:$0]  %s3, 1024, %s253, [#allocation5], 128, 128, 8
        $region24: #{pointnet_densecls.3} parent=11 // pred_fallthru
          _
        // Predicated region
        $region25: #{pointnet_densecls.3} parent=11 // pred_check
          %p259 = pneg %p141
        $region26: #{pointnet_densecls.3} parent=11 // pred_check_branch
          %261 = sbr.rel (%p259) target = $region28
        $region27: #{pointnet_densecls.3} parent=11 // pred_region
          %s263 = ssub.s32 16, 16
          %264 = vsyncadd [#allocation8], %s263
          %s266 = sshll.u32 [#allocation7], 4
          %s267 = int_to_ptr.vmem [resolvable:$true] %s266
          %269 = dma.hbm_to_vmem [thread:$0]  %s4, 16, %s267, [#allocation8]
        $region28: #{pointnet_densecls.3} parent=11 // pred_fallthru
          _
        // Predicated region
        $region29: #{pointnet_densecls.3} parent=11 // pred_check
          %p270 = pneg %p162
        $region30: #{pointnet_densecls.3} parent=11 // pred_check_branch
          %272 = sbr.rel (%p270) target = $region32
        $region31: #{pointnet_densecls.3} parent=11 // pred_region
          %s274 = ssub.s32 16384, 16384
          %275 = vsyncadd [#allocation8], %s274
          %s276 = sshll.u32 [#allocation9], 4
          %s277 = int_to_ptr.vmem [resolvable:$true] %s276
          %282 = dma.hbm_to_vmem [thread:$0]  %s5, 16384, %s277, [#allocation8], 1024, 1024, 64
        $region32: #{pointnet_densecls.3} parent=11 // pred_fallthru
          _
        // Predicated region
        $region33: #{pointnet_densecls.3} parent=11 // pred_check
          %p283 = pneg %p183
        $region34: #{pointnet_densecls.3} parent=11 // pred_check_branch
          %285 = sbr.rel (%p283) target = $region36
        $region35: #{pointnet_densecls.3} parent=11 // pred_region
          %s287 = ssub.s32 128, 128
          %288 = vsyncadd [#allocation11], %s287
          %s290 = sshll.u32 [#allocation10], 4
          %s291 = int_to_ptr.vmem [resolvable:$true] %s290
          %293 = dma.hbm_to_vmem [thread:$0]  %s6, 128, %s291, [#allocation11]
        $region36: #{pointnet_densecls.3} parent=11 // pred_fallthru
          _
      $region12: #{pointnet_densecls.3} parent=5 // pred_fallthru
        _
      %p294 = scmp.lt.s32.totalorder %s17, 4
      // Predicated region
      $region37: #{pointnet_densecls.3} parent=5 // pred_check
        %p295 = pneg %p294
      $region38: #{pointnet_densecls.3} parent=5 // pred_check_branch
        %297 = sbr.rel (%p295) target = $region40
      $region39: #{pointnet_densecls.3} parent=5 // pred_region
        // Predicated region
        $region41: #{pointnet_densecls.3} parent=39 // pred_check
          %p298 = pneg %p51
        $region42: #{pointnet_densecls.3} parent=39 // pred_check_branch
          %300 = sbr.rel (%p298) target = $region44
        $region43: #{pointnet_densecls.3} parent=39 // pred_region
          %s301 = smul.u32 6, %s25
          %s302 = ssub.s32 8, %s301
          %p303 = scmp.lt.s32.totalorder %s302, 6
          %s304 = scalar_select %p303, %s302, 6
          %s305 = smul.u32 128, %s304
          %p306 = scmp.lt.s32.totalorder %s24, 1
          %s307 = scalar_select %p306, %s24, 1
          %p308 = scmp.lt.s32.totalorder %s301, 7
          %s309 = scalar_select %p308, %s301, 7
          %s310 = smul.addr %s307, 8
          %s311 = sadd.s32 %s309, %s310
          %s312 = smul.addr %s311, 8
          %s313 = scalar_lea.vmem %s0, %s312
          %s314 = smul.u32 6, %s25
          %s315 = ssub.s32 8, %s314
          %p316 = scmp.lt.s32.totalorder %s315, 6
          %s317 = scalar_select %p316, %s315, 6
          %s318 = smul.u32 128, %s317
        $region44: #{pointnet_densecls.3} parent=39 // pred_fallthru
          _
      $region40: #{pointnet_densecls.3} parent=5 // pred_fallthru
        _
      %p319 = scmp.le.s32.totalorder 1, %s17
      %p320 = scmp.lt.s32.totalorder %s17, 5
      %p321 = pnand %p319, %p320
      %p322 = pneg %p321
      // Predicated region
      $region45: #{pointnet_densecls.3} parent=5 // pred_check
        _
      $region46: #{pointnet_densecls.3} parent=5 // pred_check_branch
        %324 = sbr.rel (%p321) target = $region48
      $region47: #{pointnet_densecls.3} parent=5 // pred_region
        %s325 = ssub.s32 %s17, 1
        // Predicated region
        $region49: #{pointnet_densecls.3} parent=47 // pred_check
          %p326 = pneg %p78
        $region50: #{pointnet_densecls.3} parent=47 // pred_check_branch
          %328 = sbr.rel (%p326) target = $region52
        $region51: #{pointnet_densecls.3} parent=47 // pred_region
          %329 = dma.done [#allocation3], 64
        $region52: #{pointnet_densecls.3} parent=47 // pred_fallthru
          _
        // Predicated region
        $region53: #{pointnet_densecls.3} parent=47 // pred_check
          %p330 = pneg %p99
        $region54: #{pointnet_densecls.3} parent=47 // pred_check_branch
          %332 = sbr.rel (%p330) target = $region56
        $region55: #{pointnet_densecls.3} parent=47 // pred_region
          %333 = dma.done [#allocation5], 16
        $region56: #{pointnet_densecls.3} parent=47 // pred_fallthru
          _
        // Predicated region
        $region57: #{pointnet_densecls.3} parent=47 // pred_check
          %p334 = pneg %p120
        $region58: #{pointnet_densecls.3} parent=47 // pred_check_branch
          %336 = sbr.rel (%p334) target = $region60
        $region59: #{pointnet_densecls.3} parent=47 // pred_region
          %337 = dma.done [#allocation5], 1024
        $region60: #{pointnet_densecls.3} parent=47 // pred_fallthru
          _
        // Predicated region
        $region61: #{pointnet_densecls.3} parent=47 // pred_check
          %p338 = pneg %p141
        $region62: #{pointnet_densecls.3} parent=47 // pred_check_branch
          %340 = sbr.rel (%p338) target = $region64
        $region63: #{pointnet_densecls.3} parent=47 // pred_region
          %341 = dma.done [#allocation8], 16
        $region64: #{pointnet_densecls.3} parent=47 // pred_fallthru
          _
        // Predicated region
        $region65: #{pointnet_densecls.3} parent=47 // pred_check
          %p342 = pneg %p162
        $region66: #{pointnet_densecls.3} parent=47 // pred_check_branch
          %344 = sbr.rel (%p342) target = $region68
        $region67: #{pointnet_densecls.3} parent=47 // pred_region
          %345 = dma.done [#allocation8], 16384
        $region68: #{pointnet_densecls.3} parent=47 // pred_fallthru
          _
        // Predicated region
        $region69: #{pointnet_densecls.3} parent=47 // pred_check
          %p346 = pneg %p183
        $region70: #{pointnet_densecls.3} parent=47 // pred_check_branch
          %348 = sbr.rel (%p346) target = $region72
        $region71: #{pointnet_densecls.3} parent=47 // pred_region
          %349 = dma.done [#allocation11], 128
        $region72: #{pointnet_densecls.3} parent=47 // pred_fallthru
          _
        %s350 = smul.u32 6, %s27
        %s351 = ssub.s32 8, %s350
        %p352 = scmp.lt.s32.totalorder %s351, 6
        %s353 = scalar_select %p352, %s351, 6
        %s354 = smul.u32 128, %s353
        %p355 = scmp.lt.s32.totalorder %s26, 1
        %s356 = scalar_select %p355, %s26, 1
        %p357 = scmp.lt.s32.totalorder %s350, 7
        %s358 = scalar_select %p357, %s350, 7
        %s359 = smul.addr %s356, 8
        %s360 = sadd.s32 %s358, %s359
        %s361 = smul.addr %s360, 8
        %s362 = scalar_lea.vmem %s0, %s361
        %p363 = pneg %p57
        %p364 = pneg %p54
        %p365 = pneg %p78
        %p366 = pneg %p75
        %p367 = pneg %p99
        %p368 = pneg %p96
        %p369 = pneg %p120
        %p370 = pneg %p117
        %p371 = pneg %p141
        %p372 = pneg %p138
        %p373 = pneg %p162
        %p374 = pneg %p159
        %p375 = pneg %p183
        %p376 = pneg %p180
        %p377 = pneg %p209
        %p378 = pneg %p206
        %p379 = scmp.lt.s32.totalorder %s26, 1
        %s380 = scalar_select %p379, %s26, 1
        %s381 = smul.addr %s380, 8
        %s382 = scalar_lea.vmem %s7, %s381
        %s383 = smul.u32 6, %s27
        %s384 = ssub.s32 8, %s383
        %p385 = scmp.lt.s32.totalorder %s384, 6
        %s386 = scalar_select %p385, %s384, 6
        %s387 = smul.u32 128, %s386
        %p388 = scmp.lt.s32.totalorder %s26, 1
        %s389 = scalar_select %p388, %s26, 1
        %p390 = scmp.lt.s32.totalorder %s383, 7
        %s391 = scalar_select %p390, %s383, 7
        %s392 = smul.addr %s389, 8
        %s393 = sadd.s32 %s391, %s392
        %s394 = smul.addr %s393, 8
        %s395 = scalar_lea.vmem %s0, %s394
        %s396 = smul.u32 6, %s27
        %s397 = ssub.s32 8, %s396
        %p398 = scmp.lt.s32.totalorder %s397, 6
        %s399 = scalar_select %p398, %s397, 6
        %s400 = smul.u32 128, %s399
        %p401 = scmp.lt.s32.totalorder %s26, 1
        %s402 = scalar_select %p401, %s26, 1
        %s403 = smul.addr %s402, 8
        %s404 = scalar_lea.vmem %s7, %s403
        %p405 = scmp.eq.s32.totalorder %s27, 0
        // Predicated region
        $region73: #{pointnet_densecls.3} parent=47 // pred_check
          %p406 = pneg %p405
        $region74: #{pointnet_densecls.3} parent=47 // pred_check_branch
          %408 = sbr.rel (%p406) target = $region76
        $region75: #{pointnet_densecls.3} parent=47 // pred_region
          %409 = vst [vmem:[%s404] sm:$0xff] -inf
        $region76: #{pointnet_densecls.3} parent=47 // pred_fallthru
          _
        %v410 = vld [vmem:[%s395] sm:$0xff]
        %v411 = vld [vmem:[%s395 + $0x8] sm:$0xff]
        %v412 = vld [vmem:[%s395 + $0x10] sm:$0xff]
        %v413 = vld [vmem:[%s395 + $0x18] sm:$0xff]
        %v414 = vld [vmem:[%s395 + $0x20] sm:$0xff]
        %v415 = vld [vmem:[%s395 + $0x28] sm:$0xff]
        %v416 = vld [vmem:[#allocation2] sm:$0x7]
        %v417 = vld [vmem:[#allocation4] sm:$0x1]
        %419 = vset.pattern.permute.xlu0 0
        %420 = vperm.xlu0 %419, %v410
        %v421 = vpop.permute.xlu0 %420
        %424 = vset.pattern.permute.xlu0 0
        %425 = vperm.xlu0 %424, %v411
        %v426 = vpop.permute.xlu0 %425
        %429 = vset.pattern.permute.xlu0 0
        %430 = vperm.xlu0 %429, %v412
        %v431 = vpop.permute.xlu0 %430
        %434 = vset.pattern.permute.xlu0 0
        %435 = vperm.xlu0 %434, %v413
        %v436 = vpop.permute.xlu0 %435
        %439 = vset.pattern.permute.xlu0 0
        %440 = vperm.xlu0 %439, %v414
        %v441 = vpop.permute.xlu0 %440
        %444 = vset.pattern.permute.xlu0 0
        %445 = vperm.xlu0 %444, %v415
        %v446 = vpop.permute.xlu0 %445
        %v448 = vlaneseq
        %v449 = vshrl.u32 %v448, 7
        %v450 = vsub.s32 0, %v449
        %v451 = vrot.slane %v416, %v450
        %v452 = vmul.f32 %v421, %v451
        %v453 = vmul.f32 %v426, %v451
        %v454 = vmul.f32 %v431, %v451
        %v455 = vmul.f32 %v436, %v451
        %v456 = vmul.f32 %v441, %v451
        %v457 = vmul.f32 %v446, %v451
        %458 = vset.pattern.permute.xlu0 1
        %459 = vperm.xlu0 %458, %v410
        %v460 = vpop.permute.xlu0 %459
        %462 = vset.pattern.permute.xlu0 1
        %463 = vperm.xlu0 %462, %v411
        %v464 = vpop.permute.xlu0 %463
        %466 = vset.pattern.permute.xlu0 1
        %467 = vperm.xlu0 %466, %v412
        %v468 = vpop.permute.xlu0 %467
        %470 = vset.pattern.permute.xlu0 1
        %471 = vperm.xlu0 %470, %v413
        %v472 = vpop.permute.xlu0 %471
        %474 = vset.pattern.permute.xlu0 1
        %475 = vperm.xlu0 %474, %v414
        %v476 = vpop.permute.xlu0 %475
        %478 = vset.pattern.permute.xlu0 1
        %479 = vperm.xlu0 %478, %v415
        %v480 = vpop.permute.xlu0 %479
        %v482 = vlaneseq
        %v483 = vshrl.u32 %v482, 7
        %v484 = vsub.s32 1, %v483
        %v485 = vrot.slane %v416, %v484
        %v486 = vmul.f32 %v460, %v485
        %v487 = vmul.f32 %v464, %v485
        %v488 = vmul.f32 %v468, %v485
        %v489 = vmul.f32 %v472, %v485
        %v490 = vmul.f32 %v476, %v485
        %v491 = vmul.f32 %v480, %v485
        %v492 = vadd.f32 %v452, %v486
        %v493 = vadd.f32 %v453, %v487
        %v494 = vadd.f32 %v454, %v488
        %v495 = vadd.f32 %v455, %v489
        %v496 = vadd.f32 %v456, %v490
        %v497 = vadd.f32 %v457, %v491
        %498 = vset.pattern.permute.xlu0 2
        %499 = vperm.xlu0 %498, %v410
        %v500 = vpop.permute.xlu0 %499
        %502 = vset.pattern.permute.xlu0 2
        %503 = vperm.xlu0 %502, %v411
        %v504 = vpop.permute.xlu0 %503
        %506 = vset.pattern.permute.xlu0 2
        %507 = vperm.xlu0 %506, %v412
        %v508 = vpop.permute.xlu0 %507
        %510 = vset.pattern.permute.xlu0 2
        %511 = vperm.xlu0 %510, %v413
        %v512 = vpop.permute.xlu0 %511
        %514 = vset.pattern.permute.xlu0 2
        %515 = vperm.xlu0 %514, %v414
        %v516 = vpop.permute.xlu0 %515
        %518 = vset.pattern.permute.xlu0 2
        %519 = vperm.xlu0 %518, %v415
        %v520 = vpop.permute.xlu0 %519
        %v522 = vlaneseq
        %v523 = vshrl.u32 %v522, 7
        %v524 = vsub.s32 2, %v523
        %v525 = vrot.slane %v416, %v524
        %v526 = vmul.f32 %v500, %v525
        %v527 = vmul.f32 %v504, %v525
        %v528 = vmul.f32 %v508, %v525
        %v529 = vmul.f32 %v512, %v525
        %v530 = vmul.f32 %v516, %v525
        %v531 = vmul.f32 %v520, %v525
        %v532 = vadd.f32 %v492, %v526
        %v533 = vadd.f32 %v493, %v527
        %v534 = vadd.f32 %v494, %v528
        %v535 = vadd.f32 %v495, %v529
        %v536 = vadd.f32 %v496, %v530
        %v537 = vadd.f32 %v497, %v531
        %v539 = vlaneseq
        %v540 = vshrl.u32 %v539, 7
        %v541 = vsub.s32 0, %v540
        %v542 = vrot.slane %v417, %v541
        %v544 = vadd.f32 %v532, %v542
        %v545 = vadd.f32 %v533, %v542
        %v546 = vadd.f32 %v534, %v542
        %v547 = vadd.f32 %v535, %v542
        %v548 = vadd.f32 %v536, %v542
        %v549 = vadd.f32 %v537, %v542
        %v550 = vmax.f32 %v544, 0.0
        %v551 = vmax.f32 %v545, 0.0
        %v552 = vmax.f32 %v546, 0.0
        %v553 = vmax.f32 %v547, 0.0
        %v554 = vmax.f32 %v548, 0.0
        %v555 = vmax.f32 %v549, 0.0
        %v556 = vld [vmem:[#allocation6] sm:$0xff]
        %v557 = vld [vmem:[#allocation6 + $0x8] sm:$0xff]
        %v558 = vld [vmem:[#allocation6 + $0x10] sm:$0xff]
        %v559 = vld [vmem:[#allocation6 + $0x18] sm:$0xff]
        %v560 = vld [vmem:[#allocation6 + $0x20] sm:$0xff]
        %v561 = vld [vmem:[#allocation6 + $0x28] sm:$0xff]
        %v562 = vld [vmem:[#allocation6 + $0x30] sm:$0xff]
        %v563 = vld [vmem:[#allocation6 + $0x38] sm:$0xff]
        %v564 = vld [vmem:[#allocation7] sm:$0x1]
        %v566 = vlaneseq
        %v567 = vshrl.u32 %v566, 7
        %v568 = vsub.s32 0, %v567
        %v569 = vrot.slane %v564, %v568
        %vm571 = vcmask 523264
        %v573 = vsel %vm571, %v550, 0
        %v576 = vsel %vm571, %v551, 0
        %v579 = vsel %vm571, %v552, 0
        %v582 = vsel %vm571, %v553, 0
        %v585 = vsel %vm571, %v554, 0
        %v588 = vsel %vm571, %v555, 0
        %590 = vmatprep.subr.mxu0 0.0
        %591 = vmatpush1.msra.mxu0 0.0
        %592 = vmatprep.subr.mxu0 0.0
        %593 = vmatpush1.msra.mxu0 0.0
        %594 = vmatprep.subr.mxu0 0.0
        %595 = vmatpush1.msra.mxu0 0.0
        %596 = vmatprep.subr.mxu0 0.0
        %597 = vmatpush1.msra.mxu0 0.0
        %598 = vmatprep.subr.mxu0 0.0
        %599 = vmatpush1.msra.mxu0 0.0
        %600 = vmatprep.subr.mxu0 0.0
        %601 = vmatpush1.msra.mxu0 0.0
        %602 = vmatprep.subr.mxu0 0.0
        %603 = vmatpush1.msra.mxu0 0.0
        %604 = vmatprep.subr.mxu0 0.0
        %605 = vmatpush1.msra.mxu0 0.0
        %606 = vmatprep.subr.mxu0 0.0
        %607 = vmatpush1.msra.mxu0 %v563
        %608 = vmatprep.subr.mxu0 0.0
        %609 = vmatpush1.msra.mxu0 %v562
        %610 = vmatprep.subr.mxu0 0.0
        %611 = vmatpush1.msra.mxu0 %v561
        %612 = vmatprep.subr.mxu0 0.0
        %613 = vmatpush1.msra.mxu0 %v560
        %614 = vmatprep.subr.mxu0 0.0
        %615 = vmatpush1.msra.mxu0 %v559
        %616 = vmatprep.subr.mxu0 0.0
        %617 = vmatpush1.msra.mxu0 %v558
        %618 = vmatprep.subr.mxu0 0.0
        %619 = vmatpush1.msra.mxu0 %v557
        %620 = vmatprep.subr.mxu0 0.0
        %621 = vmatpush1.msra.mxu0 %v556
        %622 = vmatprep.subr.mxu0 0.0
        %623 = vmatpush2.msra.mxu0 0.0
        %624 = vmatprep.subr.mxu0 0.0
        %625 = vmatpush2.msra.mxu0 0.0
        %626 = vmatprep.subr.mxu0 0.0
        %627 = vmatpush2.msra.mxu0 0.0
        %628 = vmatprep.subr.mxu0 0.0
        %629 = vmatpush2.msra.mxu0 0.0
        %630 = vmatprep.subr.mxu0 0.0
        %631 = vmatpush2.msra.mxu0 0.0
        %632 = vmatprep.subr.mxu0 0.0
        %633 = vmatpush2.msra.mxu0 0.0
        %634 = vmatprep.subr.mxu0 0.0
        %635 = vmatpush2.msra.mxu0 0.0
        %636 = vmatprep.subr.mxu0 0.0
        %637 = vmatpush2.msra.mxu0 0.0
        %638 = vmatprep.subr.mxu0 0.0
        %639 = vmatpush2.msra.mxu0 0.0
        %640 = vmatprep.subr.mxu0 0.0
        %641 = vmatpush2.msra.mxu0 0.0
        %642 = vmatprep.subr.mxu0 0.0
        %643 = vmatpush2.msra.mxu0 0.0
        %644 = vmatprep.subr.mxu0 0.0
        %645 = vmatpush2.msra.mxu0 0.0
        %646 = vmatprep.subr.mxu0 0.0
        %647 = vmatpush2.msra.mxu0 0.0
        %648 = vmatprep.subr.mxu0 0.0
        %649 = vmatpush2.msra.mxu0 0.0
        %650 = vmatprep.subr.mxu0 0.0
        %651 = vmatpush2.msra.mxu0 0.0
        %652 = vmatprep.subr.mxu0 0.0
        %653 = vmatpush2.msra.mxu0 0.0
        %654 = vmatprep.mubr.f32.mxu0 0.0
        %655 = vmatmul.mubr.f32.gmra.mxu0 %v573
        %v656 = vpop.f32.mrf.mxu0
        %v657 = vadd.f32 %v569, %v656
        %v658 = vpop.f32.mrf.mxu0
        %659 = vmatprep.mubr.f32.mxu0 0.0
        %660 = vmatmul.mubr.f32.gmra.mxu0 %v576
        %v661 = vpop.f32.mrf.mxu0
        %v662 = vadd.f32 %v569, %v661
        %v663 = vpop.f32.mrf.mxu0
        %664 = vmatprep.mubr.f32.mxu0 0.0
        %665 = vmatmul.mubr.f32.gmra.mxu0 %v579
        %v666 = vpop.f32.mrf.mxu0
        %v667 = vadd.f32 %v569, %v666
        %v668 = vpop.f32.mrf.mxu0
        %669 = vmatprep.mubr.f32.mxu0 0.0
        %670 = vmatmul.mubr.f32.gmra.mxu0 %v582
        %v671 = vpop.f32.mrf.mxu0
        %v672 = vadd.f32 %v569, %v671
        %v673 = vpop.f32.mrf.mxu0
        %674 = vmatprep.mubr.f32.mxu0 0.0
        %675 = vmatmul.mubr.f32.gmra.mxu0 %v585
        %v676 = vpop.f32.mrf.mxu0
        %v677 = vadd.f32 %v569, %v676
        %v678 = vpop.f32.mrf.mxu0
        %679 = vmatprep.mubr.f32.mxu0 0.0
        %680 = vmatmul.mubr.f32.gmra.mxu0 %v588
        %v681 = vpop.f32.mrf.mxu0
        %v682 = vadd.f32 %v569, %v681
        %v683 = vpop.f32.mrf.mxu0
        %684 = vdwg.mxu0
        %v685 = vmax.f32 %v657, 0.0
        %v686 = vmax.f32 %v662, 0.0
        %v687 = vmax.f32 %v667, 0.0
        %v688 = vmax.f32 %v672, 0.0
        %v689 = vmax.f32 %v677, 0.0
        %v690 = vmax.f32 %v682, 0.0
        %v691 = vld [vmem:[#allocation9] sm:$0xff]
        %v692 = vld [vmem:[#allocation9 + $0x8] sm:$0xff]
        %v693 = vld [vmem:[#allocation9 + $0x10] sm:$0xff]
        %v694 = vld [vmem:[#allocation9 + $0x18] sm:$0xff]
        %v695 = vld [vmem:[#allocation9 + $0x20] sm:$0xff]
        %v696 = vld [vmem:[#allocation9 + $0x28] sm:$0xff]
        %v697 = vld [vmem:[#allocation9 + $0x30] sm:$0xff]
        %v698 = vld [vmem:[#allocation9 + $0x38] sm:$0xff]
        %v699 = vld [vmem:[#allocation9 + $0x40] sm:$0xff]
        %v700 = vld [vmem:[#allocation9 + $0x48] sm:$0xff]
        %v701 = vld [vmem:[#allocation9 + $0x50] sm:$0xff]
        %v702 = vld [vmem:[#allocation9 + $0x58] sm:$0xff]
        %v703 = vld [vmem:[#allocation9 + $0x60] sm:$0xff]
        %v704 = vld [vmem:[#allocation9 + $0x68] sm:$0xff]
        %v705 = vld [vmem:[#allocation9 + $0x70] sm:$0xff]
        %v706 = vld [vmem:[#allocation9 + $0x78] sm:$0xff]
        %v707 = vld [vmem:[#allocation9 + $0x80] sm:$0xff]
        %v708 = vld [vmem:[#allocation9 + $0x88] sm:$0xff]
        %v709 = vld [vmem:[#allocation9 + $0x90] sm:$0xff]
        %v710 = vld [vmem:[#allocation9 + $0x98] sm:$0xff]
        %v711 = vld [vmem:[#allocation9 + $0xa0] sm:$0xff]
        %v712 = vld [vmem:[#allocation9 + $0xa8] sm:$0xff]
        %v713 = vld [vmem:[#allocation9 + $0xb0] sm:$0xff]
        %v714 = vld [vmem:[#allocation9 + $0xb8] sm:$0xff]
        %v715 = vld [vmem:[#allocation9 + $0xc0] sm:$0xff]
        %v716 = vld [vmem:[#allocation9 + $0xc8] sm:$0xff]
        %v717 = vld [vmem:[#allocation9 + $0xd0] sm:$0xff]
        %v718 = vld [vmem:[#allocation9 + $0xd8] sm:$0xff]
        %v719 = vld [vmem:[#allocation9 + $0xe0] sm:$0xff]
        %v720 = vld [vmem:[#allocation9 + $0xe8] sm:$0xff]
        %v721 = vld [vmem:[#allocation9 + $0xf0] sm:$0xff]
        %v722 = vld [vmem:[#allocation9 + $0xf8] sm:$0xff]
        %v723 = vld [vmem:[#allocation9 + $0x100] sm:$0xff]
        %v724 = vld [vmem:[#allocation9 + $0x108] sm:$0xff]
        %v725 = vld [vmem:[#allocation9 + $0x110] sm:$0xff]
        %v726 = vld [vmem:[#allocation9 + $0x118] sm:$0xff]
        %v727 = vld [vmem:[#allocation9 + $0x120] sm:$0xff]
        %v728 = vld [vmem:[#allocation9 + $0x128] sm:$0xff]
        %v729 = vld [vmem:[#allocation9 + $0x130] sm:$0xff]
        %v730 = vld [vmem:[#allocation9 + $0x138] sm:$0xff]
        %v731 = vld [vmem:[#allocation9 + $0x140] sm:$0xff]
        %v732 = vld [vmem:[#allocation9 + $0x148] sm:$0xff]
        %v733 = vld [vmem:[#allocation9 + $0x150] sm:$0xff]
        %v734 = vld [vmem:[#allocation9 + $0x158] sm:$0xff]
        %v735 = vld [vmem:[#allocation9 + $0x160] sm:$0xff]
        %v736 = vld [vmem:[#allocation9 + $0x168] sm:$0xff]
        %v737 = vld [vmem:[#allocation9 + $0x170] sm:$0xff]
        %v738 = vld [vmem:[#allocation9 + $0x178] sm:$0xff]
        %v739 = vld [vmem:[#allocation9 + $0x180] sm:$0xff]
        %v740 = vld [vmem:[#allocation9 + $0x188] sm:$0xff]
        %v741 = vld [vmem:[#allocation9 + $0x190] sm:$0xff]
        %v742 = vld [vmem:[#allocation9 + $0x198] sm:$0xff]
        %v743 = vld [vmem:[#allocation9 + $0x1a0] sm:$0xff]
        %v744 = vld [vmem:[#allocation9 + $0x1a8] sm:$0xff]
        %v745 = vld [vmem:[#allocation9 + $0x1b0] sm:$0xff]
        %v746 = vld [vmem:[#allocation9 + $0x1b8] sm:$0xff]
        %v747 = vld [vmem:[#allocation9 + $0x1c0] sm:$0xff]
        %v748 = vld [vmem:[#allocation9 + $0x1c8] sm:$0xff]
        %v749 = vld [vmem:[#allocation9 + $0x1d0] sm:$0xff]
        %v750 = vld [vmem:[#allocation9 + $0x1d8] sm:$0xff]
        %v751 = vld [vmem:[#allocation9 + $0x1e0] sm:$0xff]
        %v752 = vld [vmem:[#allocation9 + $0x1e8] sm:$0xff]
        %v753 = vld [vmem:[#allocation9 + $0x1f0] sm:$0xff]
        %v754 = vld [vmem:[#allocation9 + $0x1f8] sm:$0xff]
        %v755 = vld [vmem:[#allocation9 + $0x200] sm:$0xff]
        %v756 = vld [vmem:[#allocation9 + $0x208] sm:$0xff]
        %v757 = vld [vmem:[#allocation9 + $0x210] sm:$0xff]
        %v758 = vld [vmem:[#allocation9 + $0x218] sm:$0xff]
        %v759 = vld [vmem:[#allocation9 + $0x220] sm:$0xff]
        %v760 = vld [vmem:[#allocation9 + $0x228] sm:$0xff]
        %v761 = vld [vmem:[#allocation9 + $0x230] sm:$0xff]
        %v762 = vld [vmem:[#allocation9 + $0x238] sm:$0xff]
        %v763 = vld [vmem:[#allocation9 + $0x240] sm:$0xff]
        %v764 = vld [vmem:[#allocation9 + $0x248] sm:$0xff]
        %v765 = vld [vmem:[#allocation9 + $0x250] sm:$0xff]
        %v766 = vld [vmem:[#allocation9 + $0x258] sm:$0xff]
        %v767 = vld [vmem:[#allocation9 + $0x260] sm:$0xff]
        %v768 = vld [vmem:[#allocation9 + $0x268] sm:$0xff]
        %v769 = vld [vmem:[#allocation9 + $0x270] sm:$0xff]
        %v770 = vld [vmem:[#allocation9 + $0x278] sm:$0xff]
        %v771 = vld [vmem:[#allocation9 + $0x280] sm:$0xff]
        %v772 = vld [vmem:[#allocation9 + $0x288] sm:$0xff]
        %v773 = vld [vmem:[#allocation9 + $0x290] sm:$0xff]
        %v774 = vld [vmem:[#allocation9 + $0x298] sm:$0xff]
        %v775 = vld [vmem:[#allocation9 + $0x2a0] sm:$0xff]
        %v776 = vld [vmem:[#allocation9 + $0x2a8] sm:$0xff]
        %v777 = vld [vmem:[#allocation9 + $0x2b0] sm:$0xff]
        %v778 = vld [vmem:[#allocation9 + $0x2b8] sm:$0xff]
        %v779 = vld [vmem:[#allocation9 + $0x2c0] sm:$0xff]
        %v780 = vld [vmem:[#allocation9 + $0x2c8] sm:$0xff]
        %v781 = vld [vmem:[#allocation9 + $0x2d0] sm:$0xff]
        %v782 = vld [vmem:[#allocation9 + $0x2d8] sm:$0xff]
        %v783 = vld [vmem:[#allocation9 + $0x2e0] sm:$0xff]
        %v784 = vld [vmem:[#allocation9 + $0x2e8] sm:$0xff]
        %v785 = vld [vmem:[#allocation9 + $0x2f0] sm:$0xff]
        %v786 = vld [vmem:[#allocation9 + $0x2f8] sm:$0xff]
        %v787 = vld [vmem:[#allocation9 + $0x300] sm:$0xff]
        %v788 = vld [vmem:[#allocation9 + $0x308] sm:$0xff]
        %v789 = vld [vmem:[#allocation9 + $0x310] sm:$0xff]
        %v790 = vld [vmem:[#allocation9 + $0x318] sm:$0xff]
        %v791 = vld [vmem:[#allocation9 + $0x320] sm:$0xff]
        %v792 = vld [vmem:[#allocation9 + $0x328] sm:$0xff]
        %v793 = vld [vmem:[#allocation9 + $0x330] sm:$0xff]
        %v794 = vld [vmem:[#allocation9 + $0x338] sm:$0xff]
        %v795 = vld [vmem:[#allocation9 + $0x340] sm:$0xff]
        %v796 = vld [vmem:[#allocation9 + $0x348] sm:$0xff]
        %v797 = vld [vmem:[#allocation9 + $0x350] sm:$0xff]
        %v798 = vld [vmem:[#allocation9 + $0x358] sm:$0xff]
        %v799 = vld [vmem:[#allocation9 + $0x360] sm:$0xff]
        %v800 = vld [vmem:[#allocation9 + $0x368] sm:$0xff]
        %v801 = vld [vmem:[#allocation9 + $0x370] sm:$0xff]
        %v802 = vld [vmem:[#allocation9 + $0x378] sm:$0xff]
        %v803 = vld [vmem:[#allocation9 + $0x380] sm:$0xff]
        %v804 = vld [vmem:[#allocation9 + $0x388] sm:$0xff]
        %v805 = vld [vmem:[#allocation9 + $0x390] sm:$0xff]
        %v806 = vld [vmem:[#allocation9 + $0x398] sm:$0xff]
        %v807 = vld [vmem:[#allocation9 + $0x3a0] sm:$0xff]
        %v808 = vld [vmem:[#allocation9 + $0x3a8] sm:$0xff]
        %v809 = vld [vmem:[#allocation9 + $0x3b0] sm:$0xff]
        %v810 = vld [vmem:[#allocation9 + $0x3b8] sm:$0xff]
        %v811 = vld [vmem:[#allocation9 + $0x3c0] sm:$0xff]
        %v812 = vld [vmem:[#allocation9 + $0x3c8] sm:$0xff]
        %v813 = vld [vmem:[#allocation9 + $0x3d0] sm:$0xff]
        %v814 = vld [vmem:[#allocation9 + $0x3d8] sm:$0xff]
        %v815 = vld [vmem:[#allocation9 + $0x3e0] sm:$0xff]
        %v816 = vld [vmem:[#allocation9 + $0x3e8] sm:$0xff]
        %v817 = vld [vmem:[#allocation9 + $0x3f0] sm:$0xff]
        %v818 = vld [vmem:[#allocation9 + $0x3f8] sm:$0xff]
        %v819 = vld [vmem:[#allocation10] sm:$0xff]
        %v821 = vlaneseq
        %v822 = vshrl.u32 %v821, 7
        %v823 = vsub.s32 0, %v822
        %v824 = vrot.slane %v819, %v823
        %v825 = vlaneseq
        %v826 = vshrl.u32 %v825, 7
        %v827 = vsub.s32 1, %v826
        %v828 = vrot.slane %v819, %v827
        %v829 = vlaneseq
        %v830 = vshrl.u32 %v829, 7
        %v831 = vsub.s32 2, %v830
        %v832 = vrot.slane %v819, %v831
        %v833 = vlaneseq
        %v834 = vshrl.u32 %v833, 7
        %v835 = vsub.s32 3, %v834
        %v836 = vrot.slane %v819, %v835
        %v837 = vlaneseq
        %v838 = vshrl.u32 %v837, 7
        %v839 = vsub.s32 4, %v838
        %v840 = vrot.slane %v819, %v839
        %v841 = vlaneseq
        %v842 = vshrl.u32 %v841, 7
        %v843 = vsub.s32 5, %v842
        %v844 = vrot.slane %v819, %v843
        %v845 = vlaneseq
        %v846 = vshrl.u32 %v845, 7
        %v847 = vsub.s32 6, %v846
        %v848 = vrot.slane %v819, %v847
        %v849 = vlaneseq
        %v850 = vshrl.u32 %v849, 7
        %v851 = vsub.s32 7, %v850
        %v852 = vrot.slane %v819, %v851
        %861 = vmatprep.subr.mxu0 %v812
        %862 = vmatpush1.msra.mxu0 %v811
        %863 = vmatprep.subr.mxu0 %v804
        %864 = vmatpush1.msra.mxu0 %v803
        %865 = vmatprep.subr.mxu0 %v796
        %866 = vmatpush1.msra.mxu0 %v795
        %867 = vmatprep.subr.mxu0 %v788
        %868 = vmatpush1.msra.mxu0 %v787
        %869 = vmatprep.subr.mxu0 %v780
        %870 = vmatpush1.msra.mxu0 %v779
        %871 = vmatprep.subr.mxu0 %v772
        %872 = vmatpush1.msra.mxu0 %v771
        %873 = vmatprep.subr.mxu0 %v764
        %874 = vmatpush1.msra.mxu0 %v763
        %875 = vmatprep.subr.mxu0 %v756
        %876 = vmatpush1.msra.mxu0 %v755
        %877 = vmatprep.subr.mxu0 %v748
        %878 = vmatpush1.msra.mxu0 %v747
        %879 = vmatprep.subr.mxu0 %v740
        %880 = vmatpush1.msra.mxu0 %v739
        %881 = vmatprep.subr.mxu0 %v732
        %882 = vmatpush1.msra.mxu0 %v731
        %883 = vmatprep.subr.mxu0 %v724
        %884 = vmatpush1.msra.mxu0 %v723
        %885 = vmatprep.subr.mxu0 %v716
        %886 = vmatpush1.msra.mxu0 %v715
        %887 = vmatprep.subr.mxu0 %v708
        %888 = vmatpush1.msra.mxu0 %v707
        %889 = vmatprep.subr.mxu0 %v700
        %890 = vmatpush1.msra.mxu0 %v699
        %891 = vmatprep.subr.mxu0 %v692
        %892 = vmatpush1.msra.mxu0 %v691
        %893 = vmatprep.subr.mxu0 0.0
        %894 = vmatpush2.msra.mxu0 0.0
        %895 = vmatprep.subr.mxu0 0.0
        %896 = vmatpush2.msra.mxu0 0.0
        %897 = vmatprep.subr.mxu0 0.0
        %898 = vmatpush2.msra.mxu0 0.0
        %899 = vmatprep.subr.mxu0 0.0
        %900 = vmatpush2.msra.mxu0 0.0
        %901 = vmatprep.subr.mxu0 0.0
        %902 = vmatpush2.msra.mxu0 0.0
        %903 = vmatprep.subr.mxu0 0.0
        %904 = vmatpush2.msra.mxu0 0.0
        %905 = vmatprep.subr.mxu0 0.0
        %906 = vmatpush2.msra.mxu0 0.0
        %907 = vmatprep.subr.mxu0 0.0
        %908 = vmatpush2.msra.mxu0 0.0
        %909 = vmatprep.subr.mxu0 0.0
        %910 = vmatpush2.msra.mxu0 0.0
        %911 = vmatprep.subr.mxu0 0.0
        %912 = vmatpush2.msra.mxu0 0.0
        %913 = vmatprep.subr.mxu0 0.0
        %914 = vmatpush2.msra.mxu0 0.0
        %915 = vmatprep.subr.mxu0 0.0
        %916 = vmatpush2.msra.mxu0 0.0
        %917 = vmatprep.subr.mxu0 0.0
        %918 = vmatpush2.msra.mxu0 0.0
        %919 = vmatprep.subr.mxu0 0.0
        %920 = vmatpush2.msra.mxu0 0.0
        %921 = vmatprep.subr.mxu0 0.0
        %922 = vmatpush2.msra.mxu0 0.0
        %923 = vmatprep.subr.mxu0 0.0
        %924 = vmatpush2.msra.mxu0 0.0
        %925 = vmatprep.mubr.f32.mxu0 0.0
        %926 = vmatmul.mubr.f32.gmra.mxu0 %v685
        %v927 = vpop.f32.mrf.mxu0
        %v928 = vadd.f32 %v824, %v927
        %v929 = vpop.f32.mrf.mxu0
        %v930 = vadd.f32 %v828, %v929
        %931 = vmatprep.mubr.f32.mxu0 0.0
        %932 = vmatmul.mubr.f32.gmra.mxu0 %v686
        %v933 = vpop.f32.mrf.mxu0
        %v934 = vadd.f32 %v824, %v933
        %v935 = vpop.f32.mrf.mxu0
        %v936 = vadd.f32 %v828, %v935
        %937 = vmatprep.mubr.f32.mxu0 0.0
        %938 = vmatmul.mubr.f32.gmra.mxu0 %v687
        %v939 = vpop.f32.mrf.mxu0
        %v940 = vadd.f32 %v824, %v939
        %v941 = vpop.f32.mrf.mxu0
        %v942 = vadd.f32 %v828, %v941
        %943 = vmatprep.mubr.f32.mxu0 0.0
        %944 = vmatmul.mubr.f32.gmra.mxu0 %v688
        %v945 = vpop.f32.mrf.mxu0
        %v946 = vadd.f32 %v824, %v945
        %v947 = vpop.f32.mrf.mxu0
        %v948 = vadd.f32 %v828, %v947
        %949 = vmatprep.mubr.f32.mxu0 0.0
        %950 = vmatmul.mubr.f32.gmra.mxu0 %v689
        %v951 = vpop.f32.mrf.mxu0
        %v952 = vadd.f32 %v824, %v951
        %v953 = vpop.f32.mrf.mxu0
        %v954 = vadd.f32 %v828, %v953
        %955 = vmatprep.mubr.f32.mxu0 0.0
        %956 = vmatmul.mubr.f32.gmra.mxu0 %v690
        %v957 = vpop.f32.mrf.mxu0
        %v958 = vadd.f32 %v824, %v957
        %v959 = vpop.f32.mrf.mxu0
        %v960 = vadd.f32 %v828, %v959
        %961 = vdwg.mxu0
        %962 = vmatprep.subr.mxu0 %v814
        %963 = vmatpush1.msra.mxu0 %v813
        %964 = vmatprep.subr.mxu0 %v806
        %965 = vmatpush1.msra.mxu0 %v805
        %966 = vmatprep.subr.mxu0 %v798
        %967 = vmatpush1.msra.mxu0 %v797
        %968 = vmatprep.subr.mxu0 %v790
        %969 = vmatpush1.msra.mxu0 %v789
        %970 = vmatprep.subr.mxu0 %v782
        %971 = vmatpush1.msra.mxu0 %v781
        %972 = vmatprep.subr.mxu0 %v774
        %973 = vmatpush1.msra.mxu0 %v773
        %974 = vmatprep.subr.mxu0 %v766
        %975 = vmatpush1.msra.mxu0 %v765
        %976 = vmatprep.subr.mxu0 %v758
        %977 = vmatpush1.msra.mxu0 %v757
        %978 = vmatprep.subr.mxu0 %v750
        %979 = vmatpush1.msra.mxu0 %v749
        %980 = vmatprep.subr.mxu0 %v742
        %981 = vmatpush1.msra.mxu0 %v741
        %982 = vmatprep.subr.mxu0 %v734
        %983 = vmatpush1.msra.mxu0 %v733
        %984 = vmatprep.subr.mxu0 %v726
        %985 = vmatpush1.msra.mxu0 %v725
        %986 = vmatprep.subr.mxu0 %v718
        %987 = vmatpush1.msra.mxu0 %v717
        %988 = vmatprep.subr.mxu0 %v710
        %989 = vmatpush1.msra.mxu0 %v709
        %990 = vmatprep.subr.mxu0 %v702
        %991 = vmatpush1.msra.mxu0 %v701
        %992 = vmatprep.subr.mxu0 %v694
        %993 = vmatpush1.msra.mxu0 %v693
        %994 = vmatprep.subr.mxu0 0.0
        %995 = vmatpush2.msra.mxu0 0.0
        %996 = vmatprep.subr.mxu0 0.0
        %997 = vmatpush2.msra.mxu0 0.0
        %998 = vmatprep.subr.mxu0 0.0
        %999 = vmatpush2.msra.mxu0 0.0
        %1000 = vmatprep.subr.mxu0 0.0
        %1001 = vmatpush2.msra.mxu0 0.0
        %1002 = vmatprep.subr.mxu0 0.0
        %1003 = vmatpush2.msra.mxu0 0.0
        %1004 = vmatprep.subr.mxu0 0.0
        %1005 = vmatpush2.msra.mxu0 0.0
        %1006 = vmatprep.subr.mxu0 0.0
        %1007 = vmatpush2.msra.mxu0 0.0
        %1008 = vmatprep.subr.mxu0 0.0
        %1009 = vmatpush2.msra.mxu0 0.0
        %1010 = vmatprep.subr.mxu0 0.0
        %1011 = vmatpush2.msra.mxu0 0.0
        %1012 = vmatprep.subr.mxu0 0.0
        %1013 = vmatpush2.msra.mxu0 0.0
        %1014 = vmatprep.subr.mxu0 0.0
        %1015 = vmatpush2.msra.mxu0 0.0
        %1016 = vmatprep.subr.mxu0 0.0
        %1017 = vmatpush2.msra.mxu0 0.0
        %1018 = vmatprep.subr.mxu0 0.0
        %1019 = vmatpush2.msra.mxu0 0.0
        %1020 = vmatprep.subr.mxu0 0.0
        %1021 = vmatpush2.msra.mxu0 0.0
        %1022 = vmatprep.subr.mxu0 0.0
        %1023 = vmatpush2.msra.mxu0 0.0
        %1024 = vmatprep.subr.mxu0 0.0
        %1025 = vmatpush2.msra.mxu0 0.0
        %1026 = vmatprep.mubr.f32.mxu0 0.0
        %1027 = vmatmul.mubr.f32.gmra.mxu0 %v685
        %v1028 = vpop.f32.mrf.mxu0
        %v1029 = vadd.f32 %v832, %v1028
        %v1030 = vpop.f32.mrf.mxu0
        %v1031 = vadd.f32 %v836, %v1030
        %1032 = vmatprep.mubr.f32.mxu0 0.0
        %1033 = vmatmul.mubr.f32.gmra.mxu0 %v686
        %v1034 = vpop.f32.mrf.mxu0
        %v1035 = vadd.f32 %v832, %v1034
        %v1036 = vpop.f32.mrf.mxu0
        %v1037 = vadd.f32 %v836, %v1036
        %1038 = vmatprep.mubr.f32.mxu0 0.0
        %1039 = vmatmul.mubr.f32.gmra.mxu0 %v687
        %v1040 = vpop.f32.mrf.mxu0
        %v1041 = vadd.f32 %v832, %v1040
        %v1042 = vpop.f32.mrf.mxu0
        %v1043 = vadd.f32 %v836, %v1042
        %1044 = vmatprep.mubr.f32.mxu0 0.0
        %1045 = vmatmul.mubr.f32.gmra.mxu0 %v688
        %v1046 = vpop.f32.mrf.mxu0
        %v1047 = vadd.f32 %v832, %v1046
        %v1048 = vpop.f32.mrf.mxu0
        %v1049 = vadd.f32 %v836, %v1048
        %1050 = vmatprep.mubr.f32.mxu0 0.0
        %1051 = vmatmul.mubr.f32.gmra.mxu0 %v689
        %v1052 = vpop.f32.mrf.mxu0
        %v1053 = vadd.f32 %v832, %v1052
        %v1054 = vpop.f32.mrf.mxu0
        %v1055 = vadd.f32 %v836, %v1054
        %1056 = vmatprep.mubr.f32.mxu0 0.0
        %1057 = vmatmul.mubr.f32.gmra.mxu0 %v690
        %v1058 = vpop.f32.mrf.mxu0
        %v1059 = vadd.f32 %v832, %v1058
        %v1060 = vpop.f32.mrf.mxu0
        %v1061 = vadd.f32 %v836, %v1060
        %1062 = vdwg.mxu0
        %1063 = vmatprep.subr.mxu0 %v816
        %1064 = vmatpush1.msra.mxu0 %v815
        %1065 = vmatprep.subr.mxu0 %v808
        %1066 = vmatpush1.msra.mxu0 %v807
        %1067 = vmatprep.subr.mxu0 %v800
        %1068 = vmatpush1.msra.mxu0 %v799
        %1069 = vmatprep.subr.mxu0 %v792
        %1070 = vmatpush1.msra.mxu0 %v791
        %1071 = vmatprep.subr.mxu0 %v784
        %1072 = vmatpush1.msra.mxu0 %v783
        %1073 = vmatprep.subr.mxu0 %v776
        %1074 = vmatpush1.msra.mxu0 %v775
        %1075 = vmatprep.subr.mxu0 %v768
        %1076 = vmatpush1.msra.mxu0 %v767
        %1077 = vmatprep.subr.mxu0 %v760
        %1078 = vmatpush1.msra.mxu0 %v759
        %1079 = vmatprep.subr.mxu0 %v752
        %1080 = vmatpush1.msra.mxu0 %v751
        %1081 = vmatprep.subr.mxu0 %v744
        %1082 = vmatpush1.msra.mxu0 %v743
        %1083 = vmatprep.subr.mxu0 %v736
        %1084 = vmatpush1.msra.mxu0 %v735
        %1085 = vmatprep.subr.mxu0 %v728
        %1086 = vmatpush1.msra.mxu0 %v727
        %1087 = vmatprep.subr.mxu0 %v720
        %1088 = vmatpush1.msra.mxu0 %v719
        %1089 = vmatprep.subr.mxu0 %v712
        %1090 = vmatpush1.msra.mxu0 %v711
        %1091 = vmatprep.subr.mxu0 %v704
        %1092 = vmatpush1.msra.mxu0 %v703
        %1093 = vmatprep.subr.mxu0 %v696
        %1094 = vmatpush1.msra.mxu0 %v695
        %1095 = vmatprep.subr.mxu0 0.0
        %1096 = vmatpush2.msra.mxu0 0.0
        %1097 = vmatprep.subr.mxu0 0.0
        %1098 = vmatpush2.msra.mxu0 0.0
        %1099 = vmatprep.subr.mxu0 0.0
        %1100 = vmatpush2.msra.mxu0 0.0
        %1101 = vmatprep.subr.mxu0 0.0
        %1102 = vmatpush2.msra.mxu0 0.0
        %1103 = vmatprep.subr.mxu0 0.0
        %1104 = vmatpush2.msra.mxu0 0.0
        %1105 = vmatprep.subr.mxu0 0.0
        %1106 = vmatpush2.msra.mxu0 0.0
        %1107 = vmatprep.subr.mxu0 0.0
        %1108 = vmatpush2.msra.mxu0 0.0
        %1109 = vmatprep.subr.mxu0 0.0
        %1110 = vmatpush2.msra.mxu0 0.0
        %1111 = vmatprep.subr.mxu0 0.0
        %1112 = vmatpush2.msra.mxu0 0.0
        %1113 = vmatprep.subr.mxu0 0.0
        %1114 = vmatpush2.msra.mxu0 0.0
        %1115 = vmatprep.subr.mxu0 0.0
        %1116 = vmatpush2.msra.mxu0 0.0
        %1117 = vmatprep.subr.mxu0 0.0
        %1118 = vmatpush2.msra.mxu0 0.0
        %1119 = vmatprep.subr.mxu0 0.0
        %1120 = vmatpush2.msra.mxu0 0.0
        %1121 = vmatprep.subr.mxu0 0.0
        %1122 = vmatpush2.msra.mxu0 0.0
        %1123 = vmatprep.subr.mxu0 0.0
        %1124 = vmatpush2.msra.mxu0 0.0
        %1125 = vmatprep.subr.mxu0 0.0
        %1126 = vmatpush2.msra.mxu0 0.0
        %1127 = vmatprep.mubr.f32.mxu0 0.0
        %1128 = vmatmul.mubr.f32.gmra.mxu0 %v685
        %v1129 = vpop.f32.mrf.mxu0
        %v1130 = vadd.f32 %v840, %v1129
        %v1131 = vpop.f32.mrf.mxu0
        %v1132 = vadd.f32 %v844, %v1131
        %1133 = vmatprep.mubr.f32.mxu0 0.0
        %1134 = vmatmul.mubr.f32.gmra.mxu0 %v686
        %v1135 = vpop.f32.mrf.mxu0
        %v1136 = vadd.f32 %v840, %v1135
        %v1137 = vpop.f32.mrf.mxu0
        %v1138 = vadd.f32 %v844, %v1137
        %1139 = vmatprep.mubr.f32.mxu0 0.0
        %1140 = vmatmul.mubr.f32.gmra.mxu0 %v687
        %v1141 = vpop.f32.mrf.mxu0
        %v1142 = vadd.f32 %v840, %v1141
        %v1143 = vpop.f32.mrf.mxu0
        %v1144 = vadd.f32 %v844, %v1143
        %1145 = vmatprep.mubr.f32.mxu0 0.0
        %1146 = vmatmul.mubr.f32.gmra.mxu0 %v688
        %v1147 = vpop.f32.mrf.mxu0
        %v1148 = vadd.f32 %v840, %v1147
        %v1149 = vpop.f32.mrf.mxu0
        %v1150 = vadd.f32 %v844, %v1149
        %1151 = vmatprep.mubr.f32.mxu0 0.0
        %1152 = vmatmul.mubr.f32.gmra.mxu0 %v689
        %v1153 = vpop.f32.mrf.mxu0
        %v1154 = vadd.f32 %v840, %v1153
        %v1155 = vpop.f32.mrf.mxu0
        %v1156 = vadd.f32 %v844, %v1155
        %1157 = vmatprep.mubr.f32.mxu0 0.0
        %1158 = vmatmul.mubr.f32.gmra.mxu0 %v690
        %v1159 = vpop.f32.mrf.mxu0
        %v1160 = vadd.f32 %v840, %v1159
        %v1161 = vpop.f32.mrf.mxu0
        %v1162 = vadd.f32 %v844, %v1161
        %1163 = vdwg.mxu0
        %1164 = vmatprep.subr.mxu0 %v818
        %1165 = vmatpush1.msra.mxu0 %v817
        %1166 = vmatprep.subr.mxu0 %v810
        %1167 = vmatpush1.msra.mxu0 %v809
        %1168 = vmatprep.subr.mxu0 %v802
        %1169 = vmatpush1.msra.mxu0 %v801
        %1170 = vmatprep.subr.mxu0 %v794
        %1171 = vmatpush1.msra.mxu0 %v793
        %1172 = vmatprep.subr.mxu0 %v786
        %1173 = vmatpush1.msra.mxu0 %v785
        %1174 = vmatprep.subr.mxu0 %v778
        %1175 = vmatpush1.msra.mxu0 %v777
        %1176 = vmatprep.subr.mxu0 %v770
        %1177 = vmatpush1.msra.mxu0 %v769
        %1178 = vmatprep.subr.mxu0 %v762
        %1179 = vmatpush1.msra.mxu0 %v761
        %1180 = vmatprep.subr.mxu0 %v754
        %1181 = vmatpush1.msra.mxu0 %v753
        %1182 = vmatprep.subr.mxu0 %v746
        %1183 = vmatpush1.msra.mxu0 %v745
        %1184 = vmatprep.subr.mxu0 %v738
        %1185 = vmatpush1.msra.mxu0 %v737
        %1186 = vmatprep.subr.mxu0 %v730
        %1187 = vmatpush1.msra.mxu0 %v729
        %1188 = vmatprep.subr.mxu0 %v722
        %1189 = vmatpush1.msra.mxu0 %v721
        %1190 = vmatprep.subr.mxu0 %v714
        %1191 = vmatpush1.msra.mxu0 %v713
        %1192 = vmatprep.subr.mxu0 %v706
        %1193 = vmatpush1.msra.mxu0 %v705
        %1194 = vmatprep.subr.mxu0 %v698
        %1195 = vmatpush1.msra.mxu0 %v697
        %1196 = vmatprep.subr.mxu0 0.0
        %1197 = vmatpush2.msra.mxu0 0.0
        %1198 = vmatprep.subr.mxu0 0.0
        %1199 = vmatpush2.msra.mxu0 0.0
        %1200 = vmatprep.subr.mxu0 0.0
        %1201 = vmatpush2.msra.mxu0 0.0
        %1202 = vmatprep.subr.mxu0 0.0
        %1203 = vmatpush2.msra.mxu0 0.0
        %1204 = vmatprep.subr.mxu0 0.0
        %1205 = vmatpush2.msra.mxu0 0.0
        %1206 = vmatprep.subr.mxu0 0.0
        %1207 = vmatpush2.msra.mxu0 0.0
        %1208 = vmatprep.subr.mxu0 0.0
        %1209 = vmatpush2.msra.mxu0 0.0
        %1210 = vmatprep.subr.mxu0 0.0
        %1211 = vmatpush2.msra.mxu0 0.0
        %1212 = vmatprep.subr.mxu0 0.0
        %1213 = vmatpush2.msra.mxu0 0.0
        %1214 = vmatprep.subr.mxu0 0.0
        %1215 = vmatpush2.msra.mxu0 0.0
        %1216 = vmatprep.subr.mxu0 0.0
        %1217 = vmatpush2.msra.mxu0 0.0
        %1218 = vmatprep.subr.mxu0 0.0
        %1219 = vmatpush2.msra.mxu0 0.0
        %1220 = vmatprep.subr.mxu0 0.0
        %1221 = vmatpush2.msra.mxu0 0.0
        %1222 = vmatprep.subr.mxu0 0.0
        %1223 = vmatpush2.msra.mxu0 0.0
        %1224 = vmatprep.subr.mxu0 0.0
        %1225 = vmatpush2.msra.mxu0 0.0
        %1226 = vmatprep.subr.mxu0 0.0
        %1227 = vmatpush2.msra.mxu0 0.0
        %1228 = vmatprep.mubr.f32.mxu0 0.0
        %1229 = vmatmul.mubr.f32.gmra.mxu0 %v685
        %v1230 = vpop.f32.mrf.mxu0
        %v1231 = vadd.f32 %v848, %v1230
        %v1232 = vpop.f32.mrf.mxu0
        %v1233 = vadd.f32 %v852, %v1232
        %1234 = vmatprep.mubr.f32.mxu0 0.0
        %1235 = vmatmul.mubr.f32.gmra.mxu0 %v686
        %v1236 = vpop.f32.mrf.mxu0
        %v1237 = vadd.f32 %v848, %v1236
        %v1238 = vpop.f32.mrf.mxu0
        %v1239 = vadd.f32 %v852, %v1238
        %1240 = vmatprep.mubr.f32.mxu0 0.0
        %1241 = vmatmul.mubr.f32.gmra.mxu0 %v687
        %v1242 = vpop.f32.mrf.mxu0
        %v1243 = vadd.f32 %v848, %v1242
        %v1244 = vpop.f32.mrf.mxu0
        %v1245 = vadd.f32 %v852, %v1244
        %1246 = vmatprep.mubr.f32.mxu0 0.0
        %1247 = vmatmul.mubr.f32.gmra.mxu0 %v688
        %v1248 = vpop.f32.mrf.mxu0
        %v1249 = vadd.f32 %v848, %v1248
        %v1250 = vpop.f32.mrf.mxu0
        %v1251 = vadd.f32 %v852, %v1250
        %1252 = vmatprep.mubr.f32.mxu0 0.0
        %1253 = vmatmul.mubr.f32.gmra.mxu0 %v689
        %v1254 = vpop.f32.mrf.mxu0
        %v1255 = vadd.f32 %v848, %v1254
        %v1256 = vpop.f32.mrf.mxu0
        %v1257 = vadd.f32 %v852, %v1256
        %1258 = vmatprep.mubr.f32.mxu0 0.0
        %1259 = vmatmul.mubr.f32.gmra.mxu0 %v690
        %v1260 = vpop.f32.mrf.mxu0
        %v1261 = vadd.f32 %v848, %v1260
        %v1262 = vpop.f32.mrf.mxu0
        %v1263 = vadd.f32 %v852, %v1262
        %1264 = vdwg.mxu0
        %v1265 = vmax.f32 %v928, 0.0
        %v1266 = vmax.f32 %v930, 0.0
        %v1267 = vmax.f32 %v1029, 0.0
        %v1268 = vmax.f32 %v1031, 0.0
        %v1269 = vmax.f32 %v1130, 0.0
        %v1270 = vmax.f32 %v1132, 0.0
        %v1271 = vmax.f32 %v1231, 0.0
        %v1272 = vmax.f32 %v1233, 0.0
        %v1273 = vmax.f32 %v934, 0.0
        %v1274 = vmax.f32 %v936, 0.0
        %v1275 = vmax.f32 %v1035, 0.0
        %v1276 = vmax.f32 %v1037, 0.0
        %v1277 = vmax.f32 %v1136, 0.0
        %v1278 = vmax.f32 %v1138, 0.0
        %v1279 = vmax.f32 %v1237, 0.0
        %v1280 = vmax.f32 %v1239, 0.0
        %v1281 = vmax.f32 %v940, 0.0
        %v1282 = vmax.f32 %v942, 0.0
        %v1283 = vmax.f32 %v1041, 0.0
        %v1284 = vmax.f32 %v1043, 0.0
        %v1285 = vmax.f32 %v1142, 0.0
        %v1286 = vmax.f32 %v1144, 0.0
        %v1287 = vmax.f32 %v1243, 0.0
        %v1288 = vmax.f32 %v1245, 0.0
        %v1289 = vmax.f32 %v946, 0.0
        %v1290 = vmax.f32 %v948, 0.0
        %v1291 = vmax.f32 %v1047, 0.0
        %v1292 = vmax.f32 %v1049, 0.0
        %v1293 = vmax.f32 %v1148, 0.0
        %v1294 = vmax.f32 %v1150, 0.0
        %v1295 = vmax.f32 %v1249, 0.0
        %v1296 = vmax.f32 %v1251, 0.0
        %v1297 = vmax.f32 %v952, 0.0
        %v1298 = vmax.f32 %v954, 0.0
        %v1299 = vmax.f32 %v1053, 0.0
        %v1300 = vmax.f32 %v1055, 0.0
        %v1301 = vmax.f32 %v1154, 0.0
        %v1302 = vmax.f32 %v1156, 0.0
        %v1303 = vmax.f32 %v1255, 0.0
        %v1304 = vmax.f32 %v1257, 0.0
        %v1305 = vmax.f32 %v958, 0.0
        %v1306 = vmax.f32 %v960, 0.0
        %v1307 = vmax.f32 %v1059, 0.0
        %v1308 = vmax.f32 %v1061, 0.0
        %v1309 = vmax.f32 %v1160, 0.0
        %v1310 = vmax.f32 %v1162, 0.0
        %v1311 = vmax.f32 %v1261, 0.0
        %v1312 = vmax.f32 %v1263, 0.0
        %p1313 = scmp.eq.s32.totalorder %s27, 1
        // Predicated region
        $region77: #{pointnet_densecls.3} parent=47 // pred_check
          %p1314 = pneg %p1313
        $region78: #{pointnet_densecls.3} parent=47 // pred_check_branch
          %1316 = sbr.rel (%p1314) target = $region80
        $region79: #{pointnet_densecls.3} parent=47 // pred_region
          %s1317 = smul.u32 %s27, 48
          %v1318 = vlaneseq
          %v1319 = vshrl.u32 %v1318, 7
          %v1320 = vadd.s32 %v1319, 8
          %v1321 = vadd.s32 %v1319, 16
          %v1322 = vadd.s32 %v1319, 24
          %v1323 = vadd.s32 %v1319, 32
          %v1324 = vadd.s32 %v1319, 40
          %v1325 = vstv %s1317
          %v1326 = vadd.s32 %v1325, %v1319
          %v1327 = vadd.s32 %v1325, %v1320
          %v1328 = vadd.s32 %v1325, %v1321
          %v1329 = vadd.s32 %v1325, %v1322
          %v1330 = vadd.s32 %v1325, %v1323
          %v1331 = vadd.s32 %v1325, %v1324
          %vm1332 = vcmp.lt.s32.totalorder %v1326, 64
          %vm1333 = vcmp.lt.s32.totalorder %v1327, 64
          %vm1334 = vcmp.lt.s32.totalorder %v1328, 64
          %vm1335 = vcmp.lt.s32.totalorder %v1329, 64
          %vm1336 = vcmp.lt.s32.totalorder %v1330, 64
          %vm1337 = vcmp.lt.s32.totalorder %v1331, 64
          %v1338 = vsel %vm1332, 1, 0
          %v1339 = vsel %vm1333, 1, 0
          %v1340 = vsel %vm1334, 1, 0
          %v1341 = vsel %vm1335, 1, 0
          %v1342 = vsel %vm1336, 1, 0
          %v1343 = vsel %vm1337, 1, 0
          %vm1344 = vcmp.eq.s32.totalorder %v1338, 1
          %vm1345 = vcmp.eq.s32.totalorder %v1339, 1
          %vm1346 = vcmp.eq.s32.totalorder %v1340, 1
          %vm1347 = vcmp.eq.s32.totalorder %v1341, 1
          %vm1348 = vcmp.eq.s32.totalorder %v1342, 1
          %vm1349 = vcmp.eq.s32.totalorder %v1343, 1
          %v1350 = vsel %vm1344, %v1265, -inf
          %v1351 = vsel %vm1344, %v1266, -inf
          %v1352 = vsel %vm1344, %v1267, -inf
          %v1353 = vsel %vm1344, %v1268, -inf
          %v1354 = vsel %vm1344, %v1269, -inf
          %v1355 = vsel %vm1344, %v1270, -inf
          %v1356 = vsel %vm1344, %v1271, -inf
          %v1357 = vsel %vm1344, %v1272, -inf
          %v1358 = vsel %vm1345, %v1273, -inf
          %v1359 = vsel %vm1345, %v1274, -inf
          %v1360 = vsel %vm1345, %v1275, -inf
          %v1361 = vsel %vm1345, %v1276, -inf
          %v1362 = vsel %vm1345, %v1277, -inf
          %v1363 = vsel %vm1345, %v1278, -inf
          %v1364 = vsel %vm1345, %v1279, -inf
          %v1365 = vsel %vm1345, %v1280, -inf
          %v1366 = vsel %vm1346, %v1281, -inf
          %v1367 = vsel %vm1346, %v1282, -inf
          %v1368 = vsel %vm1346, %v1283, -inf
          %v1369 = vsel %vm1346, %v1284, -inf
          %v1370 = vsel %vm1346, %v1285, -inf
          %v1371 = vsel %vm1346, %v1286, -inf
          %v1372 = vsel %vm1346, %v1287, -inf
          %v1373 = vsel %vm1346, %v1288, -inf
          %v1374 = vsel %vm1347, %v1289, -inf
          %v1375 = vsel %vm1347, %v1290, -inf
          %v1376 = vsel %vm1347, %v1291, -inf
          %v1377 = vsel %vm1347, %v1292, -inf
          %v1378 = vsel %vm1347, %v1293, -inf
          %v1379 = vsel %vm1347, %v1294, -inf
          %v1380 = vsel %vm1347, %v1295, -inf
          %v1381 = vsel %vm1347, %v1296, -inf
          %v1382 = vsel %vm1348, %v1297, -inf
          %v1383 = vsel %vm1348, %v1298, -inf
          %v1384 = vsel %vm1348, %v1299, -inf
          %v1385 = vsel %vm1348, %v1300, -inf
          %v1386 = vsel %vm1348, %v1301, -inf
          %v1387 = vsel %vm1348, %v1302, -inf
          %v1388 = vsel %vm1348, %v1303, -inf
          %v1389 = vsel %vm1348, %v1304, -inf
          %v1390 = vsel %vm1349, %v1305, -inf
          %v1391 = vsel %vm1349, %v1306, -inf
          %v1392 = vsel %vm1349, %v1307, -inf
          %v1393 = vsel %vm1349, %v1308, -inf
          %v1394 = vsel %vm1349, %v1309, -inf
          %v1395 = vsel %vm1349, %v1310, -inf
          %v1396 = vsel %vm1349, %v1311, -inf
          %v1397 = vsel %vm1349, %v1312, -inf
          %v1398 = vld [vmem:[%s404] sm:$0xff]
          %v1399 = vmax.f32 %v1350, %v1358
          %v1400 = vmax.f32 %v1399, %v1366
          %v1401 = vmax.f32 %v1400, %v1374
          %v1402 = vmax.f32 %v1401, %v1382
          %v1403 = vmax.f32 %v1402, %v1390
          %v1404 = vrot.slane %v1403, 4
          %v1405 = vmax.f32 %v1403, %v1404
          %v1406 = vrot.slane %v1405, 2
          %v1407 = vmax.f32 %v1405, %v1406
          %v1408 = vrot.slane %v1407, 1
          %v1409 = vmax.f32 %v1407, %v1408
          %v1410 = vmax.f32 %v1351, %v1359
          %v1411 = vmax.f32 %v1410, %v1367
          %v1412 = vmax.f32 %v1411, %v1375
          %v1413 = vmax.f32 %v1412, %v1383
          %v1414 = vmax.f32 %v1413, %v1391
          %v1415 = vrot.slane %v1414, 4
          %v1416 = vmax.f32 %v1414, %v1415
          %v1417 = vrot.slane %v1416, 2
          %v1418 = vmax.f32 %v1416, %v1417
          %v1419 = vrot.slane %v1418, 1
          %v1420 = vmax.f32 %v1418, %v1419
          %v1421 = vmax.f32 %v1352, %v1360
          %v1422 = vmax.f32 %v1421, %v1368
          %v1423 = vmax.f32 %v1422, %v1376
          %v1424 = vmax.f32 %v1423, %v1384
          %v1425 = vmax.f32 %v1424, %v1392
          %v1426 = vrot.slane %v1425, 4
          %v1427 = vmax.f32 %v1425, %v1426
          %v1428 = vrot.slane %v1427, 2
          %v1429 = vmax.f32 %v1427, %v1428
          %v1430 = vrot.slane %v1429, 1
          %v1431 = vmax.f32 %v1429, %v1430
          %v1432 = vmax.f32 %v1353, %v1361
          %v1433 = vmax.f32 %v1432, %v1369
          %v1434 = vmax.f32 %v1433, %v1377
          %v1435 = vmax.f32 %v1434, %v1385
          %v1436 = vmax.f32 %v1435, %v1393
          %v1437 = vrot.slane %v1436, 4
          %v1438 = vmax.f32 %v1436, %v1437
          %v1439 = vrot.slane %v1438, 2
          %v1440 = vmax.f32 %v1438, %v1439
          %v1441 = vrot.slane %v1440, 1
          %v1442 = vmax.f32 %v1440, %v1441
          %v1443 = vmax.f32 %v1354, %v1362
          %v1444 = vmax.f32 %v1443, %v1370
          %v1445 = vmax.f32 %v1444, %v1378
          %v1446 = vmax.f32 %v1445, %v1386
          %v1447 = vmax.f32 %v1446, %v1394
          %v1448 = vrot.slane %v1447, 4
          %v1449 = vmax.f32 %v1447, %v1448
          %v1450 = vrot.slane %v1449, 2
          %v1451 = vmax.f32 %v1449, %v1450
          %v1452 = vrot.slane %v1451, 1
          %v1453 = vmax.f32 %v1451, %v1452
          %v1454 = vmax.f32 %v1355, %v1363
          %v1455 = vmax.f32 %v1454, %v1371
          %v1456 = vmax.f32 %v1455, %v1379
          %v1457 = vmax.f32 %v1456, %v1387
          %v1458 = vmax.f32 %v1457, %v1395
          %v1459 = vrot.slane %v1458, 4
          %v1460 = vmax.f32 %v1458, %v1459
          %v1461 = vrot.slane %v1460, 2
          %v1462 = vmax.f32 %v1460, %v1461
          %v1463 = vrot.slane %v1462, 1
          %v1464 = vmax.f32 %v1462, %v1463
          %v1465 = vmax.f32 %v1356, %v1364
          %v1466 = vmax.f32 %v1465, %v1372
          %v1467 = vmax.f32 %v1466, %v1380
          %v1468 = vmax.f32 %v1467, %v1388
          %v1469 = vmax.f32 %v1468, %v1396
          %v1470 = vrot.slane %v1469, 4
          %v1471 = vmax.f32 %v1469, %v1470
          %v1472 = vrot.slane %v1471, 2
          %v1473 = vmax.f32 %v1471, %v1472
          %v1474 = vrot.slane %v1473, 1
          %v1475 = vmax.f32 %v1473, %v1474
          %v1476 = vmax.f32 %v1357, %v1365
          %v1477 = vmax.f32 %v1476, %v1373
          %v1478 = vmax.f32 %v1477, %v1381
          %v1479 = vmax.f32 %v1478, %v1389
          %v1480 = vmax.f32 %v1479, %v1397
          %v1481 = vrot.slane %v1480, 4
          %v1482 = vmax.f32 %v1480, %v1481
          %v1483 = vrot.slane %v1482, 2
          %v1484 = vmax.f32 %v1482, %v1483
          %v1485 = vrot.slane %v1484, 1
          %v1486 = vmax.f32 %v1484, %v1485
          %v1495 = vcombine.low %v1409, %v1420
          %v1496 = vcombine.low %v1431, %v1442
          %v1497 = vcombine.low %v1453, %v1464
          %v1498 = vcombine.low %v1475, %v1486
          %v1500 = vunpack.c.l.s4 1966171168
          %v1501 = vunpack.c.0.s8 %v1500
          %v1502 = vlaneseq
          %v1503 = vshrl.u32 %v1502, 7
          %v1504 = vsub.s32 %v1501, %v1503
          %v1505 = vrot.slane %v1495, %v1504
          %v1507 = vunpack.c.l.s4 1966171168
          %v1508 = vunpack.c.0.s8 %v1507
          %v1509 = vlaneseq
          %v1510 = vshrl.u32 %v1509, 7
          %v1511 = vsub.s32 %v1508, %v1510
          %v1512 = vrot.slane %v1496, %v1511
          %v1514 = vunpack.c.l.s4 1966171168
          %v1515 = vunpack.c.0.s8 %v1514
          %v1516 = vlaneseq
          %v1517 = vshrl.u32 %v1516, 7
          %v1518 = vsub.s32 %v1515, %v1517
          %v1519 = vrot.slane %v1497, %v1518
          %v1521 = vunpack.c.l.s4 1966171168
          %v1522 = vunpack.c.0.s8 %v1521
          %v1523 = vlaneseq
          %v1524 = vshrl.u32 %v1523, 7
          %v1525 = vsub.s32 %v1522, %v1524
          %v1526 = vrot.slane %v1498, %v1525
          %v1527 = vcombine.low %v1505, %v1512
          %v1528 = vcombine.low %v1519, %v1526
          %v1530 = vunpack.c.l.s4 1966171168
          %v1531 = vunpack.c.0.s8 %v1530
          %v1532 = vlaneseq
          %v1533 = vshrl.u32 %v1532, 7
          %v1534 = vsub.s32 %v1531, %v1533
          %v1535 = vrot.slane %v1527, %v1534
          %v1537 = vunpack.c.l.s4 1966171168
          %v1538 = vunpack.c.0.s8 %v1537
          %v1539 = vlaneseq
          %v1540 = vshrl.u32 %v1539, 7
          %v1541 = vsub.s32 %v1538, %v1540
          %v1542 = vrot.slane %v1528, %v1541
          %v1543 = vcombine.low %v1535, %v1542
          %v1545 = vmax.f32 %v1398, %v1543
          %1546 = vst [vmem:[%s404] sm:$0xff] %v1545
        $region80: #{pointnet_densecls.3} parent=47 // pred_fallthru
          _
        %p1547 = scmp.ne.s32.totalorder %s27, 1
        // Predicated region
        $region81: #{pointnet_densecls.3} parent=47 // pred_check
          %p1548 = pneg %p1547
        $region82: #{pointnet_densecls.3} parent=47 // pred_check_branch
          %1550 = sbr.rel (%p1548) target = $region84
        $region83: #{pointnet_densecls.3} parent=47 // pred_region
          %v1551 = vld [vmem:[%s404] sm:$0xff]
          %v1552 = vmax.f32 %v1265, %v1273
          %v1553 = vmax.f32 %v1552, %v1281
          %v1554 = vmax.f32 %v1553, %v1289
          %v1555 = vmax.f32 %v1554, %v1297
          %v1556 = vmax.f32 %v1555, %v1305
          %v1557 = vrot.slane %v1556, 4
          %v1558 = vmax.f32 %v1556, %v1557
          %v1559 = vrot.slane %v1558, 2
          %v1560 = vmax.f32 %v1558, %v1559
          %v1561 = vrot.slane %v1560, 1
          %v1562 = vmax.f32 %v1560, %v1561
          %v1563 = vmax.f32 %v1266, %v1274
          %v1564 = vmax.f32 %v1563, %v1282
          %v1565 = vmax.f32 %v1564, %v1290
          %v1566 = vmax.f32 %v1565, %v1298
          %v1567 = vmax.f32 %v1566, %v1306
          %v1568 = vrot.slane %v1567, 4
          %v1569 = vmax.f32 %v1567, %v1568
          %v1570 = vrot.slane %v1569, 2
          %v1571 = vmax.f32 %v1569, %v1570
          %v1572 = vrot.slane %v1571, 1
          %v1573 = vmax.f32 %v1571, %v1572
          %v1574 = vmax.f32 %v1267, %v1275
          %v1575 = vmax.f32 %v1574, %v1283
          %v1576 = vmax.f32 %v1575, %v1291
          %v1577 = vmax.f32 %v1576, %v1299
          %v1578 = vmax.f32 %v1577, %v1307
          %v1579 = vrot.slane %v1578, 4
          %v1580 = vmax.f32 %v1578, %v1579
          %v1581 = vrot.slane %v1580, 2
          %v1582 = vmax.f32 %v1580, %v1581
          %v1583 = vrot.slane %v1582, 1
          %v1584 = vmax.f32 %v1582, %v1583
          %v1585 = vmax.f32 %v1268, %v1276
          %v1586 = vmax.f32 %v1585, %v1284
          %v1587 = vmax.f32 %v1586, %v1292
          %v1588 = vmax.f32 %v1587, %v1300
          %v1589 = vmax.f32 %v1588, %v1308
          %v1590 = vrot.slane %v1589, 4
          %v1591 = vmax.f32 %v1589, %v1590
          %v1592 = vrot.slane %v1591, 2
          %v1593 = vmax.f32 %v1591, %v1592
          %v1594 = vrot.slane %v1593, 1
          %v1595 = vmax.f32 %v1593, %v1594
          %v1596 = vmax.f32 %v1269, %v1277
          %v1597 = vmax.f32 %v1596, %v1285
          %v1598 = vmax.f32 %v1597, %v1293
          %v1599 = vmax.f32 %v1598, %v1301
          %v1600 = vmax.f32 %v1599, %v1309
          %v1601 = vrot.slane %v1600, 4
          %v1602 = vmax.f32 %v1600, %v1601
          %v1603 = vrot.slane %v1602, 2
          %v1604 = vmax.f32 %v1602, %v1603
          %v1605 = vrot.slane %v1604, 1
          %v1606 = vmax.f32 %v1604, %v1605
          %v1607 = vmax.f32 %v1270, %v1278
          %v1608 = vmax.f32 %v1607, %v1286
          %v1609 = vmax.f32 %v1608, %v1294
          %v1610 = vmax.f32 %v1609, %v1302
          %v1611 = vmax.f32 %v1610, %v1310
          %v1612 = vrot.slane %v1611, 4
          %v1613 = vmax.f32 %v1611, %v1612
          %v1614 = vrot.slane %v1613, 2
          %v1615 = vmax.f32 %v1613, %v1614
          %v1616 = vrot.slane %v1615, 1
          %v1617 = vmax.f32 %v1615, %v1616
          %v1618 = vmax.f32 %v1271, %v1279
          %v1619 = vmax.f32 %v1618, %v1287
          %v1620 = vmax.f32 %v1619, %v1295
          %v1621 = vmax.f32 %v1620, %v1303
          %v1622 = vmax.f32 %v1621, %v1311
          %v1623 = vrot.slane %v1622, 4
          %v1624 = vmax.f32 %v1622, %v1623
          %v1625 = vrot.slane %v1624, 2
          %v1626 = vmax.f32 %v1624, %v1625
          %v1627 = vrot.slane %v1626, 1
          %v1628 = vmax.f32 %v1626, %v1627
          %v1629 = vmax.f32 %v1272, %v1280
          %v1630 = vmax.f32 %v1629, %v1288
          %v1631 = vmax.f32 %v1630, %v1296
          %v1632 = vmax.f32 %v1631, %v1304
          %v1633 = vmax.f32 %v1632, %v1312
          %v1634 = vrot.slane %v1633, 4
          %v1635 = vmax.f32 %v1633, %v1634
          %v1636 = vrot.slane %v1635, 2
          %v1637 = vmax.f32 %v1635, %v1636
          %v1638 = vrot.slane %v1637, 1
          %v1639 = vmax.f32 %v1637, %v1638
          %v1648 = vcombine.low %v1562, %v1573
          %v1649 = vcombine.low %v1584, %v1595
          %v1650 = vcombine.low %v1606, %v1617
          %v1651 = vcombine.low %v1628, %v1639
          %v1653 = vunpack.c.l.s4 1966171168
          %v1654 = vunpack.c.0.s8 %v1653
          %v1655 = vlaneseq
          %v1656 = vshrl.u32 %v1655, 7
          %v1657 = vsub.s32 %v1654, %v1656
          %v1658 = vrot.slane %v1648, %v1657
          %v1660 = vunpack.c.l.s4 1966171168
          %v1661 = vunpack.c.0.s8 %v1660
          %v1662 = vlaneseq
          %v1663 = vshrl.u32 %v1662, 7
          %v1664 = vsub.s32 %v1661, %v1663
          %v1665 = vrot.slane %v1649, %v1664
          %v1667 = vunpack.c.l.s4 1966171168
          %v1668 = vunpack.c.0.s8 %v1667
          %v1669 = vlaneseq
          %v1670 = vshrl.u32 %v1669, 7
          %v1671 = vsub.s32 %v1668, %v1670
          %v1672 = vrot.slane %v1650, %v1671
          %v1674 = vunpack.c.l.s4 1966171168
          %v1675 = vunpack.c.0.s8 %v1674
          %v1676 = vlaneseq
          %v1677 = vshrl.u32 %v1676, 7
          %v1678 = vsub.s32 %v1675, %v1677
          %v1679 = vrot.slane %v1651, %v1678
          %v1680 = vcombine.low %v1658, %v1665
          %v1681 = vcombine.low %v1672, %v1679
          %v1683 = vunpack.c.l.s4 1966171168
          %v1684 = vunpack.c.0.s8 %v1683
          %v1685 = vlaneseq
          %v1686 = vshrl.u32 %v1685, 7
          %v1687 = vsub.s32 %v1684, %v1686
          %v1688 = vrot.slane %v1680, %v1687
          %v1690 = vunpack.c.l.s4 1966171168
          %v1691 = vunpack.c.0.s8 %v1690
          %v1692 = vlaneseq
          %v1693 = vshrl.u32 %v1692, 7
          %v1694 = vsub.s32 %v1691, %v1693
          %v1695 = vrot.slane %v1681, %v1694
          %v1696 = vcombine.low %v1688, %v1695
          %v1698 = vmax.f32 %v1551, %v1696
          %1699 = vst [vmem:[%s404] sm:$0xff] %v1698
        $region84: #{pointnet_densecls.3} parent=47 // pred_fallthru
          _
        %p1700 = scmp.lt.s32.totalorder %s26, 1
        %s1701 = scalar_select %p1700, %s26, 1
        %s1702 = smul.addr %s1701, 8
        %s1703 = scalar_lea.vmem %s7, %s1702
        // Predicated region
        $region85: #{pointnet_densecls.3} parent=47 // pred_check
          %p1704 = pneg %p206
        $region86: #{pointnet_densecls.3} parent=47 // pred_check_branch
          %1706 = sbr.rel (%p1704) target = $region88
        $region87: #{pointnet_densecls.3} parent=47 // pred_region
          _
        $region88: #{pointnet_densecls.3} parent=47 // pred_fallthru
          _
      $region48: #{pointnet_densecls.3} parent=5 // pred_fallthru
        _
      %p1707 = scmp.le.s32.totalorder 2, %s17
      // Predicated region
      $region89: #{pointnet_densecls.3} parent=5 // pred_check
        %p1708 = pneg %p1707
      $region90: #{pointnet_densecls.3} parent=5 // pred_check_branch
        %1710 = sbr.rel (%p1708) target = $region92
      $region91: #{pointnet_densecls.3} parent=5 // pred_region
        %s1711 = ssub.s32 %s17, 2
        // Predicated region
        $region93: #{pointnet_densecls.3} parent=91 // pred_check
          %p1712 = pneg %p212
        $region94: #{pointnet_densecls.3} parent=91 // pred_check_branch
          %1714 = sbr.rel (%p1712) target = $region96
        $region95: #{pointnet_densecls.3} parent=91 // pred_region
          %p1715 = scmp.lt.s32.totalorder %s28, 1
          %s1716 = scalar_select %p1715, %s28, 1
          %s1717 = smul.addr %s1716, 8
          %s1718 = scalar_lea.vmem %s7, %s1717
        $region96: #{pointnet_densecls.3} parent=91 // pred_fallthru
          _
      $region92: #{pointnet_densecls.3} parent=5 // pred_fallthru
        _
    $region6: #{pointnet_densecls.3} parent=1 // loop_footer
      %s21 = sadd.s32 1, %s17
    $region7: #{pointnet_densecls.3} parent=1 // loop_footer_branch
      %16 = sbr.rel target = $region3
    $region8: #{pointnet_densecls.3} parent=1 // loop_exit
      _
    %1719 = vsyncpa [#allocation3], 1
    %s1720 = scalar_lea.sflag [#allocation3], 1
    %1721 = vsyncpa %s1720, 1
    %1722 = vsyncpa [#allocation5], 1
    %1723 = vsyncpa [#allocation8], 1
    %1724 = vsyncpa [#allocation11], 1

// kernel: pointnet_densecls.4
$region0: #{pointnet_densecls.4}
  #allocation0 [shape = 'u32[]', space=smem, size = 0x4, offset = 0x4, fixed_abs, tag = 'smem constant byte address 0x4 - core index']
  #allocation1 [shape = 'u32[144,128]{1,0:T(1,128)}', space=vmem, size = 0x12000, scoped, tag = 'internal scratch']
  %s0 = inlined_call_operand.vmem [shape: f32[2,64,3], index: 0, kind: input, shape index: {}]
  %s1 = inlined_call_operand.vmem [shape: f32[2,3,64], index: 1, kind: input, shape index: {}]
  %s2 = inlined_call_operand.vmem [shape: f32[1,64], index: 2, kind: input, shape index: {}]
  %s3 = inlined_call_operand.vmem [shape: f32[64,64], index: 3, kind: input, shape index: {}]
  %s4 = inlined_call_operand.vmem [shape: f32[1,64], index: 4, kind: input, shape index: {}]
  %s5 = inlined_call_operand.vmem [shape: f32[64,128], index: 5, kind: input, shape index: {}]
  %s6 = inlined_call_operand.vmem [shape: f32[1,128], index: 6, kind: input, shape index: {}]
  %s7 = inlined_call_operand.vmem [shape: f32[128,1024], index: 7, kind: input, shape index: {}]
  %s8 = inlined_call_operand.vmem [shape: f32[1,1024], index: 8, kind: input, shape index: {}]
  %s9 = inlined_call_operand.vmem [shape: f32[2,1,1024], index: 9, kind: output, shape index: {}]
  %s10 = sld [smem:[#allocation0]]
  $region81: #{pointnet_densecls.4} parent=0
    _
  %s12 = ssub.s32 1, %s10
  %s13 = scalar_select 0, %s12, %s10
  loop: start=0, step=1, limit=6
  $region2: #{pointnet_densecls.4} parent=0 // loop_pre_header
    _
  $region3: #{pointnet_densecls.4} parent=0 // loop_header
    %s15 = sphi 0, %s19
    %p16 = scmp.ge.s32.totalorder %s15, 6
    %s22 = sphi 0, %s34
    %s23 = sphi 0, %s30
    %s24 = sphi 0, %s22
    %s25 = sphi 0, %s23
    %s26 = sphi 0, %s24
    %s27 = sphi 0, %s25
    %s39 = sphi 0, %s41
    %s42 = sphi 0, %s39
    %s43 = sphi 0, %s42
    %s59 = sphi 0, %s43
    %s65 = sphi 0, %s67
    %s68 = sphi 0, %s65
    %s69 = sphi 0, %s68
    %s85 = sphi 0, %s69
    %s89 = sphi 0, %s89
    %s91 = sphi 0, %s89
    %s92 = sphi 0, %s91
    %s106 = sphi 0, %s92
    %s110 = sphi 0, %s110
    %s112 = sphi 0, %s110
    %s113 = sphi 0, %s112
    %s127 = sphi 0, %s113
    %s131 = sphi 0, %s131
    %s133 = sphi 0, %s131
    %s134 = sphi 0, %s133
    %s148 = sphi 0, %s134
    %s152 = sphi 0, %s152
    %s154 = sphi 0, %s152
    %s155 = sphi 0, %s154
    %s169 = sphi 0, %s155
    %s173 = sphi 0, %s173
    %s175 = sphi 0, %s173
    %s176 = sphi 0, %s175
    %s190 = sphi 0, %s176
    %s194 = sphi 0, %s194
    %s196 = sphi 0, %s194
    %s197 = sphi 0, %s196
    %s211 = sphi 0, %s197
    %s215 = sphi 0, %s215
    %s217 = sphi 0, %s215
    %s218 = sphi 0, %s217
    %s232 = sphi 0, %s218
    %s238 = sphi 0, %s240
    %s241 = sphi 0, %s238
    %s242 = sphi 0, %s241
    %s258 = sphi 0, %s242
  $region4: #{pointnet_densecls.4} parent=0 // loop_header_branch
    %18 = sbr.rel (%p16) target = $region8
  $region5: #{pointnet_densecls.4} parent=0 // loop_body
    %s20 = ssub.s32 %s15, 1
    %s21 = ssub.s32 %s15, 2
    %s28 = sadd.s32 1, %s23
    %p29 = scmp.ge.s32.totalorder %s28, 2
    %s30 = scalar_select %p29, 0, %s28
    %s31 = sadd.s32 1, %s22
    %s32 = scalar_select %p29, %s31, %s22
    %p33 = scmp.ge.s32.totalorder %s32, 2
    %s34 = scalar_select %p33, 0, %s32
    %s35 = ssub.s32 %s22, %s34
    %s36 = ssub.s32 %s23, %s30
    %s37 = sor.u32 %s35, %s36
    %p38 = scmp.eq.s32.totalorder %s37, 0
    %s40 = sadd.s32 %s39, 1
    %s41 = scalar_select %p38, %s39, %s40
    %p44 = pneg %p38
    %p45 = scmp.eq.s32.totalorder %s15, 3
    %p46 = por %p44, %p45
    %p47 = scmp.ne.s32.totalorder %s39, %s42
    %p48 = scmp.eq.s32.totalorder %s15, 0
    %p49 = por %p47, %p48
    %p50 = scmp.ne.s32.totalorder %s39, %s42
    %p51 = scmp.eq.s32.totalorder %s20, 3
    %p52 = por %p50, %p51
    %p53 = scmp.ne.s32.totalorder %s42, %s43
    %p54 = scmp.eq.s32.totalorder %s20, 0
    %p55 = por %p53, %p54
    %p56 = scmp.ne.s32.totalorder %s42, %s43
    %p57 = scmp.eq.s32.totalorder %s21, 3
    %p58 = por %p56, %p57
    %p60 = scmp.ne.s32.totalorder %s43, %s59
    %p61 = scmp.eq.s32.totalorder %s21, 0
    %p62 = por %p60, %p61
    %s63 = ssub.s32 %s22, %s34
    %p64 = scmp.eq.s32.totalorder %s63, 0
    %s66 = sadd.s32 %s65, 1
    %s67 = scalar_select %p64, %s65, %s66
    %p70 = pneg %p64
    %p71 = scmp.eq.s32.totalorder %s15, 3
    %p72 = por %p70, %p71
    %p73 = scmp.ne.s32.totalorder %s65, %s68
    %p74 = scmp.eq.s32.totalorder %s15, 0
    %p75 = por %p73, %p74
    %p76 = scmp.ne.s32.totalorder %s65, %s68
    %p77 = scmp.eq.s32.totalorder %s20, 3
    %p78 = por %p76, %p77
    %p79 = scmp.ne.s32.totalorder %s68, %s69
    %p80 = scmp.eq.s32.totalorder %s20, 0
    %p81 = por %p79, %p80
    %p82 = scmp.ne.s32.totalorder %s68, %s69
    %p83 = scmp.eq.s32.totalorder %s21, 3
    %p84 = por %p82, %p83
    %p86 = scmp.ne.s32.totalorder %s69, %s85
    %p87 = scmp.eq.s32.totalorder %s21, 0
    %p88 = por %p86, %p87
    %s90 = sadd.s32 %s89, 1
    %p93 = scmp.eq.s32.totalorder %s15, 3
    %p94 = scmp.ne.s32.totalorder %s89, %s91
    %p95 = scmp.eq.s32.totalorder %s15, 0
    %p96 = por %p94, %p95
    %p97 = scmp.ne.s32.totalorder %s89, %s91
    %p98 = scmp.eq.s32.totalorder %s20, 3
    %p99 = por %p97, %p98
    %p100 = scmp.ne.s32.totalorder %s91, %s92
    %p101 = scmp.eq.s32.totalorder %s20, 0
    %p102 = por %p100, %p101
    %p103 = scmp.ne.s32.totalorder %s91, %s92
    %p104 = scmp.eq.s32.totalorder %s21, 3
    %p105 = por %p103, %p104
    %p107 = scmp.ne.s32.totalorder %s92, %s106
    %p108 = scmp.eq.s32.totalorder %s21, 0
    %p109 = por %p107, %p108
    %s111 = sadd.s32 %s110, 1
    %p114 = scmp.eq.s32.totalorder %s15, 3
    %p115 = scmp.ne.s32.totalorder %s110, %s112
    %p116 = scmp.eq.s32.totalorder %s15, 0
    %p117 = por %p115, %p116
    %p118 = scmp.ne.s32.totalorder %s110, %s112
    %p119 = scmp.eq.s32.totalorder %s20, 3
    %p120 = por %p118, %p119
    %p121 = scmp.ne.s32.totalorder %s112, %s113
    %p122 = scmp.eq.s32.totalorder %s20, 0
    %p123 = por %p121, %p122
    %p124 = scmp.ne.s32.totalorder %s112, %s113
    %p125 = scmp.eq.s32.totalorder %s21, 3
    %p126 = por %p124, %p125
    %p128 = scmp.ne.s32.totalorder %s113, %s127
    %p129 = scmp.eq.s32.totalorder %s21, 0
    %p130 = por %p128, %p129
    %s132 = sadd.s32 %s131, 1
    %p135 = scmp.eq.s32.totalorder %s15, 3
    %p136 = scmp.ne.s32.totalorder %s131, %s133
    %p137 = scmp.eq.s32.totalorder %s15, 0
    %p138 = por %p136, %p137
    %p139 = scmp.ne.s32.totalorder %s131, %s133
    %p140 = scmp.eq.s32.totalorder %s20, 3
    %p141 = por %p139, %p140
    %p142 = scmp.ne.s32.totalorder %s133, %s134
    %p143 = scmp.eq.s32.totalorder %s20, 0
    %p144 = por %p142, %p143
    %p145 = scmp.ne.s32.totalorder %s133, %s134
    %p146 = scmp.eq.s32.totalorder %s21, 3
    %p147 = por %p145, %p146
    %p149 = scmp.ne.s32.totalorder %s134, %s148
    %p150 = scmp.eq.s32.totalorder %s21, 0
    %p151 = por %p149, %p150
    %s153 = sadd.s32 %s152, 1
    %p156 = scmp.eq.s32.totalorder %s15, 3
    %p157 = scmp.ne.s32.totalorder %s152, %s154
    %p158 = scmp.eq.s32.totalorder %s15, 0
    %p159 = por %p157, %p158
    %p160 = scmp.ne.s32.totalorder %s152, %s154
    %p161 = scmp.eq.s32.totalorder %s20, 3
    %p162 = por %p160, %p161
    %p163 = scmp.ne.s32.totalorder %s154, %s155
    %p164 = scmp.eq.s32.totalorder %s20, 0
    %p165 = por %p163, %p164
    %p166 = scmp.ne.s32.totalorder %s154, %s155
    %p167 = scmp.eq.s32.totalorder %s21, 3
    %p168 = por %p166, %p167
    %p170 = scmp.ne.s32.totalorder %s155, %s169
    %p171 = scmp.eq.s32.totalorder %s21, 0
    %p172 = por %p170, %p171
    %s174 = sadd.s32 %s173, 1
    %p177 = scmp.eq.s32.totalorder %s15, 3
    %p178 = scmp.ne.s32.totalorder %s173, %s175
    %p179 = scmp.eq.s32.totalorder %s15, 0
    %p180 = por %p178, %p179
    %p181 = scmp.ne.s32.totalorder %s173, %s175
    %p182 = scmp.eq.s32.totalorder %s20, 3
    %p183 = por %p181, %p182
    %p184 = scmp.ne.s32.totalorder %s175, %s176
    %p185 = scmp.eq.s32.totalorder %s20, 0
    %p186 = por %p184, %p185
    %p187 = scmp.ne.s32.totalorder %s175, %s176
    %p188 = scmp.eq.s32.totalorder %s21, 3
    %p189 = por %p187, %p188
    %p191 = scmp.ne.s32.totalorder %s176, %s190
    %p192 = scmp.eq.s32.totalorder %s21, 0
    %p193 = por %p191, %p192
    %s195 = sadd.s32 %s194, 1
    %p198 = scmp.eq.s32.totalorder %s15, 3
    %p199 = scmp.ne.s32.totalorder %s194, %s196
    %p200 = scmp.eq.s32.totalorder %s15, 0
    %p201 = por %p199, %p200
    %p202 = scmp.ne.s32.totalorder %s194, %s196
    %p203 = scmp.eq.s32.totalorder %s20, 3
    %p204 = por %p202, %p203
    %p205 = scmp.ne.s32.totalorder %s196, %s197
    %p206 = scmp.eq.s32.totalorder %s20, 0
    %p207 = por %p205, %p206
    %p208 = scmp.ne.s32.totalorder %s196, %s197
    %p209 = scmp.eq.s32.totalorder %s21, 3
    %p210 = por %p208, %p209
    %p212 = scmp.ne.s32.totalorder %s197, %s211
    %p213 = scmp.eq.s32.totalorder %s21, 0
    %p214 = por %p212, %p213
    %s216 = sadd.s32 %s215, 1
    %p219 = scmp.eq.s32.totalorder %s15, 3
    %p220 = scmp.ne.s32.totalorder %s215, %s217
    %p221 = scmp.eq.s32.totalorder %s15, 0
    %p222 = por %p220, %p221
    %p223 = scmp.ne.s32.totalorder %s215, %s217
    %p224 = scmp.eq.s32.totalorder %s20, 3
    %p225 = por %p223, %p224
    %p226 = scmp.ne.s32.totalorder %s217, %s218
    %p227 = scmp.eq.s32.totalorder %s20, 0
    %p228 = por %p226, %p227
    %p229 = scmp.ne.s32.totalorder %s217, %s218
    %p230 = scmp.eq.s32.totalorder %s21, 3
    %p231 = por %p229, %p230
    %p233 = scmp.ne.s32.totalorder %s218, %s232
    %p234 = scmp.eq.s32.totalorder %s21, 0
    %p235 = por %p233, %p234
    %s236 = ssub.s32 %s22, %s34
    %p237 = scmp.eq.s32.totalorder %s236, 0
    %s239 = sadd.s32 %s238, 1
    %s240 = scalar_select %p237, %s238, %s239
    %p243 = pneg %p237
    %p244 = scmp.eq.s32.totalorder %s15, 3
    %p245 = por %p243, %p244
    %p246 = scmp.ne.s32.totalorder %s238, %s241
    %p247 = scmp.eq.s32.totalorder %s15, 0
    %p248 = por %p246, %p247
    %p249 = scmp.ne.s32.totalorder %s238, %s241
    %p250 = scmp.eq.s32.totalorder %s20, 3
    %p251 = por %p249, %p250
    %p252 = scmp.ne.s32.totalorder %s241, %s242
    %p253 = scmp.eq.s32.totalorder %s20, 0
    %p254 = por %p252, %p253
    %p255 = scmp.ne.s32.totalorder %s241, %s242
    %p256 = scmp.eq.s32.totalorder %s21, 3
    %p257 = por %p255, %p256
    %p259 = scmp.ne.s32.totalorder %s242, %s258
    %p260 = scmp.eq.s32.totalorder %s21, 0
    %p261 = por %p259, %p260
    %p262 = scmp.le.s32.totalorder 1, %s15
    %p263 = scmp.lt.s32.totalorder %s15, 5
    %p264 = pnand %p262, %p263
    %p265 = pneg %p264
    // Predicated region
    $region9: #{pointnet_densecls.4} parent=5 // pred_check
      _
    $region10: #{pointnet_densecls.4} parent=5 // pred_check_branch
      %267 = sbr.rel (%p264) target = $region12
    $region11: #{pointnet_densecls.4} parent=5 // pred_region
      %s268 = ssub.s32 %s15, 1
      // Predicated region
      $region13: #{pointnet_densecls.4} parent=11 // pred_check
        %p269 = pneg %p102
      $region14: #{pointnet_densecls.4} parent=11 // pred_check_branch
        %271 = sbr.rel (%p269) target = $region16
      $region15: #{pointnet_densecls.4} parent=11 // pred_region
        _
      $region16: #{pointnet_densecls.4} parent=11 // pred_fallthru
        _
      // Predicated region
      $region17: #{pointnet_densecls.4} parent=11 // pred_check
        %p272 = pneg %p123
      $region18: #{pointnet_densecls.4} parent=11 // pred_check_branch
        %274 = sbr.rel (%p272) target = $region20
      $region19: #{pointnet_densecls.4} parent=11 // pred_region
        _
      $region20: #{pointnet_densecls.4} parent=11 // pred_fallthru
        _
      // Predicated region
      $region21: #{pointnet_densecls.4} parent=11 // pred_check
        %p275 = pneg %p144
      $region22: #{pointnet_densecls.4} parent=11 // pred_check_branch
        %277 = sbr.rel (%p275) target = $region24
      $region23: #{pointnet_densecls.4} parent=11 // pred_region
        _
      $region24: #{pointnet_densecls.4} parent=11 // pred_fallthru
        _
      // Predicated region
      $region25: #{pointnet_densecls.4} parent=11 // pred_check
        %p278 = pneg %p165
      $region26: #{pointnet_densecls.4} parent=11 // pred_check_branch
        %280 = sbr.rel (%p278) target = $region28
      $region27: #{pointnet_densecls.4} parent=11 // pred_region
        _
      $region28: #{pointnet_densecls.4} parent=11 // pred_fallthru
        _
      // Predicated region
      $region29: #{pointnet_densecls.4} parent=11 // pred_check
        %p281 = pneg %p186
      $region30: #{pointnet_densecls.4} parent=11 // pred_check_branch
        %283 = sbr.rel (%p281) target = $region32
      $region31: #{pointnet_densecls.4} parent=11 // pred_region
        _
      $region32: #{pointnet_densecls.4} parent=11 // pred_fallthru
        _
      // Predicated region
      $region33: #{pointnet_densecls.4} parent=11 // pred_check
        %p284 = pneg %p207
      $region34: #{pointnet_densecls.4} parent=11 // pred_check_branch
        %286 = sbr.rel (%p284) target = $region36
      $region35: #{pointnet_densecls.4} parent=11 // pred_region
        _
      $region36: #{pointnet_densecls.4} parent=11 // pred_fallthru
        _
      // Predicated region
      $region37: #{pointnet_densecls.4} parent=11 // pred_check
        %p287 = pneg %p228
      $region38: #{pointnet_densecls.4} parent=11 // pred_check_branch
        %289 = sbr.rel (%p287) target = $region40
      $region39: #{pointnet_densecls.4} parent=11 // pred_region
        _
      $region40: #{pointnet_densecls.4} parent=11 // pred_fallthru
        _
    $region12: #{pointnet_densecls.4} parent=5 // pred_fallthru
      _
    %p290 = scmp.lt.s32.totalorder %s15, 4
    // Predicated region
    $region41: #{pointnet_densecls.4} parent=5 // pred_check
      %p291 = pneg %p290
    $region42: #{pointnet_densecls.4} parent=5 // pred_check_branch
      %293 = sbr.rel (%p291) target = $region44
    $region43: #{pointnet_densecls.4} parent=5 // pred_region
      // Predicated region
      $region45: #{pointnet_densecls.4} parent=43 // pred_check
        %p294 = pneg %p49
      $region46: #{pointnet_densecls.4} parent=43 // pred_check_branch
        %296 = sbr.rel (%p294) target = $region48
      $region47: #{pointnet_densecls.4} parent=43 // pred_region
        %s297 = smul.u32 6, %s23
        %s298 = ssub.s32 8, %s297
        %p299 = scmp.lt.s32.totalorder %s298, 6
        %s300 = scalar_select %p299, %s298, 6
        %s301 = smul.u32 128, %s300
        %p302 = scmp.lt.s32.totalorder %s22, 1
        %s303 = scalar_select %p302, %s22, 1
        %p304 = scmp.lt.s32.totalorder %s297, 7
        %s305 = scalar_select %p304, %s297, 7
        %s306 = smul.addr %s303, 8
        %s307 = sadd.s32 %s305, %s306
        %s308 = smul.addr %s307, 8
        %s309 = scalar_lea.vmem %s0, %s308
        %s310 = smul.u32 6, %s23
        %s311 = ssub.s32 8, %s310
        %p312 = scmp.lt.s32.totalorder %s311, 6
        %s313 = scalar_select %p312, %s311, 6
        %s314 = smul.u32 128, %s313
      $region48: #{pointnet_densecls.4} parent=43 // pred_fallthru
        _
      // Predicated region
      $region49: #{pointnet_densecls.4} parent=43 // pred_check
        %p315 = pneg %p75
      $region50: #{pointnet_densecls.4} parent=43 // pred_check_branch
        %317 = sbr.rel (%p315) target = $region52
      $region51: #{pointnet_densecls.4} parent=43 // pred_region
        %p318 = scmp.lt.s32.totalorder %s22, 1
        %s319 = scalar_select %p318, %s22, 1
        %s320 = smul.addr %s319, 4
        %s321 = scalar_lea.vmem %s1, %s320
      $region52: #{pointnet_densecls.4} parent=43 // pred_fallthru
        _
    $region44: #{pointnet_densecls.4} parent=5 // pred_fallthru
      _
    %p322 = scmp.le.s32.totalorder 1, %s15
    %p323 = scmp.lt.s32.totalorder %s15, 5
    %p324 = pnand %p322, %p323
    %p325 = pneg %p324
    // Predicated region
    $region53: #{pointnet_densecls.4} parent=5 // pred_check
      _
    $region54: #{pointnet_densecls.4} parent=5 // pred_check_branch
      %327 = sbr.rel (%p324) target = $region56
    $region55: #{pointnet_densecls.4} parent=5 // pred_region
      %s328 = ssub.s32 %s15, 1
      %s329 = smul.u32 6, %s25
      %s330 = ssub.s32 8, %s329
      %p331 = scmp.lt.s32.totalorder %s330, 6
      %s332 = scalar_select %p331, %s330, 6
      %s333 = smul.u32 128, %s332
      %p334 = scmp.lt.s32.totalorder %s24, 1
      %s335 = scalar_select %p334, %s24, 1
      %p336 = scmp.lt.s32.totalorder %s329, 7
      %s337 = scalar_select %p336, %s329, 7
      %s338 = smul.addr %s335, 8
      %s339 = sadd.s32 %s337, %s338
      %s340 = smul.addr %s339, 8
      %s341 = scalar_lea.vmem %s0, %s340
      %p342 = pneg %p55
      %p343 = pneg %p52
      %p344 = scmp.lt.s32.totalorder %s24, 1
      %s345 = scalar_select %p344, %s24, 1
      %s346 = smul.addr %s345, 4
      %s347 = scalar_lea.vmem %s1, %s346
      %p348 = pneg %p81
      %p349 = pneg %p78
      %p350 = pneg %p102
      %p351 = pneg %p99
      %p352 = pneg %p123
      %p353 = pneg %p120
      %p354 = pneg %p144
      %p355 = pneg %p141
      %p356 = pneg %p165
      %p357 = pneg %p162
      %p358 = pneg %p186
      %p359 = pneg %p183
      %p360 = pneg %p207
      %p361 = pneg %p204
      %p362 = pneg %p228
      %p363 = pneg %p225
      %p364 = pneg %p254
      %p365 = pneg %p251
      %p366 = scmp.lt.s32.totalorder %s24, 1
      %s367 = scalar_select %p366, %s24, 1
      %s368 = smul.addr %s367, 8
      %s369 = scalar_lea.vmem %s9, %s368
      %s370 = smul.u32 6, %s25
      %s371 = ssub.s32 8, %s370
      %p372 = scmp.lt.s32.totalorder %s371, 6
      %s373 = scalar_select %p372, %s371, 6
      %s374 = smul.u32 128, %s373
      %p375 = scmp.lt.s32.totalorder %s24, 1
      %s376 = scalar_select %p375, %s24, 1
      %p377 = scmp.lt.s32.totalorder %s370, 7
      %s378 = scalar_select %p377, %s370, 7
      %s379 = smul.addr %s376, 8
      %s380 = sadd.s32 %s378, %s379
      %s381 = smul.addr %s380, 8
      %s382 = scalar_lea.vmem %s0, %s381
      %s383 = smul.u32 6, %s25
      %s384 = ssub.s32 8, %s383
      %p385 = scmp.lt.s32.totalorder %s384, 6
      %s386 = scalar_select %p385, %s384, 6
      %s387 = smul.u32 128, %s386
      %p388 = scmp.lt.s32.totalorder %s24, 1
      %s389 = scalar_select %p388, %s24, 1
      %s390 = smul.addr %s389, 4
      %s391 = scalar_lea.vmem %s1, %s390
      %p392 = scmp.lt.s32.totalorder %s24, 1
      %s393 = scalar_select %p392, %s24, 1
      %s394 = smul.addr %s393, 8
      %s395 = scalar_lea.vmem %s9, %s394
      %p396 = scmp.eq.s32.totalorder %s25, 0
      // Predicated region
      $region57: #{pointnet_densecls.4} parent=55 // pred_check
        %p397 = pneg %p396
      $region58: #{pointnet_densecls.4} parent=55 // pred_check_branch
        %399 = sbr.rel (%p397) target = $region60
      $region59: #{pointnet_densecls.4} parent=55 // pred_region
        %400 = vst [vmem:[%s395] sm:$0xff] -inf
      $region60: #{pointnet_densecls.4} parent=55 // pred_fallthru
        _
      %v401 = vld [vmem:[%s382] sm:$0xff]
      %v402 = vld [vmem:[%s382 + $0x8] sm:$0xff]
      %v403 = vld [vmem:[%s382 + $0x10] sm:$0xff]
      %v404 = vld [vmem:[%s382 + $0x18] sm:$0xff]
      %v405 = vld [vmem:[%s382 + $0x20] sm:$0xff]
      %v406 = vld [vmem:[%s382 + $0x28] sm:$0xff]
      %v407 = vld [vmem:[%s391] sm:$0x7]
      %v408 = vld [vmem:[%s2] sm:$0x1]
      %410 = vset.pattern.permute.xlu0 0
      %411 = vperm.xlu0 %410, %v401
      %v412 = vpop.permute.xlu0 %411
      %415 = vset.pattern.permute.xlu0 0
      %416 = vperm.xlu0 %415, %v402
      %v417 = vpop.permute.xlu0 %416
      %420 = vset.pattern.permute.xlu0 0
      %421 = vperm.xlu0 %420, %v403
      %v422 = vpop.permute.xlu0 %421
      %425 = vset.pattern.permute.xlu0 0
      %426 = vperm.xlu0 %425, %v404
      %v427 = vpop.permute.xlu0 %426
      %430 = vset.pattern.permute.xlu0 0
      %431 = vperm.xlu0 %430, %v405
      %v432 = vpop.permute.xlu0 %431
      %435 = vset.pattern.permute.xlu0 0
      %436 = vperm.xlu0 %435, %v406
      %v437 = vpop.permute.xlu0 %436
      %v439 = vlaneseq
      %v440 = vshrl.u32 %v439, 7
      %v441 = vsub.s32 0, %v440
      %v442 = vrot.slane %v407, %v441
      %v443 = vmul.f32 %v412, %v442
      %v444 = vmul.f32 %v417, %v442
      %v445 = vmul.f32 %v422, %v442
      %v446 = vmul.f32 %v427, %v442
      %v447 = vmul.f32 %v432, %v442
      %v448 = vmul.f32 %v437, %v442
      %449 = vset.pattern.permute.xlu0 1
      %450 = vperm.xlu0 %449, %v401
      %v451 = vpop.permute.xlu0 %450
      %453 = vset.pattern.permute.xlu0 1
      %454 = vperm.xlu0 %453, %v402
      %v455 = vpop.permute.xlu0 %454
      %457 = vset.pattern.permute.xlu0 1
      %458 = vperm.xlu0 %457, %v403
      %v459 = vpop.permute.xlu0 %458
      %461 = vset.pattern.permute.xlu0 1
      %462 = vperm.xlu0 %461, %v404
      %v463 = vpop.permute.xlu0 %462
      %465 = vset.pattern.permute.xlu0 1
      %466 = vperm.xlu0 %465, %v405
      %v467 = vpop.permute.xlu0 %466
      %469 = vset.pattern.permute.xlu0 1
      %470 = vperm.xlu0 %469, %v406
      %v471 = vpop.permute.xlu0 %470
      %v473 = vlaneseq
      %v474 = vshrl.u32 %v473, 7
      %v475 = vsub.s32 1, %v474
      %v476 = vrot.slane %v407, %v475
      %v477 = vmul.f32 %v451, %v476
      %v478 = vmul.f32 %v455, %v476
      %v479 = vmul.f32 %v459, %v476
      %v480 = vmul.f32 %v463, %v476
      %v481 = vmul.f32 %v467, %v476
      %v482 = vmul.f32 %v471, %v476
      %v483 = vadd.f32 %v443, %v477
      %v484 = vadd.f32 %v444, %v478
      %v485 = vadd.f32 %v445, %v479
      %v486 = vadd.f32 %v446, %v480
      %v487 = vadd.f32 %v447, %v481
      %v488 = vadd.f32 %v448, %v482
      %489 = vset.pattern.permute.xlu0 2
      %490 = vperm.xlu0 %489, %v401
      %v491 = vpop.permute.xlu0 %490
      %493 = vset.pattern.permute.xlu0 2
      %494 = vperm.xlu0 %493, %v402
      %v495 = vpop.permute.xlu0 %494
      %497 = vset.pattern.permute.xlu0 2
      %498 = vperm.xlu0 %497, %v403
      %v499 = vpop.permute.xlu0 %498
      %501 = vset.pattern.permute.xlu0 2
      %502 = vperm.xlu0 %501, %v404
      %v503 = vpop.permute.xlu0 %502
      %505 = vset.pattern.permute.xlu0 2
      %506 = vperm.xlu0 %505, %v405
      %v507 = vpop.permute.xlu0 %506
      %509 = vset.pattern.permute.xlu0 2
      %510 = vperm.xlu0 %509, %v406
      %v511 = vpop.permute.xlu0 %510
      %v513 = vlaneseq
      %v514 = vshrl.u32 %v513, 7
      %v515 = vsub.s32 2, %v514
      %v516 = vrot.slane %v407, %v515
      %v517 = vmul.f32 %v491, %v516
      %v518 = vmul.f32 %v495, %v516
      %v519 = vmul.f32 %v499, %v516
      %v520 = vmul.f32 %v503, %v516
      %v521 = vmul.f32 %v507, %v516
      %v522 = vmul.f32 %v511, %v516
      %v523 = vadd.f32 %v483, %v517
      %v524 = vadd.f32 %v484, %v518
      %v525 = vadd.f32 %v485, %v519
      %v526 = vadd.f32 %v486, %v520
      %v527 = vadd.f32 %v487, %v521
      %v528 = vadd.f32 %v488, %v522
      %v530 = vlaneseq
      %v531 = vshrl.u32 %v530, 7
      %v532 = vsub.s32 0, %v531
      %v533 = vrot.slane %v408, %v532
      %v535 = vadd.f32 %v523, %v533
      %v536 = vadd.f32 %v524, %v533
      %v537 = vadd.f32 %v525, %v533
      %v538 = vadd.f32 %v526, %v533
      %v539 = vadd.f32 %v527, %v533
      %v540 = vadd.f32 %v528, %v533
      %v541 = vmax.f32 %v535, 0.0
      %v542 = vmax.f32 %v536, 0.0
      %v543 = vmax.f32 %v537, 0.0
      %v544 = vmax.f32 %v538, 0.0
      %v545 = vmax.f32 %v539, 0.0
      %v546 = vmax.f32 %v540, 0.0
      %v547 = vld [vmem:[%s3] sm:$0xff]
      %v548 = vld [vmem:[%s3 + $0x8] sm:$0xff]
      %v549 = vld [vmem:[%s3 + $0x10] sm:$0xff]
      %v550 = vld [vmem:[%s3 + $0x18] sm:$0xff]
      %v551 = vld [vmem:[%s3 + $0x20] sm:$0xff]
      %v552 = vld [vmem:[%s3 + $0x28] sm:$0xff]
      %v553 = vld [vmem:[%s3 + $0x30] sm:$0xff]
      %v554 = vld [vmem:[%s3 + $0x38] sm:$0xff]
      %v555 = vld [vmem:[%s4] sm:$0x1]
      %v557 = vlaneseq
      %v558 = vshrl.u32 %v557, 7
      %v559 = vsub.s32 0, %v558
      %v560 = vrot.slane %v555, %v559
      %vm562 = vcmask 523264
      %v564 = vsel %vm562, %v541, 0
      %v567 = vsel %vm562, %v542, 0
      %v570 = vsel %vm562, %v543, 0
      %v573 = vsel %vm562, %v544, 0
      %v576 = vsel %vm562, %v545, 0
      %v579 = vsel %vm562, %v546, 0
      %581 = vmatprep.subr.mxu0 0.0
      %582 = vmatpush1.msra.mxu0 0.0
      %583 = vmatprep.subr.mxu0 0.0
      %584 = vmatpush1.msra.mxu0 0.0
      %585 = vmatprep.subr.mxu0 0.0
      %586 = vmatpush1.msra.mxu0 0.0
      %587 = vmatprep.subr.mxu0 0.0
      %588 = vmatpush1.msra.mxu0 0.0
      %589 = vmatprep.subr.mxu0 0.0
      %590 = vmatpush1.msra.mxu0 0.0
      %591 = vmatprep.subr.mxu0 0.0
      %592 = vmatpush1.msra.mxu0 0.0
      %593 = vmatprep.subr.mxu0 0.0
      %594 = vmatpush1.msra.mxu0 0.0
      %595 = vmatprep.subr.mxu0 0.0
      %596 = vmatpush1.msra.mxu0 0.0
      %597 = vmatprep.subr.mxu0 0.0
      %598 = vmatpush1.msra.mxu0 %v554
      %599 = vmatprep.subr.mxu0 0.0
      %600 = vmatpush1.msra.mxu0 %v553
      %601 = vmatprep.subr.mxu0 0.0
      %602 = vmatpush1.msra.mxu0 %v552
      %603 = vmatprep.subr.mxu0 0.0
      %604 = vmatpush1.msra.mxu0 %v551
      %605 = vmatprep.subr.mxu0 0.0
      %606 = vmatpush1.msra.mxu0 %v550
      %607 = vmatprep.subr.mxu0 0.0
      %608 = vmatpush1.msra.mxu0 %v549
      %609 = vmatprep.subr.mxu0 0.0
      %610 = vmatpush1.msra.mxu0 %v548
      %611 = vmatprep.subr.mxu0 0.0
      %612 = vmatpush1.msra.mxu0 %v547
      %613 = vmatprep.subr.mxu0 0.0
      %614 = vmatpush2.msra.mxu0 0.0
      %615 = vmatprep.subr.mxu0 0.0
      %616 = vmatpush2.msra.mxu0 0.0
      %617 = vmatprep.subr.mxu0 0.0
      %618 = vmatpush2.msra.mxu0 0.0
      %619 = vmatprep.subr.mxu0 0.0
      %620 = vmatpush2.msra.mxu0 0.0
      %621 = vmatprep.subr.mxu0 0.0
      %622 = vmatpush2.msra.mxu0 0.0
      %623 = vmatprep.subr.mxu0 0.0
      %624 = vmatpush2.msra.mxu0 0.0
      %625 = vmatprep.subr.mxu0 0.0
      %626 = vmatpush2.msra.mxu0 0.0
      %627 = vmatprep.subr.mxu0 0.0
      %628 = vmatpush2.msra.mxu0 0.0
      %629 = vmatprep.subr.mxu0 0.0
      %630 = vmatpush2.msra.mxu0 0.0
      %631 = vmatprep.subr.mxu0 0.0
      %632 = vmatpush2.msra.mxu0 0.0
      %633 = vmatprep.subr.mxu0 0.0
      %634 = vmatpush2.msra.mxu0 0.0
      %635 = vmatprep.subr.mxu0 0.0
      %636 = vmatpush2.msra.mxu0 0.0
      %637 = vmatprep.subr.mxu0 0.0
      %638 = vmatpush2.msra.mxu0 0.0
      %639 = vmatprep.subr.mxu0 0.0
      %640 = vmatpush2.msra.mxu0 0.0
      %641 = vmatprep.subr.mxu0 0.0
      %642 = vmatpush2.msra.mxu0 0.0
      %643 = vmatprep.subr.mxu0 0.0
      %644 = vmatpush2.msra.mxu0 0.0
      %645 = vmatprep.mubr.f32.mxu0 0.0
      %646 = vmatmul.mubr.f32.gmra.mxu0 %v564
      %v647 = vpop.f32.mrf.mxu0
      %v648 = vadd.f32 %v560, %v647
      %v649 = vpop.f32.mrf.mxu0
      %650 = vmatprep.mubr.f32.mxu0 0.0
      %651 = vmatmul.mubr.f32.gmra.mxu0 %v567
      %v652 = vpop.f32.mrf.mxu0
      %v653 = vadd.f32 %v560, %v652
      %v654 = vpop.f32.mrf.mxu0
      %655 = vmatprep.mubr.f32.mxu0 0.0
      %656 = vmatmul.mubr.f32.gmra.mxu0 %v570
      %v657 = vpop.f32.mrf.mxu0
      %v658 = vadd.f32 %v560, %v657
      %v659 = vpop.f32.mrf.mxu0
      %660 = vmatprep.mubr.f32.mxu0 0.0
      %661 = vmatmul.mubr.f32.gmra.mxu0 %v573
      %v662 = vpop.f32.mrf.mxu0
      %v663 = vadd.f32 %v560, %v662
      %v664 = vpop.f32.mrf.mxu0
      %665 = vmatprep.mubr.f32.mxu0 0.0
      %666 = vmatmul.mubr.f32.gmra.mxu0 %v576
      %v667 = vpop.f32.mrf.mxu0
      %v668 = vadd.f32 %v560, %v667
      %v669 = vpop.f32.mrf.mxu0
      %670 = vmatprep.mubr.f32.mxu0 0.0
      %671 = vmatmul.mubr.f32.gmra.mxu0 %v579
      %v672 = vpop.f32.mrf.mxu0
      %v673 = vadd.f32 %v560, %v672
      %v674 = vpop.f32.mrf.mxu0
      %675 = vdwg.mxu0
      %v676 = vmax.f32 %v648, 0.0
      %v677 = vmax.f32 %v653, 0.0
      %v678 = vmax.f32 %v658, 0.0
      %v679 = vmax.f32 %v663, 0.0
      %v680 = vmax.f32 %v668, 0.0
      %v681 = vmax.f32 %v673, 0.0
      %v682 = vld [vmem:[%s5] sm:$0xff]
      %v683 = vld [vmem:[%s5 + $0x8] sm:$0xff]
      %v684 = vld [vmem:[%s5 + $0x10] sm:$0xff]
      %v685 = vld [vmem:[%s5 + $0x18] sm:$0xff]
      %v686 = vld [vmem:[%s5 + $0x20] sm:$0xff]
      %v687 = vld [vmem:[%s5 + $0x28] sm:$0xff]
      %v688 = vld [vmem:[%s5 + $0x30] sm:$0xff]
      %v689 = vld [vmem:[%s5 + $0x38] sm:$0xff]
      %v690 = vld [vmem:[%s6] sm:$0x1]
      %v692 = vlaneseq
      %v693 = vshrl.u32 %v692, 7
      %v694 = vsub.s32 0, %v693
      %v695 = vrot.slane %v690, %v694
      %v698 = vsel %vm562, %v676, 0
      %v701 = vsel %vm562, %v677, 0
      %v704 = vsel %vm562, %v678, 0
      %v707 = vsel %vm562, %v679, 0
      %v710 = vsel %vm562, %v680, 0
      %v713 = vsel %vm562, %v681, 0
      %715 = vmatprep.subr.mxu0 0.0
      %716 = vmatpush1.msra.mxu0 0.0
      %717 = vmatprep.subr.mxu0 0.0
      %718 = vmatpush1.msra.mxu0 0.0
      %719 = vmatprep.subr.mxu0 0.0
      %720 = vmatpush1.msra.mxu0 0.0
      %721 = vmatprep.subr.mxu0 0.0
      %722 = vmatpush1.msra.mxu0 0.0
      %723 = vmatprep.subr.mxu0 0.0
      %724 = vmatpush1.msra.mxu0 0.0
      %725 = vmatprep.subr.mxu0 0.0
      %726 = vmatpush1.msra.mxu0 0.0
      %727 = vmatprep.subr.mxu0 0.0
      %728 = vmatpush1.msra.mxu0 0.0
      %729 = vmatprep.subr.mxu0 0.0
      %730 = vmatpush1.msra.mxu0 0.0
      %731 = vmatprep.subr.mxu0 0.0
      %732 = vmatpush1.msra.mxu0 %v689
      %733 = vmatprep.subr.mxu0 0.0
      %734 = vmatpush1.msra.mxu0 %v688
      %735 = vmatprep.subr.mxu0 0.0
      %736 = vmatpush1.msra.mxu0 %v687
      %737 = vmatprep.subr.mxu0 0.0
      %738 = vmatpush1.msra.mxu0 %v686
      %739 = vmatprep.subr.mxu0 0.0
      %740 = vmatpush1.msra.mxu0 %v685
      %741 = vmatprep.subr.mxu0 0.0
      %742 = vmatpush1.msra.mxu0 %v684
      %743 = vmatprep.subr.mxu0 0.0
      %744 = vmatpush1.msra.mxu0 %v683
      %745 = vmatprep.subr.mxu0 0.0
      %746 = vmatpush1.msra.mxu0 %v682
      %747 = vmatprep.subr.mxu0 0.0
      %748 = vmatpush2.msra.mxu0 0.0
      %749 = vmatprep.subr.mxu0 0.0
      %750 = vmatpush2.msra.mxu0 0.0
      %751 = vmatprep.subr.mxu0 0.0
      %752 = vmatpush2.msra.mxu0 0.0
      %753 = vmatprep.subr.mxu0 0.0
      %754 = vmatpush2.msra.mxu0 0.0
      %755 = vmatprep.subr.mxu0 0.0
      %756 = vmatpush2.msra.mxu0 0.0
      %757 = vmatprep.subr.mxu0 0.0
      %758 = vmatpush2.msra.mxu0 0.0
      %759 = vmatprep.subr.mxu0 0.0
      %760 = vmatpush2.msra.mxu0 0.0
      %761 = vmatprep.subr.mxu0 0.0
      %762 = vmatpush2.msra.mxu0 0.0
      %763 = vmatprep.subr.mxu0 0.0
      %764 = vmatpush2.msra.mxu0 0.0
      %765 = vmatprep.subr.mxu0 0.0
      %766 = vmatpush2.msra.mxu0 0.0
      %767 = vmatprep.subr.mxu0 0.0
      %768 = vmatpush2.msra.mxu0 0.0
      %769 = vmatprep.subr.mxu0 0.0
      %770 = vmatpush2.msra.mxu0 0.0
      %771 = vmatprep.subr.mxu0 0.0
      %772 = vmatpush2.msra.mxu0 0.0
      %773 = vmatprep.subr.mxu0 0.0
      %774 = vmatpush2.msra.mxu0 0.0
      %775 = vmatprep.subr.mxu0 0.0
      %776 = vmatpush2.msra.mxu0 0.0
      %777 = vmatprep.subr.mxu0 0.0
      %778 = vmatpush2.msra.mxu0 0.0
      %779 = vmatprep.mubr.f32.mxu0 0.0
      %780 = vmatmul.mubr.f32.gmra.mxu0 %v698
      %v781 = vpop.f32.mrf.mxu0
      %v782 = vadd.f32 %v695, %v781
      %v783 = vpop.f32.mrf.mxu0
      %784 = vmatprep.mubr.f32.mxu0 0.0
      %785 = vmatmul.mubr.f32.gmra.mxu0 %v701
      %v786 = vpop.f32.mrf.mxu0
      %v787 = vadd.f32 %v695, %v786
      %v788 = vpop.f32.mrf.mxu0
      %789 = vmatprep.mubr.f32.mxu0 0.0
      %790 = vmatmul.mubr.f32.gmra.mxu0 %v704
      %v791 = vpop.f32.mrf.mxu0
      %v792 = vadd.f32 %v695, %v791
      %v793 = vpop.f32.mrf.mxu0
      %794 = vmatprep.mubr.f32.mxu0 0.0
      %795 = vmatmul.mubr.f32.gmra.mxu0 %v707
      %v796 = vpop.f32.mrf.mxu0
      %v797 = vadd.f32 %v695, %v796
      %v798 = vpop.f32.mrf.mxu0
      %799 = vmatprep.mubr.f32.mxu0 0.0
      %800 = vmatmul.mubr.f32.gmra.mxu0 %v710
      %v801 = vpop.f32.mrf.mxu0
      %v802 = vadd.f32 %v695, %v801
      %v803 = vpop.f32.mrf.mxu0
      %804 = vmatprep.mubr.f32.mxu0 0.0
      %805 = vmatmul.mubr.f32.gmra.mxu0 %v713
      %v806 = vpop.f32.mrf.mxu0
      %v807 = vadd.f32 %v695, %v806
      %v808 = vpop.f32.mrf.mxu0
      %809 = vdwg.mxu0
      %v810 = vmax.f32 %v782, 0.0
      %v811 = vmax.f32 %v787, 0.0
      %v812 = vmax.f32 %v792, 0.0
      %v813 = vmax.f32 %v797, 0.0
      %v814 = vmax.f32 %v802, 0.0
      %v815 = vmax.f32 %v807, 0.0
      %v816 = vld [vmem:[%s7] sm:$0xff]
      %v817 = vld [vmem:[%s7 + $0x8] sm:$0xff]
      %v818 = vld [vmem:[%s7 + $0x10] sm:$0xff]
      %v819 = vld [vmem:[%s7 + $0x18] sm:$0xff]
      %v820 = vld [vmem:[%s7 + $0x20] sm:$0xff]
      %v821 = vld [vmem:[%s7 + $0x28] sm:$0xff]
      %v822 = vld [vmem:[%s7 + $0x30] sm:$0xff]
      %v823 = vld [vmem:[%s7 + $0x38] sm:$0xff]
      %v824 = vld [vmem:[%s7 + $0x40] sm:$0xff]
      %v825 = vld [vmem:[%s7 + $0x48] sm:$0xff]
      %v826 = vld [vmem:[%s7 + $0x50] sm:$0xff]
      %v827 = vld [vmem:[%s7 + $0x58] sm:$0xff]
      %v828 = vld [vmem:[%s7 + $0x60] sm:$0xff]
      %v829 = vld [vmem:[%s7 + $0x68] sm:$0xff]
      %v830 = vld [vmem:[%s7 + $0x70] sm:$0xff]
      %v831 = vld [vmem:[%s7 + $0x78] sm:$0xff]
      %v832 = vld [vmem:[%s7 + $0x80] sm:$0xff]
      %v833 = vld [vmem:[%s7 + $0x88] sm:$0xff]
      %v834 = vld [vmem:[%s7 + $0x90] sm:$0xff]
      %v835 = vld [vmem:[%s7 + $0x98] sm:$0xff]
      %v836 = vld [vmem:[%s7 + $0xa0] sm:$0xff]
      %v837 = vld [vmem:[%s7 + $0xa8] sm:$0xff]
      %v838 = vld [vmem:[%s7 + $0xb0] sm:$0xff]
      %v839 = vld [vmem:[%s7 + $0xb8] sm:$0xff]
      %v840 = vld [vmem:[%s7 + $0xc0] sm:$0xff]
      %v841 = vld [vmem:[%s7 + $0xc8] sm:$0xff]
      %v842 = vld [vmem:[%s7 + $0xd0] sm:$0xff]
      %v843 = vld [vmem:[%s7 + $0xd8] sm:$0xff]
      %v844 = vld [vmem:[%s7 + $0xe0] sm:$0xff]
      %v845 = vld [vmem:[%s7 + $0xe8] sm:$0xff]
      %v846 = vld [vmem:[%s7 + $0xf0] sm:$0xff]
      %v847 = vld [vmem:[%s7 + $0xf8] sm:$0xff]
      %v848 = vld [vmem:[%s7 + $0x100] sm:$0xff]
      %v849 = vld [vmem:[%s7 + $0x108] sm:$0xff]
      %v850 = vld [vmem:[%s7 + $0x110] sm:$0xff]
      %v851 = vld [vmem:[%s7 + $0x118] sm:$0xff]
      %v852 = vld [vmem:[%s7 + $0x120] sm:$0xff]
      %v853 = vld [vmem:[%s7 + $0x128] sm:$0xff]
      %v854 = vld [vmem:[%s7 + $0x130] sm:$0xff]
      %v855 = vld [vmem:[%s7 + $0x138] sm:$0xff]
      %v856 = vld [vmem:[%s7 + $0x140] sm:$0xff]
      %v857 = vld [vmem:[%s7 + $0x148] sm:$0xff]
      %v858 = vld [vmem:[%s7 + $0x150] sm:$0xff]
      %v859 = vld [vmem:[%s7 + $0x158] sm:$0xff]
      %v860 = vld [vmem:[%s7 + $0x160] sm:$0xff]
      %v861 = vld [vmem:[%s7 + $0x168] sm:$0xff]
      %v862 = vld [vmem:[%s7 + $0x170] sm:$0xff]
      %v863 = vld [vmem:[%s7 + $0x178] sm:$0xff]
      %v864 = vld [vmem:[%s7 + $0x180] sm:$0xff]
      %v865 = vld [vmem:[%s7 + $0x188] sm:$0xff]
      %v866 = vld [vmem:[%s7 + $0x190] sm:$0xff]
      %v867 = vld [vmem:[%s7 + $0x198] sm:$0xff]
      %v868 = vld [vmem:[%s7 + $0x1a0] sm:$0xff]
      %v869 = vld [vmem:[%s7 + $0x1a8] sm:$0xff]
      %v870 = vld [vmem:[%s7 + $0x1b0] sm:$0xff]
      %v871 = vld [vmem:[%s7 + $0x1b8] sm:$0xff]
      %v872 = vld [vmem:[%s7 + $0x1c0] sm:$0xff]
      %v873 = vld [vmem:[%s7 + $0x1c8] sm:$0xff]
      %v874 = vld [vmem:[%s7 + $0x1d0] sm:$0xff]
      %v875 = vld [vmem:[%s7 + $0x1d8] sm:$0xff]
      %v876 = vld [vmem:[%s7 + $0x1e0] sm:$0xff]
      %v877 = vld [vmem:[%s7 + $0x1e8] sm:$0xff]
      %v878 = vld [vmem:[%s7 + $0x1f0] sm:$0xff]
      %v879 = vld [vmem:[%s7 + $0x1f8] sm:$0xff]
      %v880 = vld [vmem:[%s7 + $0x200] sm:$0xff]
      %v881 = vld [vmem:[%s7 + $0x208] sm:$0xff]
      %v882 = vld [vmem:[%s7 + $0x210] sm:$0xff]
      %v883 = vld [vmem:[%s7 + $0x218] sm:$0xff]
      %v884 = vld [vmem:[%s7 + $0x220] sm:$0xff]
      %v885 = vld [vmem:[%s7 + $0x228] sm:$0xff]
      %v886 = vld [vmem:[%s7 + $0x230] sm:$0xff]
      %v887 = vld [vmem:[%s7 + $0x238] sm:$0xff]
      %v888 = vld [vmem:[%s7 + $0x240] sm:$0xff]
      %v889 = vld [vmem:[%s7 + $0x248] sm:$0xff]
      %v890 = vld [vmem:[%s7 + $0x250] sm:$0xff]
      %v891 = vld [vmem:[%s7 + $0x258] sm:$0xff]
      %v892 = vld [vmem:[%s7 + $0x260] sm:$0xff]
      %v893 = vld [vmem:[%s7 + $0x268] sm:$0xff]
      %v894 = vld [vmem:[%s7 + $0x270] sm:$0xff]
      %v895 = vld [vmem:[%s7 + $0x278] sm:$0xff]
      %v896 = vld [vmem:[%s7 + $0x280] sm:$0xff]
      %v897 = vld [vmem:[%s7 + $0x288] sm:$0xff]
      %v898 = vld [vmem:[%s7 + $0x290] sm:$0xff]
      %v899 = vld [vmem:[%s7 + $0x298] sm:$0xff]
      %v900 = vld [vmem:[%s7 + $0x2a0] sm:$0xff]
      %v901 = vld [vmem:[%s7 + $0x2a8] sm:$0xff]
      %v902 = vld [vmem:[%s7 + $0x2b0] sm:$0xff]
      %v903 = vld [vmem:[%s7 + $0x2b8] sm:$0xff]
      %v904 = vld [vmem:[%s7 + $0x2c0] sm:$0xff]
      %v905 = vld [vmem:[%s7 + $0x2c8] sm:$0xff]
      %v906 = vld [vmem:[%s7 + $0x2d0] sm:$0xff]
      %v907 = vld [vmem:[%s7 + $0x2d8] sm:$0xff]
      %v908 = vld [vmem:[%s7 + $0x2e0] sm:$0xff]
      %v909 = vld [vmem:[%s7 + $0x2e8] sm:$0xff]
      %v910 = vld [vmem:[%s7 + $0x2f0] sm:$0xff]
      %v911 = vld [vmem:[%s7 + $0x2f8] sm:$0xff]
      %v912 = vld [vmem:[%s7 + $0x300] sm:$0xff]
      %v913 = vld [vmem:[%s7 + $0x308] sm:$0xff]
      %v914 = vld [vmem:[%s7 + $0x310] sm:$0xff]
      %v915 = vld [vmem:[%s7 + $0x318] sm:$0xff]
      %v916 = vld [vmem:[%s7 + $0x320] sm:$0xff]
      %v917 = vld [vmem:[%s7 + $0x328] sm:$0xff]
      %v918 = vld [vmem:[%s7 + $0x330] sm:$0xff]
      %v919 = vld [vmem:[%s7 + $0x338] sm:$0xff]
      %v920 = vld [vmem:[%s7 + $0x340] sm:$0xff]
      %v921 = vld [vmem:[%s7 + $0x348] sm:$0xff]
      %v922 = vld [vmem:[%s7 + $0x350] sm:$0xff]
      %v923 = vld [vmem:[%s7 + $0x358] sm:$0xff]
      %v924 = vld [vmem:[%s7 + $0x360] sm:$0xff]
      %v925 = vld [vmem:[%s7 + $0x368] sm:$0xff]
      %v926 = vld [vmem:[%s7 + $0x370] sm:$0xff]
      %v927 = vld [vmem:[%s7 + $0x378] sm:$0xff]
      %v928 = vld [vmem:[%s7 + $0x380] sm:$0xff]
      %v929 = vld [vmem:[%s7 + $0x388] sm:$0xff]
      %v930 = vld [vmem:[%s7 + $0x390] sm:$0xff]
      %v931 = vld [vmem:[%s7 + $0x398] sm:$0xff]
      %v932 = vld [vmem:[%s7 + $0x3a0] sm:$0xff]
      %v933 = vld [vmem:[%s7 + $0x3a8] sm:$0xff]
      %v934 = vld [vmem:[%s7 + $0x3b0] sm:$0xff]
      %v935 = vld [vmem:[%s7 + $0x3b8] sm:$0xff]
      %v936 = vld [vmem:[%s7 + $0x3c0] sm:$0xff]
      %v937 = vld [vmem:[%s7 + $0x3c8] sm:$0xff]
      %v938 = vld [vmem:[%s7 + $0x3d0] sm:$0xff]
      %v939 = vld [vmem:[%s7 + $0x3d8] sm:$0xff]
      %v940 = vld [vmem:[%s7 + $0x3e0] sm:$0xff]
      %v941 = vld [vmem:[%s7 + $0x3e8] sm:$0xff]
      %v942 = vld [vmem:[%s7 + $0x3f0] sm:$0xff]
      %v943 = vld [vmem:[%s7 + $0x3f8] sm:$0xff]
      %v944 = vld [vmem:[%s8] sm:$0xff]
      %v946 = vlaneseq
      %v947 = vshrl.u32 %v946, 7
      %v948 = vsub.s32 0, %v947
      %v949 = vrot.slane %v944, %v948
      %v950 = vlaneseq
      %v951 = vshrl.u32 %v950, 7
      %v952 = vsub.s32 1, %v951
      %v953 = vrot.slane %v944, %v952
      %v954 = vlaneseq
      %v955 = vshrl.u32 %v954, 7
      %v956 = vsub.s32 2, %v955
      %v957 = vrot.slane %v944, %v956
      %v958 = vlaneseq
      %v959 = vshrl.u32 %v958, 7
      %v960 = vsub.s32 3, %v959
      %v961 = vrot.slane %v944, %v960
      %v962 = vlaneseq
      %v963 = vshrl.u32 %v962, 7
      %v964 = vsub.s32 4, %v963
      %v965 = vrot.slane %v944, %v964
      %v966 = vlaneseq
      %v967 = vshrl.u32 %v966, 7
      %v968 = vsub.s32 5, %v967
      %v969 = vrot.slane %v944, %v968
      %v970 = vlaneseq
      %v971 = vshrl.u32 %v970, 7
      %v972 = vsub.s32 6, %v971
      %v973 = vrot.slane %v944, %v972
      %v974 = vlaneseq
      %v975 = vshrl.u32 %v974, 7
      %v976 = vsub.s32 7, %v975
      %v977 = vrot.slane %v944, %v976
      %986 = vmatprep.subr.mxu0 %v937
      %987 = vmatpush1.msra.mxu0 %v936
      %988 = vmatprep.subr.mxu0 %v929
      %989 = vmatpush1.msra.mxu0 %v928
      %990 = vmatprep.subr.mxu0 %v921
      %991 = vmatpush1.msra.mxu0 %v920
      %992 = vmatprep.subr.mxu0 %v913
      %993 = vmatpush1.msra.mxu0 %v912
      %994 = vmatprep.subr.mxu0 %v905
      %995 = vmatpush1.msra.mxu0 %v904
      %996 = vmatprep.subr.mxu0 %v897
      %997 = vmatpush1.msra.mxu0 %v896
      %998 = vmatprep.subr.mxu0 %v889
      %999 = vmatpush1.msra.mxu0 %v888
      %1000 = vmatprep.subr.mxu0 %v881
      %1001 = vmatpush1.msra.mxu0 %v880
      %1002 = vmatprep.subr.mxu0 %v873
      %1003 = vmatpush1.msra.mxu0 %v872
      %1004 = vmatprep.subr.mxu0 %v865
      %1005 = vmatpush1.msra.mxu0 %v864
      %1006 = vmatprep.subr.mxu0 %v857
      %1007 = vmatpush1.msra.mxu0 %v856
      %1008 = vmatprep.subr.mxu0 %v849
      %1009 = vmatpush1.msra.mxu0 %v848
      %1010 = vmatprep.subr.mxu0 %v841
      %1011 = vmatpush1.msra.mxu0 %v840
      %1012 = vmatprep.subr.mxu0 %v833
      %1013 = vmatpush1.msra.mxu0 %v832
      %1014 = vmatprep.subr.mxu0 %v825
      %1015 = vmatpush1.msra.mxu0 %v824
      %1016 = vmatprep.subr.mxu0 %v817
      %1017 = vmatpush1.msra.mxu0 %v816
      %1018 = vmatprep.subr.mxu0 0.0
      %1019 = vmatpush2.msra.mxu0 0.0
      %1020 = vmatprep.subr.mxu0 0.0
      %1021 = vmatpush2.msra.mxu0 0.0
      %1022 = vmatprep.subr.mxu0 0.0
      %1023 = vmatpush2.msra.mxu0 0.0
      %1024 = vmatprep.subr.mxu0 0.0
      %1025 = vmatpush2.msra.mxu0 0.0
      %1026 = vmatprep.subr.mxu0 0.0
      %1027 = vmatpush2.msra.mxu0 0.0
      %1028 = vmatprep.subr.mxu0 0.0
      %1029 = vmatpush2.msra.mxu0 0.0
      %1030 = vmatprep.subr.mxu0 0.0
      %1031 = vmatpush2.msra.mxu0 0.0
      %1032 = vmatprep.subr.mxu0 0.0
      %1033 = vmatpush2.msra.mxu0 0.0
      %1034 = vmatprep.subr.mxu0 0.0
      %1035 = vmatpush2.msra.mxu0 0.0
      %1036 = vmatprep.subr.mxu0 0.0
      %1037 = vmatpush2.msra.mxu0 0.0
      %1038 = vmatprep.subr.mxu0 0.0
      %1039 = vmatpush2.msra.mxu0 0.0
      %1040 = vmatprep.subr.mxu0 0.0
      %1041 = vmatpush2.msra.mxu0 0.0
      %1042 = vmatprep.subr.mxu0 0.0
      %1043 = vmatpush2.msra.mxu0 0.0
      %1044 = vmatprep.subr.mxu0 0.0
      %1045 = vmatpush2.msra.mxu0 0.0
      %1046 = vmatprep.subr.mxu0 0.0
      %1047 = vmatpush2.msra.mxu0 0.0
      %1048 = vmatprep.subr.mxu0 0.0
      %1049 = vmatpush2.msra.mxu0 0.0
      %1050 = vmatprep.mubr.f32.mxu0 0.0
      %1051 = vmatmul.mubr.f32.gmra.mxu0 %v810
      %v1052 = vpop.f32.mrf.mxu0
      %v1053 = vadd.f32 %v949, %v1052
      %v1054 = vpop.f32.mrf.mxu0
      %v1055 = vadd.f32 %v953, %v1054
      %1056 = vmatprep.mubr.f32.mxu0 0.0
      %1057 = vmatmul.mubr.f32.gmra.mxu0 %v811
      %v1058 = vpop.f32.mrf.mxu0
      %v1059 = vadd.f32 %v949, %v1058
      %v1060 = vpop.f32.mrf.mxu0
      %v1061 = vadd.f32 %v953, %v1060
      %1062 = vmatprep.mubr.f32.mxu0 0.0
      %1063 = vmatmul.mubr.f32.gmra.mxu0 %v812
      %v1064 = vpop.f32.mrf.mxu0
      %v1065 = vadd.f32 %v949, %v1064
      %v1066 = vpop.f32.mrf.mxu0
      %v1067 = vadd.f32 %v953, %v1066
      %1068 = vmatprep.mubr.f32.mxu0 0.0
      %1069 = vmatmul.mubr.f32.gmra.mxu0 %v813
      %v1070 = vpop.f32.mrf.mxu0
      %v1071 = vadd.f32 %v949, %v1070
      %v1072 = vpop.f32.mrf.mxu0
      %v1073 = vadd.f32 %v953, %v1072
      %1074 = vmatprep.mubr.f32.mxu0 0.0
      %1075 = vmatmul.mubr.f32.gmra.mxu0 %v814
      %v1076 = vpop.f32.mrf.mxu0
      %v1077 = vadd.f32 %v949, %v1076
      %v1078 = vpop.f32.mrf.mxu0
      %v1079 = vadd.f32 %v953, %v1078
      %1080 = vmatprep.mubr.f32.mxu0 0.0
      %1081 = vmatmul.mubr.f32.gmra.mxu0 %v815
      %v1082 = vpop.f32.mrf.mxu0
      %v1083 = vadd.f32 %v949, %v1082
      %v1084 = vpop.f32.mrf.mxu0
      %v1085 = vadd.f32 %v953, %v1084
      %1086 = vdwg.mxu0
      %1087 = vmatprep.subr.mxu0 %v939
      %1088 = vmatpush1.msra.mxu0 %v938
      %1089 = vmatprep.subr.mxu0 %v931
      %1090 = vmatpush1.msra.mxu0 %v930
      %1091 = vmatprep.subr.mxu0 %v923
      %1092 = vmatpush1.msra.mxu0 %v922
      %1093 = vmatprep.subr.mxu0 %v915
      %1094 = vmatpush1.msra.mxu0 %v914
      %1095 = vmatprep.subr.mxu0 %v907
      %1096 = vmatpush1.msra.mxu0 %v906
      %1097 = vmatprep.subr.mxu0 %v899
      %1098 = vmatpush1.msra.mxu0 %v898
      %1099 = vmatprep.subr.mxu0 %v891
      %1100 = vmatpush1.msra.mxu0 %v890
      %1101 = vmatprep.subr.mxu0 %v883
      %1102 = vmatpush1.msra.mxu0 %v882
      %1103 = vmatprep.subr.mxu0 %v875
      %1104 = vmatpush1.msra.mxu0 %v874
      %1105 = vmatprep.subr.mxu0 %v867
      %1106 = vmatpush1.msra.mxu0 %v866
      %1107 = vmatprep.subr.mxu0 %v859
      %1108 = vmatpush1.msra.mxu0 %v858
      %1109 = vmatprep.subr.mxu0 %v851
      %1110 = vmatpush1.msra.mxu0 %v850
      %1111 = vmatprep.subr.mxu0 %v843
      %1112 = vmatpush1.msra.mxu0 %v842
      %1113 = vmatprep.subr.mxu0 %v835
      %1114 = vmatpush1.msra.mxu0 %v834
      %1115 = vmatprep.subr.mxu0 %v827
      %1116 = vmatpush1.msra.mxu0 %v826
      %1117 = vmatprep.subr.mxu0 %v819
      %1118 = vmatpush1.msra.mxu0 %v818
      %1119 = vmatprep.subr.mxu0 0.0
      %1120 = vmatpush2.msra.mxu0 0.0
      %1121 = vmatprep.subr.mxu0 0.0
      %1122 = vmatpush2.msra.mxu0 0.0
      %1123 = vmatprep.subr.mxu0 0.0
      %1124 = vmatpush2.msra.mxu0 0.0
      %1125 = vmatprep.subr.mxu0 0.0
      %1126 = vmatpush2.msra.mxu0 0.0
      %1127 = vmatprep.subr.mxu0 0.0
      %1128 = vmatpush2.msra.mxu0 0.0
      %1129 = vmatprep.subr.mxu0 0.0
      %1130 = vmatpush2.msra.mxu0 0.0
      %1131 = vmatprep.subr.mxu0 0.0
      %1132 = vmatpush2.msra.mxu0 0.0
      %1133 = vmatprep.subr.mxu0 0.0
      %1134 = vmatpush2.msra.mxu0 0.0
      %1135 = vmatprep.subr.mxu0 0.0
      %1136 = vmatpush2.msra.mxu0 0.0
      %1137 = vmatprep.subr.mxu0 0.0
      %1138 = vmatpush2.msra.mxu0 0.0
      %1139 = vmatprep.subr.mxu0 0.0
      %1140 = vmatpush2.msra.mxu0 0.0
      %1141 = vmatprep.subr.mxu0 0.0
      %1142 = vmatpush2.msra.mxu0 0.0
      %1143 = vmatprep.subr.mxu0 0.0
      %1144 = vmatpush2.msra.mxu0 0.0
      %1145 = vmatprep.subr.mxu0 0.0
      %1146 = vmatpush2.msra.mxu0 0.0
      %1147 = vmatprep.subr.mxu0 0.0
      %1148 = vmatpush2.msra.mxu0 0.0
      %1149 = vmatprep.subr.mxu0 0.0
      %1150 = vmatpush2.msra.mxu0 0.0
      %1151 = vmatprep.mubr.f32.mxu0 0.0
      %1152 = vmatmul.mubr.f32.gmra.mxu0 %v810
      %v1153 = vpop.f32.mrf.mxu0
      %v1154 = vadd.f32 %v957, %v1153
      %v1155 = vpop.f32.mrf.mxu0
      %v1156 = vadd.f32 %v961, %v1155
      %1157 = vmatprep.mubr.f32.mxu0 0.0
      %1158 = vmatmul.mubr.f32.gmra.mxu0 %v811
      %v1159 = vpop.f32.mrf.mxu0
      %v1160 = vadd.f32 %v957, %v1159
      %v1161 = vpop.f32.mrf.mxu0
      %v1162 = vadd.f32 %v961, %v1161
      %1163 = vmatprep.mubr.f32.mxu0 0.0
      %1164 = vmatmul.mubr.f32.gmra.mxu0 %v812
      %v1165 = vpop.f32.mrf.mxu0
      %v1166 = vadd.f32 %v957, %v1165
      %v1167 = vpop.f32.mrf.mxu0
      %v1168 = vadd.f32 %v961, %v1167
      %1169 = vmatprep.mubr.f32.mxu0 0.0
      %1170 = vmatmul.mubr.f32.gmra.mxu0 %v813
      %v1171 = vpop.f32.mrf.mxu0
      %v1172 = vadd.f32 %v957, %v1171
      %v1173 = vpop.f32.mrf.mxu0
      %v1174 = vadd.f32 %v961, %v1173
      %1175 = vmatprep.mubr.f32.mxu0 0.0
      %1176 = vmatmul.mubr.f32.gmra.mxu0 %v814
      %v1177 = vpop.f32.mrf.mxu0
      %v1178 = vadd.f32 %v957, %v1177
      %v1179 = vpop.f32.mrf.mxu0
      %v1180 = vadd.f32 %v961, %v1179
      %1181 = vmatprep.mubr.f32.mxu0 0.0
      %1182 = vmatmul.mubr.f32.gmra.mxu0 %v815
      %v1183 = vpop.f32.mrf.mxu0
      %v1184 = vadd.f32 %v957, %v1183
      %v1185 = vpop.f32.mrf.mxu0
      %v1186 = vadd.f32 %v961, %v1185
      %1187 = vdwg.mxu0
      %1188 = vmatprep.subr.mxu0 %v941
      %1189 = vmatpush1.msra.mxu0 %v940
      %1190 = vmatprep.subr.mxu0 %v933
      %1191 = vmatpush1.msra.mxu0 %v932
      %1192 = vmatprep.subr.mxu0 %v925
      %1193 = vmatpush1.msra.mxu0 %v924
      %1194 = vmatprep.subr.mxu0 %v917
      %1195 = vmatpush1.msra.mxu0 %v916
      %1196 = vmatprep.subr.mxu0 %v909
      %1197 = vmatpush1.msra.mxu0 %v908
      %1198 = vmatprep.subr.mxu0 %v901
      %1199 = vmatpush1.msra.mxu0 %v900
      %1200 = vmatprep.subr.mxu0 %v893
      %1201 = vmatpush1.msra.mxu0 %v892
      %1202 = vmatprep.subr.mxu0 %v885
      %1203 = vmatpush1.msra.mxu0 %v884
      %1204 = vmatprep.subr.mxu0 %v877
      %1205 = vmatpush1.msra.mxu0 %v876
      %1206 = vmatprep.subr.mxu0 %v869
      %1207 = vmatpush1.msra.mxu0 %v868
      %1208 = vmatprep.subr.mxu0 %v861
      %1209 = vmatpush1.msra.mxu0 %v860
      %1210 = vmatprep.subr.mxu0 %v853
      %1211 = vmatpush1.msra.mxu0 %v852
      %1212 = vmatprep.subr.mxu0 %v845
      %1213 = vmatpush1.msra.mxu0 %v844
      %1214 = vmatprep.subr.mxu0 %v837
      %1215 = vmatpush1.msra.mxu0 %v836
      %1216 = vmatprep.subr.mxu0 %v829
      %1217 = vmatpush1.msra.mxu0 %v828
      %1218 = vmatprep.subr.mxu0 %v821
      %1219 = vmatpush1.msra.mxu0 %v820
      %1220 = vmatprep.subr.mxu0 0.0
      %1221 = vmatpush2.msra.mxu0 0.0
      %1222 = vmatprep.subr.mxu0 0.0
      %1223 = vmatpush2.msra.mxu0 0.0
      %1224 = vmatprep.subr.mxu0 0.0
      %1225 = vmatpush2.msra.mxu0 0.0
      %1226 = vmatprep.subr.mxu0 0.0
      %1227 = vmatpush2.msra.mxu0 0.0
      %1228 = vmatprep.subr.mxu0 0.0
      %1229 = vmatpush2.msra.mxu0 0.0
      %1230 = vmatprep.subr.mxu0 0.0
      %1231 = vmatpush2.msra.mxu0 0.0
      %1232 = vmatprep.subr.mxu0 0.0
      %1233 = vmatpush2.msra.mxu0 0.0
      %1234 = vmatprep.subr.mxu0 0.0
      %1235 = vmatpush2.msra.mxu0 0.0
      %1236 = vmatprep.subr.mxu0 0.0
      %1237 = vmatpush2.msra.mxu0 0.0
      %1238 = vmatprep.subr.mxu0 0.0
      %1239 = vmatpush2.msra.mxu0 0.0
      %1240 = vmatprep.subr.mxu0 0.0
      %1241 = vmatpush2.msra.mxu0 0.0
      %1242 = vmatprep.subr.mxu0 0.0
      %1243 = vmatpush2.msra.mxu0 0.0
      %1244 = vmatprep.subr.mxu0 0.0
      %1245 = vmatpush2.msra.mxu0 0.0
      %1246 = vmatprep.subr.mxu0 0.0
      %1247 = vmatpush2.msra.mxu0 0.0
      %1248 = vmatprep.subr.mxu0 0.0
      %1249 = vmatpush2.msra.mxu0 0.0
      %1250 = vmatprep.subr.mxu0 0.0
      %1251 = vmatpush2.msra.mxu0 0.0
      %1252 = vmatprep.mubr.f32.mxu0 0.0
      %1253 = vmatmul.mubr.f32.gmra.mxu0 %v810
      %v1254 = vpop.f32.mrf.mxu0
      %v1255 = vadd.f32 %v965, %v1254
      %v1256 = vpop.f32.mrf.mxu0
      %v1257 = vadd.f32 %v969, %v1256
      %1258 = vmatprep.mubr.f32.mxu0 0.0
      %1259 = vmatmul.mubr.f32.gmra.mxu0 %v811
      %v1260 = vpop.f32.mrf.mxu0
      %v1261 = vadd.f32 %v965, %v1260
      %v1262 = vpop.f32.mrf.mxu0
      %v1263 = vadd.f32 %v969, %v1262
      %1264 = vmatprep.mubr.f32.mxu0 0.0
      %1265 = vmatmul.mubr.f32.gmra.mxu0 %v812
      %v1266 = vpop.f32.mrf.mxu0
      %v1267 = vadd.f32 %v965, %v1266
      %v1268 = vpop.f32.mrf.mxu0
      %v1269 = vadd.f32 %v969, %v1268
      %1270 = vmatprep.mubr.f32.mxu0 0.0
      %1271 = vmatmul.mubr.f32.gmra.mxu0 %v813
      %v1272 = vpop.f32.mrf.mxu0
      %v1273 = vadd.f32 %v965, %v1272
      %v1274 = vpop.f32.mrf.mxu0
      %v1275 = vadd.f32 %v969, %v1274
      %1276 = vmatprep.mubr.f32.mxu0 0.0
      %1277 = vmatmul.mubr.f32.gmra.mxu0 %v814
      %v1278 = vpop.f32.mrf.mxu0
      %v1279 = vadd.f32 %v965, %v1278
      %v1280 = vpop.f32.mrf.mxu0
      %v1281 = vadd.f32 %v969, %v1280
      %1282 = vmatprep.mubr.f32.mxu0 0.0
      %1283 = vmatmul.mubr.f32.gmra.mxu0 %v815
      %v1284 = vpop.f32.mrf.mxu0
      %v1285 = vadd.f32 %v965, %v1284
      %v1286 = vpop.f32.mrf.mxu0
      %v1287 = vadd.f32 %v969, %v1286
      %1288 = vdwg.mxu0
      %1289 = vmatprep.subr.mxu0 %v943
      %1290 = vmatpush1.msra.mxu0 %v942
      %1291 = vmatprep.subr.mxu0 %v935
      %1292 = vmatpush1.msra.mxu0 %v934
      %1293 = vmatprep.subr.mxu0 %v927
      %1294 = vmatpush1.msra.mxu0 %v926
      %1295 = vmatprep.subr.mxu0 %v919
      %1296 = vmatpush1.msra.mxu0 %v918
      %1297 = vmatprep.subr.mxu0 %v911
      %1298 = vmatpush1.msra.mxu0 %v910
      %1299 = vmatprep.subr.mxu0 %v903
      %1300 = vmatpush1.msra.mxu0 %v902
      %1301 = vmatprep.subr.mxu0 %v895
      %1302 = vmatpush1.msra.mxu0 %v894
      %1303 = vmatprep.subr.mxu0 %v887
      %1304 = vmatpush1.msra.mxu0 %v886
      %1305 = vmatprep.subr.mxu0 %v879
      %1306 = vmatpush1.msra.mxu0 %v878
      %1307 = vmatprep.subr.mxu0 %v871
      %1308 = vmatpush1.msra.mxu0 %v870
      %1309 = vmatprep.subr.mxu0 %v863
      %1310 = vmatpush1.msra.mxu0 %v862
      %1311 = vmatprep.subr.mxu0 %v855
      %1312 = vmatpush1.msra.mxu0 %v854
      %1313 = vmatprep.subr.mxu0 %v847
      %1314 = vmatpush1.msra.mxu0 %v846
      %1315 = vmatprep.subr.mxu0 %v839
      %1316 = vmatpush1.msra.mxu0 %v838
      %1317 = vmatprep.subr.mxu0 %v831
      %1318 = vmatpush1.msra.mxu0 %v830
      %1319 = vmatprep.subr.mxu0 %v823
      %1320 = vmatpush1.msra.mxu0 %v822
      %1321 = vmatprep.subr.mxu0 0.0
      %1322 = vmatpush2.msra.mxu0 0.0
      %1323 = vmatprep.subr.mxu0 0.0
      %1324 = vmatpush2.msra.mxu0 0.0
      %1325 = vmatprep.subr.mxu0 0.0
      %1326 = vmatpush2.msra.mxu0 0.0
      %1327 = vmatprep.subr.mxu0 0.0
      %1328 = vmatpush2.msra.mxu0 0.0
      %1329 = vmatprep.subr.mxu0 0.0
      %1330 = vmatpush2.msra.mxu0 0.0
      %1331 = vmatprep.subr.mxu0 0.0
      %1332 = vmatpush2.msra.mxu0 0.0
      %1333 = vmatprep.subr.mxu0 0.0
      %1334 = vmatpush2.msra.mxu0 0.0
      %1335 = vmatprep.subr.mxu0 0.0
      %1336 = vmatpush2.msra.mxu0 0.0
      %1337 = vmatprep.subr.mxu0 0.0
      %1338 = vmatpush2.msra.mxu0 0.0
      %1339 = vmatprep.subr.mxu0 0.0
      %1340 = vmatpush2.msra.mxu0 0.0
      %1341 = vmatprep.subr.mxu0 0.0
      %1342 = vmatpush2.msra.mxu0 0.0
      %1343 = vmatprep.subr.mxu0 0.0
      %1344 = vmatpush2.msra.mxu0 0.0
      %1345 = vmatprep.subr.mxu0 0.0
      %1346 = vmatpush2.msra.mxu0 0.0
      %1347 = vmatprep.subr.mxu0 0.0
      %1348 = vmatpush2.msra.mxu0 0.0
      %1349 = vmatprep.subr.mxu0 0.0
      %1350 = vmatpush2.msra.mxu0 0.0
      %1351 = vmatprep.subr.mxu0 0.0
      %1352 = vmatpush2.msra.mxu0 0.0
      %1353 = vmatprep.mubr.f32.mxu0 0.0
      %1354 = vmatmul.mubr.f32.gmra.mxu0 %v810
      %v1355 = vpop.f32.mrf.mxu0
      %v1356 = vadd.f32 %v973, %v1355
      %v1357 = vpop.f32.mrf.mxu0
      %v1358 = vadd.f32 %v977, %v1357
      %1359 = vmatprep.mubr.f32.mxu0 0.0
      %1360 = vmatmul.mubr.f32.gmra.mxu0 %v811
      %v1361 = vpop.f32.mrf.mxu0
      %v1362 = vadd.f32 %v973, %v1361
      %v1363 = vpop.f32.mrf.mxu0
      %v1364 = vadd.f32 %v977, %v1363
      %1365 = vmatprep.mubr.f32.mxu0 0.0
      %1366 = vmatmul.mubr.f32.gmra.mxu0 %v812
      %v1367 = vpop.f32.mrf.mxu0
      %v1368 = vadd.f32 %v973, %v1367
      %v1369 = vpop.f32.mrf.mxu0
      %v1370 = vadd.f32 %v977, %v1369
      %1371 = vmatprep.mubr.f32.mxu0 0.0
      %1372 = vmatmul.mubr.f32.gmra.mxu0 %v813
      %v1373 = vpop.f32.mrf.mxu0
      %v1374 = vadd.f32 %v973, %v1373
      %v1375 = vpop.f32.mrf.mxu0
      %v1376 = vadd.f32 %v977, %v1375
      %1377 = vmatprep.mubr.f32.mxu0 0.0
      %1378 = vmatmul.mubr.f32.gmra.mxu0 %v814
      %v1379 = vpop.f32.mrf.mxu0
      %v1380 = vadd.f32 %v973, %v1379
      %v1381 = vpop.f32.mrf.mxu0
      %v1382 = vadd.f32 %v977, %v1381
      %1383 = vmatprep.mubr.f32.mxu0 0.0
      %1384 = vmatmul.mubr.f32.gmra.mxu0 %v815
      %v1385 = vpop.f32.mrf.mxu0
      %v1386 = vadd.f32 %v973, %v1385
      %v1387 = vpop.f32.mrf.mxu0
      %v1388 = vadd.f32 %v977, %v1387
      %1389 = vdwg.mxu0
      %p1390 = scmp.eq.s32.totalorder %s25, 1
      // Predicated region
      $region61: #{pointnet_densecls.4} parent=55 // pred_check
        %p1391 = pneg %p1390
      $region62: #{pointnet_densecls.4} parent=55 // pred_check_branch
        %1393 = sbr.rel (%p1391) target = $region64
      $region63: #{pointnet_densecls.4} parent=55 // pred_region
        %s1394 = smul.u32 %s25, 48
        %v1395 = vlaneseq
        %v1396 = vshrl.u32 %v1395, 7
        %v1397 = vadd.s32 %v1396, 8
        %v1398 = vadd.s32 %v1396, 16
        %v1399 = vadd.s32 %v1396, 24
        %v1400 = vadd.s32 %v1396, 32
        %v1401 = vadd.s32 %v1396, 40
        %v1402 = vstv %s1394
        %v1403 = vadd.s32 %v1402, %v1396
        %v1404 = vadd.s32 %v1402, %v1397
        %v1405 = vadd.s32 %v1402, %v1398
        %v1406 = vadd.s32 %v1402, %v1399
        %v1407 = vadd.s32 %v1402, %v1400
        %v1408 = vadd.s32 %v1402, %v1401
        %vm1409 = vcmp.lt.s32.totalorder %v1403, 64
        %vm1410 = vcmp.lt.s32.totalorder %v1404, 64
        %vm1411 = vcmp.lt.s32.totalorder %v1405, 64
        %vm1412 = vcmp.lt.s32.totalorder %v1406, 64
        %vm1413 = vcmp.lt.s32.totalorder %v1407, 64
        %vm1414 = vcmp.lt.s32.totalorder %v1408, 64
        %v1415 = vsel %vm1409, 1, 0
        %v1416 = vsel %vm1410, 1, 0
        %v1417 = vsel %vm1411, 1, 0
        %v1418 = vsel %vm1412, 1, 0
        %v1419 = vsel %vm1413, 1, 0
        %v1420 = vsel %vm1414, 1, 0
        %vm1421 = vcmp.eq.s32.totalorder %v1415, 1
        %vm1422 = vcmp.eq.s32.totalorder %v1416, 1
        %vm1423 = vcmp.eq.s32.totalorder %v1417, 1
        %vm1424 = vcmp.eq.s32.totalorder %v1418, 1
        %vm1425 = vcmp.eq.s32.totalorder %v1419, 1
        %vm1426 = vcmp.eq.s32.totalorder %v1420, 1
        %v1427 = vsel %vm1421, %v1053, -inf
        %v1428 = vsel %vm1421, %v1055, -inf
        %v1429 = vsel %vm1421, %v1154, -inf
        %v1430 = vsel %vm1421, %v1156, -inf
        %v1431 = vsel %vm1421, %v1255, -inf
        %v1432 = vsel %vm1421, %v1257, -inf
        %v1433 = vsel %vm1421, %v1356, -inf
        %v1434 = vsel %vm1421, %v1358, -inf
        %v1435 = vsel %vm1422, %v1059, -inf
        %v1436 = vsel %vm1422, %v1061, -inf
        %v1437 = vsel %vm1422, %v1160, -inf
        %v1438 = vsel %vm1422, %v1162, -inf
        %v1439 = vsel %vm1422, %v1261, -inf
        %v1440 = vsel %vm1422, %v1263, -inf
        %v1441 = vsel %vm1422, %v1362, -inf
        %v1442 = vsel %vm1422, %v1364, -inf
        %v1443 = vsel %vm1423, %v1065, -inf
        %v1444 = vsel %vm1423, %v1067, -inf
        %v1445 = vsel %vm1423, %v1166, -inf
        %v1446 = vsel %vm1423, %v1168, -inf
        %v1447 = vsel %vm1423, %v1267, -inf
        %v1448 = vsel %vm1423, %v1269, -inf
        %v1449 = vsel %vm1423, %v1368, -inf
        %v1450 = vsel %vm1423, %v1370, -inf
        %v1451 = vsel %vm1424, %v1071, -inf
        %v1452 = vsel %vm1424, %v1073, -inf
        %v1453 = vsel %vm1424, %v1172, -inf
        %v1454 = vsel %vm1424, %v1174, -inf
        %v1455 = vsel %vm1424, %v1273, -inf
        %v1456 = vsel %vm1424, %v1275, -inf
        %v1457 = vsel %vm1424, %v1374, -inf
        %v1458 = vsel %vm1424, %v1376, -inf
        %v1459 = vsel %vm1425, %v1077, -inf
        %v1460 = vsel %vm1425, %v1079, -inf
        %v1461 = vsel %vm1425, %v1178, -inf
        %v1462 = vsel %vm1425, %v1180, -inf
        %v1463 = vsel %vm1425, %v1279, -inf
        %v1464 = vsel %vm1425, %v1281, -inf
        %v1465 = vsel %vm1425, %v1380, -inf
        %v1466 = vsel %vm1425, %v1382, -inf
        %v1467 = vsel %vm1426, %v1083, -inf
        %v1468 = vsel %vm1426, %v1085, -inf
        %v1469 = vsel %vm1426, %v1184, -inf
        %v1470 = vsel %vm1426, %v1186, -inf
        %v1471 = vsel %vm1426, %v1285, -inf
        %v1472 = vsel %vm1426, %v1287, -inf
        %v1473 = vsel %vm1426, %v1386, -inf
        %v1474 = vsel %vm1426, %v1388, -inf
        %v1475 = vld [vmem:[%s395] sm:$0xff]
        %v1476 = vmax.f32 %v1427, %v1435
        %v1477 = vmax.f32 %v1476, %v1443
        %v1478 = vmax.f32 %v1477, %v1451
        %v1479 = vmax.f32 %v1478, %v1459
        %v1480 = vmax.f32 %v1479, %v1467
        %v1481 = vrot.slane %v1480, 4
        %v1482 = vmax.f32 %v1480, %v1481
        %v1483 = vrot.slane %v1482, 2
        %v1484 = vmax.f32 %v1482, %v1483
        %v1485 = vrot.slane %v1484, 1
        %v1486 = vmax.f32 %v1484, %v1485
        %v1487 = vmax.f32 %v1428, %v1436
        %v1488 = vmax.f32 %v1487, %v1444
        %v1489 = vmax.f32 %v1488, %v1452
        %v1490 = vmax.f32 %v1489, %v1460
        %v1491 = vmax.f32 %v1490, %v1468
        %v1492 = vrot.slane %v1491, 4
        %v1493 = vmax.f32 %v1491, %v1492
        %v1494 = vrot.slane %v1493, 2
        %v1495 = vmax.f32 %v1493, %v1494
        %v1496 = vrot.slane %v1495, 1
        %v1497 = vmax.f32 %v1495, %v1496
        %v1498 = vmax.f32 %v1429, %v1437
        %v1499 = vmax.f32 %v1498, %v1445
        %v1500 = vmax.f32 %v1499, %v1453
        %v1501 = vmax.f32 %v1500, %v1461
        %v1502 = vmax.f32 %v1501, %v1469
        %v1503 = vrot.slane %v1502, 4
        %v1504 = vmax.f32 %v1502, %v1503
        %v1505 = vrot.slane %v1504, 2
        %v1506 = vmax.f32 %v1504, %v1505
        %v1507 = vrot.slane %v1506, 1
        %v1508 = vmax.f32 %v1506, %v1507
        %v1509 = vmax.f32 %v1430, %v1438
        %v1510 = vmax.f32 %v1509, %v1446
        %v1511 = vmax.f32 %v1510, %v1454
        %v1512 = vmax.f32 %v1511, %v1462
        %v1513 = vmax.f32 %v1512, %v1470
        %v1514 = vrot.slane %v1513, 4
        %v1515 = vmax.f32 %v1513, %v1514
        %v1516 = vrot.slane %v1515, 2
        %v1517 = vmax.f32 %v1515, %v1516
        %v1518 = vrot.slane %v1517, 1
        %v1519 = vmax.f32 %v1517, %v1518
        %v1520 = vmax.f32 %v1431, %v1439
        %v1521 = vmax.f32 %v1520, %v1447
        %v1522 = vmax.f32 %v1521, %v1455
        %v1523 = vmax.f32 %v1522, %v1463
        %v1524 = vmax.f32 %v1523, %v1471
        %v1525 = vrot.slane %v1524, 4
        %v1526 = vmax.f32 %v1524, %v1525
        %v1527 = vrot.slane %v1526, 2
        %v1528 = vmax.f32 %v1526, %v1527
        %v1529 = vrot.slane %v1528, 1
        %v1530 = vmax.f32 %v1528, %v1529
        %v1531 = vmax.f32 %v1432, %v1440
        %v1532 = vmax.f32 %v1531, %v1448
        %v1533 = vmax.f32 %v1532, %v1456
        %v1534 = vmax.f32 %v1533, %v1464
        %v1535 = vmax.f32 %v1534, %v1472
        %v1536 = vrot.slane %v1535, 4
        %v1537 = vmax.f32 %v1535, %v1536
        %v1538 = vrot.slane %v1537, 2
        %v1539 = vmax.f32 %v1537, %v1538
        %v1540 = vrot.slane %v1539, 1
        %v1541 = vmax.f32 %v1539, %v1540
        %v1542 = vmax.f32 %v1433, %v1441
        %v1543 = vmax.f32 %v1542, %v1449
        %v1544 = vmax.f32 %v1543, %v1457
        %v1545 = vmax.f32 %v1544, %v1465
        %v1546 = vmax.f32 %v1545, %v1473
        %v1547 = vrot.slane %v1546, 4
        %v1548 = vmax.f32 %v1546, %v1547
        %v1549 = vrot.slane %v1548, 2
        %v1550 = vmax.f32 %v1548, %v1549
        %v1551 = vrot.slane %v1550, 1
        %v1552 = vmax.f32 %v1550, %v1551
        %v1553 = vmax.f32 %v1434, %v1442
        %v1554 = vmax.f32 %v1553, %v1450
        %v1555 = vmax.f32 %v1554, %v1458
        %v1556 = vmax.f32 %v1555, %v1466
        %v1557 = vmax.f32 %v1556, %v1474
        %v1558 = vrot.slane %v1557, 4
        %v1559 = vmax.f32 %v1557, %v1558
        %v1560 = vrot.slane %v1559, 2
        %v1561 = vmax.f32 %v1559, %v1560
        %v1562 = vrot.slane %v1561, 1
        %v1563 = vmax.f32 %v1561, %v1562
        %v1572 = vcombine.low %v1486, %v1497
        %v1573 = vcombine.low %v1508, %v1519
        %v1574 = vcombine.low %v1530, %v1541
        %v1575 = vcombine.low %v1552, %v1563
        %v1577 = vunpack.c.l.s4 1966171168
        %v1578 = vunpack.c.0.s8 %v1577
        %v1579 = vlaneseq
        %v1580 = vshrl.u32 %v1579, 7
        %v1581 = vsub.s32 %v1578, %v1580
        %v1582 = vrot.slane %v1572, %v1581
        %v1584 = vunpack.c.l.s4 1966171168
        %v1585 = vunpack.c.0.s8 %v1584
        %v1586 = vlaneseq
        %v1587 = vshrl.u32 %v1586, 7
        %v1588 = vsub.s32 %v1585, %v1587
        %v1589 = vrot.slane %v1573, %v1588
        %v1591 = vunpack.c.l.s4 1966171168
        %v1592 = vunpack.c.0.s8 %v1591
        %v1593 = vlaneseq
        %v1594 = vshrl.u32 %v1593, 7
        %v1595 = vsub.s32 %v1592, %v1594
        %v1596 = vrot.slane %v1574, %v1595
        %v1598 = vunpack.c.l.s4 1966171168
        %v1599 = vunpack.c.0.s8 %v1598
        %v1600 = vlaneseq
        %v1601 = vshrl.u32 %v1600, 7
        %v1602 = vsub.s32 %v1599, %v1601
        %v1603 = vrot.slane %v1575, %v1602
        %v1604 = vcombine.low %v1582, %v1589
        %v1605 = vcombine.low %v1596, %v1603
        %v1607 = vunpack.c.l.s4 1966171168
        %v1608 = vunpack.c.0.s8 %v1607
        %v1609 = vlaneseq
        %v1610 = vshrl.u32 %v1609, 7
        %v1611 = vsub.s32 %v1608, %v1610
        %v1612 = vrot.slane %v1604, %v1611
        %v1614 = vunpack.c.l.s4 1966171168
        %v1615 = vunpack.c.0.s8 %v1614
        %v1616 = vlaneseq
        %v1617 = vshrl.u32 %v1616, 7
        %v1618 = vsub.s32 %v1615, %v1617
        %v1619 = vrot.slane %v1605, %v1618
        %v1620 = vcombine.low %v1612, %v1619
        %v1622 = vmax.f32 %v1475, %v1620
        %1623 = vst [vmem:[%s395] sm:$0xff] %v1622
      $region64: #{pointnet_densecls.4} parent=55 // pred_fallthru
        _
      %p1624 = scmp.ne.s32.totalorder %s25, 1
      // Predicated region
      $region65: #{pointnet_densecls.4} parent=55 // pred_check
        %p1625 = pneg %p1624
      $region66: #{pointnet_densecls.4} parent=55 // pred_check_branch
        %1627 = sbr.rel (%p1625) target = $region68
      $region67: #{pointnet_densecls.4} parent=55 // pred_region
        %v1628 = vld [vmem:[%s395] sm:$0xff]
        %v1629 = vmax.f32 %v1053, %v1059
        %v1630 = vmax.f32 %v1629, %v1065
        %v1631 = vmax.f32 %v1630, %v1071
        %v1632 = vmax.f32 %v1631, %v1077
        %v1633 = vmax.f32 %v1632, %v1083
        %v1634 = vrot.slane %v1633, 4
        %v1635 = vmax.f32 %v1633, %v1634
        %v1636 = vrot.slane %v1635, 2
        %v1637 = vmax.f32 %v1635, %v1636
        %v1638 = vrot.slane %v1637, 1
        %v1639 = vmax.f32 %v1637, %v1638
        %v1640 = vmax.f32 %v1055, %v1061
        %v1641 = vmax.f32 %v1640, %v1067
        %v1642 = vmax.f32 %v1641, %v1073
        %v1643 = vmax.f32 %v1642, %v1079
        %v1644 = vmax.f32 %v1643, %v1085
        %v1645 = vrot.slane %v1644, 4
        %v1646 = vmax.f32 %v1644, %v1645
        %v1647 = vrot.slane %v1646, 2
        %v1648 = vmax.f32 %v1646, %v1647
        %v1649 = vrot.slane %v1648, 1
        %v1650 = vmax.f32 %v1648, %v1649
        %v1651 = vmax.f32 %v1154, %v1160
        %v1652 = vmax.f32 %v1651, %v1166
        %v1653 = vmax.f32 %v1652, %v1172
        %v1654 = vmax.f32 %v1653, %v1178
        %v1655 = vmax.f32 %v1654, %v1184
        %v1656 = vrot.slane %v1655, 4
        %v1657 = vmax.f32 %v1655, %v1656
        %v1658 = vrot.slane %v1657, 2
        %v1659 = vmax.f32 %v1657, %v1658
        %v1660 = vrot.slane %v1659, 1
        %v1661 = vmax.f32 %v1659, %v1660
        %v1662 = vmax.f32 %v1156, %v1162
        %v1663 = vmax.f32 %v1662, %v1168
        %v1664 = vmax.f32 %v1663, %v1174
        %v1665 = vmax.f32 %v1664, %v1180
        %v1666 = vmax.f32 %v1665, %v1186
        %v1667 = vrot.slane %v1666, 4
        %v1668 = vmax.f32 %v1666, %v1667
        %v1669 = vrot.slane %v1668, 2
        %v1670 = vmax.f32 %v1668, %v1669
        %v1671 = vrot.slane %v1670, 1
        %v1672 = vmax.f32 %v1670, %v1671
        %v1673 = vmax.f32 %v1255, %v1261
        %v1674 = vmax.f32 %v1673, %v1267
        %v1675 = vmax.f32 %v1674, %v1273
        %v1676 = vmax.f32 %v1675, %v1279
        %v1677 = vmax.f32 %v1676, %v1285
        %v1678 = vrot.slane %v1677, 4
        %v1679 = vmax.f32 %v1677, %v1678
        %v1680 = vrot.slane %v1679, 2
        %v1681 = vmax.f32 %v1679, %v1680
        %v1682 = vrot.slane %v1681, 1
        %v1683 = vmax.f32 %v1681, %v1682
        %v1684 = vmax.f32 %v1257, %v1263
        %v1685 = vmax.f32 %v1684, %v1269
        %v1686 = vmax.f32 %v1685, %v1275
        %v1687 = vmax.f32 %v1686, %v1281
        %v1688 = vmax.f32 %v1687, %v1287
        %v1689 = vrot.slane %v1688, 4
        %v1690 = vmax.f32 %v1688, %v1689
        %v1691 = vrot.slane %v1690, 2
        %v1692 = vmax.f32 %v1690, %v1691
        %v1693 = vrot.slane %v1692, 1
        %v1694 = vmax.f32 %v1692, %v1693
        %v1695 = vmax.f32 %v1356, %v1362
        %v1696 = vmax.f32 %v1695, %v1368
        %v1697 = vmax.f32 %v1696, %v1374
        %v1698 = vmax.f32 %v1697, %v1380
        %v1699 = vmax.f32 %v1698, %v1386
        %v1700 = vrot.slane %v1699, 4
        %v1701 = vmax.f32 %v1699, %v1700
        %v1702 = vrot.slane %v1701, 2
        %v1703 = vmax.f32 %v1701, %v1702
        %v1704 = vrot.slane %v1703, 1
        %v1705 = vmax.f32 %v1703, %v1704
        %v1706 = vmax.f32 %v1358, %v1364
        %v1707 = vmax.f32 %v1706, %v1370
        %v1708 = vmax.f32 %v1707, %v1376
        %v1709 = vmax.f32 %v1708, %v1382
        %v1710 = vmax.f32 %v1709, %v1388
        %v1711 = vrot.slane %v1710, 4
        %v1712 = vmax.f32 %v1710, %v1711
        %v1713 = vrot.slane %v1712, 2
        %v1714 = vmax.f32 %v1712, %v1713
        %v1715 = vrot.slane %v1714, 1
        %v1716 = vmax.f32 %v1714, %v1715
        %v1725 = vcombine.low %v1639, %v1650
        %v1726 = vcombine.low %v1661, %v1672
        %v1727 = vcombine.low %v1683, %v1694
        %v1728 = vcombine.low %v1705, %v1716
        %v1730 = vunpack.c.l.s4 1966171168
        %v1731 = vunpack.c.0.s8 %v1730
        %v1732 = vlaneseq
        %v1733 = vshrl.u32 %v1732, 7
        %v1734 = vsub.s32 %v1731, %v1733
        %v1735 = vrot.slane %v1725, %v1734
        %v1737 = vunpack.c.l.s4 1966171168
        %v1738 = vunpack.c.0.s8 %v1737
        %v1739 = vlaneseq
        %v1740 = vshrl.u32 %v1739, 7
        %v1741 = vsub.s32 %v1738, %v1740
        %v1742 = vrot.slane %v1726, %v1741
        %v1744 = vunpack.c.l.s4 1966171168
        %v1745 = vunpack.c.0.s8 %v1744
        %v1746 = vlaneseq
        %v1747 = vshrl.u32 %v1746, 7
        %v1748 = vsub.s32 %v1745, %v1747
        %v1749 = vrot.slane %v1727, %v1748
        %v1751 = vunpack.c.l.s4 1966171168
        %v1752 = vunpack.c.0.s8 %v1751
        %v1753 = vlaneseq
        %v1754 = vshrl.u32 %v1753, 7
        %v1755 = vsub.s32 %v1752, %v1754
        %v1756 = vrot.slane %v1728, %v1755
        %v1757 = vcombine.low %v1735, %v1742
        %v1758 = vcombine.low %v1749, %v1756
        %v1760 = vunpack.c.l.s4 1966171168
        %v1761 = vunpack.c.0.s8 %v1760
        %v1762 = vlaneseq
        %v1763 = vshrl.u32 %v1762, 7
        %v1764 = vsub.s32 %v1761, %v1763
        %v1765 = vrot.slane %v1757, %v1764
        %v1767 = vunpack.c.l.s4 1966171168
        %v1768 = vunpack.c.0.s8 %v1767
        %v1769 = vlaneseq
        %v1770 = vshrl.u32 %v1769, 7
        %v1771 = vsub.s32 %v1768, %v1770
        %v1772 = vrot.slane %v1758, %v1771
        %v1773 = vcombine.low %v1765, %v1772
        %v1775 = vmax.f32 %v1628, %v1773
        %1776 = vst [vmem:[%s395] sm:$0xff] %v1775
      $region68: #{pointnet_densecls.4} parent=55 // pred_fallthru
        _
      %p1777 = scmp.lt.s32.totalorder %s24, 1
      %s1778 = scalar_select %p1777, %s24, 1
      %s1779 = smul.addr %s1778, 8
      %s1780 = scalar_lea.vmem %s9, %s1779
      // Predicated region
      $region69: #{pointnet_densecls.4} parent=55 // pred_check
        %p1781 = pneg %p251
      $region70: #{pointnet_densecls.4} parent=55 // pred_check_branch
        %1783 = sbr.rel (%p1781) target = $region72
      $region71: #{pointnet_densecls.4} parent=55 // pred_region
        _
      $region72: #{pointnet_densecls.4} parent=55 // pred_fallthru
        _
    $region56: #{pointnet_densecls.4} parent=5 // pred_fallthru
      _
    %p1784 = scmp.le.s32.totalorder 2, %s15
    // Predicated region
    $region73: #{pointnet_densecls.4} parent=5 // pred_check
      %p1785 = pneg %p1784
    $region74: #{pointnet_densecls.4} parent=5 // pred_check_branch
      %1787 = sbr.rel (%p1785) target = $region76
    $region75: #{pointnet_densecls.4} parent=5 // pred_region
      %s1788 = ssub.s32 %s15, 2
      // Predicated region
      $region77: #{pointnet_densecls.4} parent=75 // pred_check
        %p1789 = pneg %p257
      $region78: #{pointnet_densecls.4} parent=75 // pred_check_branch
        %1791 = sbr.rel (%p1789) target = $region80
      $region79: #{pointnet_densecls.4} parent=75 // pred_region
        %p1792 = scmp.lt.s32.totalorder %s26, 1
        %s1793 = scalar_select %p1792, %s26, 1
        %s1794 = smul.addr %s1793, 8
        %s1795 = scalar_lea.vmem %s9, %s1794
      $region80: #{pointnet_densecls.4} parent=75 // pred_fallthru
        _
    $region76: #{pointnet_densecls.4} parent=5 // pred_fallthru
      _
  $region6: #{pointnet_densecls.4} parent=0 // loop_footer
    %s19 = sadd.s32 1, %s15
  $region7: #{pointnet_densecls.4} parent=0 // loop_footer_branch
    %14 = sbr.rel target = $region3
  $region8: #{pointnet_densecls.4} parent=0 // loop_exit
    _

// kernel: pointnet_densecls.5
$region0: #{pointnet_densecls.5}
  #allocation0 [shape = 'u32[]', space=smem, size = 0x4, offset = 0x4, fixed_abs, tag = 'smem constant byte address 0x4 - core index']
  #allocation1 [shape = 'u32[144,128]{1,0:T(1,128)}', space=vmem, size = 0x12000, scoped, tag = 'internal scratch']
  %s0 = inlined_call_operand.vmem [shape: f32[2,64,3], index: 0, kind: input, shape index: {}]
  %s1 = inlined_call_operand.vmem [shape: f32[2,3,64], index: 1, kind: input, shape index: {}]
  %s2 = inlined_call_operand.vmem [shape: f32[1,64], index: 2, kind: input, shape index: {}]
  %s3 = inlined_call_operand.vmem [shape: f32[64,64], index: 3, kind: input, shape index: {}]
  %s4 = inlined_call_operand.vmem [shape: f32[1,64], index: 4, kind: input, shape index: {}]
  %s5 = inlined_call_operand.vmem [shape: f32[2,1,512], index: 5, kind: input, shape index: {}]
  %s6 = inlined_call_operand.vmem [shape: f32[64,512], index: 6, kind: input, shape index: {}]
  %s7 = inlined_call_operand.vmem [shape: f32[512,256], index: 7, kind: input, shape index: {}]
  %s8 = inlined_call_operand.vmem [shape: f32[1,256], index: 8, kind: input, shape index: {}]
  %s9 = inlined_call_operand.vmem [shape: f32[256,128], index: 9, kind: input, shape index: {}]
  %s10 = inlined_call_operand.vmem [shape: f32[1,128], index: 10, kind: input, shape index: {}]
  %s11 = inlined_call_operand.vmem [shape: f32[128,2], index: 11, kind: input, shape index: {}]
  %s12 = inlined_call_operand.vmem [shape: f32[1,2], index: 12, kind: input, shape index: {}]
  %s13 = inlined_call_operand.vmem [shape: f32[2,64,2], index: 13, kind: output, shape index: {}]
  %s14 = sld [smem:[#allocation0]]
  $region133: #{pointnet_densecls.5} parent=0
    _
  %s16 = ssub.s32 1, %s14
  %s17 = scalar_select 0, %s16, %s14
  $region1: #{pointnet_densecls.5} parent=0
    #allocation2 [shape = 'u8[49152]{0}', space=vmem, size = 0xc000, scoped, tag = 'output window, operand 0']
    loop: start=0, step=1, limit=6
    $region2: #{pointnet_densecls.5} parent=1 // loop_pre_header
      _
    $region3: #{pointnet_densecls.5} parent=1 // loop_header
      %s19 = sphi 0, %s23
      %p20 = scmp.ge.s32.totalorder %s19, 6
      %s26 = sphi 0, %s38
      %s27 = sphi 0, %s34
      %s28 = sphi 0, %s26
      %s29 = sphi 0, %s27
      %s30 = sphi 0, %s28
      %s31 = sphi 0, %s29
      %s43 = sphi 0, %s45
      %s46 = sphi 0, %s43
      %s47 = sphi 0, %s46
      %s63 = sphi 0, %s47
      %s69 = sphi 0, %s71
      %s72 = sphi 0, %s69
      %s73 = sphi 0, %s72
      %s89 = sphi 0, %s73
      %s93 = sphi 0, %s93
      %s95 = sphi 0, %s93
      %s96 = sphi 0, %s95
      %s110 = sphi 0, %s96
      %s114 = sphi 0, %s114
      %s116 = sphi 0, %s114
      %s117 = sphi 0, %s116
      %s131 = sphi 0, %s117
      %s135 = sphi 0, %s135
      %s137 = sphi 0, %s135
      %s138 = sphi 0, %s137
      %s152 = sphi 0, %s138
      %s158 = sphi 0, %s160
      %s161 = sphi 0, %s158
      %s162 = sphi 0, %s161
      %s178 = sphi 0, %s162
      %s182 = sphi 0, %s182
      %s184 = sphi 0, %s182
      %s185 = sphi 0, %s184
      %s199 = sphi 0, %s185
      %s203 = sphi 0, %s203
      %s205 = sphi 0, %s203
      %s206 = sphi 0, %s205
      %s220 = sphi 0, %s206
      %s224 = sphi 0, %s224
      %s226 = sphi 0, %s224
      %s227 = sphi 0, %s226
      %s241 = sphi 0, %s227
      %s245 = sphi 0, %s245
      %s247 = sphi 0, %s245
      %s248 = sphi 0, %s247
      %s262 = sphi 0, %s248
      %s266 = sphi 0, %s266
      %s268 = sphi 0, %s266
      %s269 = sphi 0, %s268
      %s283 = sphi 0, %s269
      %s287 = sphi 0, %s287
      %s289 = sphi 0, %s287
      %s290 = sphi 0, %s289
      %s304 = sphi 0, %s290
      %s308 = sphi 0, %s308
      %s310 = sphi 0, %s308
      %s311 = sphi 0, %s310
      %s325 = sphi 0, %s311
      %s333 = sphi 0, %s335
      %s336 = sphi 0, %s333
      %s337 = sphi 0, %s336
      %s353 = sphi 0, %s337
    $region4: #{pointnet_densecls.5} parent=1 // loop_header_branch
      %22 = sbr.rel (%p20) target = $region8
    $region5: #{pointnet_densecls.5} parent=1 // loop_body
      %s24 = ssub.s32 %s19, 1
      %s25 = ssub.s32 %s19, 2
      %s32 = sadd.s32 1, %s27
      %p33 = scmp.ge.s32.totalorder %s32, 2
      %s34 = scalar_select %p33, 0, %s32
      %s35 = sadd.s32 1, %s26
      %s36 = scalar_select %p33, %s35, %s26
      %p37 = scmp.ge.s32.totalorder %s36, 2
      %s38 = scalar_select %p37, 0, %s36
      %s39 = ssub.s32 %s26, %s38
      %s40 = ssub.s32 %s27, %s34
      %s41 = sor.u32 %s39, %s40
      %p42 = scmp.eq.s32.totalorder %s41, 0
      %s44 = sadd.s32 %s43, 1
      %s45 = scalar_select %p42, %s43, %s44
      %p48 = pneg %p42
      %p49 = scmp.eq.s32.totalorder %s19, 3
      %p50 = por %p48, %p49
      %p51 = scmp.ne.s32.totalorder %s43, %s46
      %p52 = scmp.eq.s32.totalorder %s19, 0
      %p53 = por %p51, %p52
      %p54 = scmp.ne.s32.totalorder %s43, %s46
      %p55 = scmp.eq.s32.totalorder %s24, 3
      %p56 = por %p54, %p55
      %p57 = scmp.ne.s32.totalorder %s46, %s47
      %p58 = scmp.eq.s32.totalorder %s24, 0
      %p59 = por %p57, %p58
      %p60 = scmp.ne.s32.totalorder %s46, %s47
      %p61 = scmp.eq.s32.totalorder %s25, 3
      %p62 = por %p60, %p61
      %p64 = scmp.ne.s32.totalorder %s47, %s63
      %p65 = scmp.eq.s32.totalorder %s25, 0
      %p66 = por %p64, %p65
      %s67 = ssub.s32 %s26, %s38
      %p68 = scmp.eq.s32.totalorder %s67, 0
      %s70 = sadd.s32 %s69, 1
      %s71 = scalar_select %p68, %s69, %s70
      %p74 = pneg %p68
      %p75 = scmp.eq.s32.totalorder %s19, 3
      %p76 = por %p74, %p75
      %p77 = scmp.ne.s32.totalorder %s69, %s72
      %p78 = scmp.eq.s32.totalorder %s19, 0
      %p79 = por %p77, %p78
      %p80 = scmp.ne.s32.totalorder %s69, %s72
      %p81 = scmp.eq.s32.totalorder %s24, 3
      %p82 = por %p80, %p81
      %p83 = scmp.ne.s32.totalorder %s72, %s73
      %p84 = scmp.eq.s32.totalorder %s24, 0
      %p85 = por %p83, %p84
      %p86 = scmp.ne.s32.totalorder %s72, %s73
      %p87 = scmp.eq.s32.totalorder %s25, 3
      %p88 = por %p86, %p87
      %p90 = scmp.ne.s32.totalorder %s73, %s89
      %p91 = scmp.eq.s32.totalorder %s25, 0
      %p92 = por %p90, %p91
      %s94 = sadd.s32 %s93, 1
      %p97 = scmp.eq.s32.totalorder %s19, 3
      %p98 = scmp.ne.s32.totalorder %s93, %s95
      %p99 = scmp.eq.s32.totalorder %s19, 0
      %p100 = por %p98, %p99
      %p101 = scmp.ne.s32.totalorder %s93, %s95
      %p102 = scmp.eq.s32.totalorder %s24, 3
      %p103 = por %p101, %p102
      %p104 = scmp.ne.s32.totalorder %s95, %s96
      %p105 = scmp.eq.s32.totalorder %s24, 0
      %p106 = por %p104, %p105
      %p107 = scmp.ne.s32.totalorder %s95, %s96
      %p108 = scmp.eq.s32.totalorder %s25, 3
      %p109 = por %p107, %p108
      %p111 = scmp.ne.s32.totalorder %s96, %s110
      %p112 = scmp.eq.s32.totalorder %s25, 0
      %p113 = por %p111, %p112
      %s115 = sadd.s32 %s114, 1
      %p118 = scmp.eq.s32.totalorder %s19, 3
      %p119 = scmp.ne.s32.totalorder %s114, %s116
      %p120 = scmp.eq.s32.totalorder %s19, 0
      %p121 = por %p119, %p120
      %p122 = scmp.ne.s32.totalorder %s114, %s116
      %p123 = scmp.eq.s32.totalorder %s24, 3
      %p124 = por %p122, %p123
      %p125 = scmp.ne.s32.totalorder %s116, %s117
      %p126 = scmp.eq.s32.totalorder %s24, 0
      %p127 = por %p125, %p126
      %p128 = scmp.ne.s32.totalorder %s116, %s117
      %p129 = scmp.eq.s32.totalorder %s25, 3
      %p130 = por %p128, %p129
      %p132 = scmp.ne.s32.totalorder %s117, %s131
      %p133 = scmp.eq.s32.totalorder %s25, 0
      %p134 = por %p132, %p133
      %s136 = sadd.s32 %s135, 1
      %p139 = scmp.eq.s32.totalorder %s19, 3
      %p140 = scmp.ne.s32.totalorder %s135, %s137
      %p141 = scmp.eq.s32.totalorder %s19, 0
      %p142 = por %p140, %p141
      %p143 = scmp.ne.s32.totalorder %s135, %s137
      %p144 = scmp.eq.s32.totalorder %s24, 3
      %p145 = por %p143, %p144
      %p146 = scmp.ne.s32.totalorder %s137, %s138
      %p147 = scmp.eq.s32.totalorder %s24, 0
      %p148 = por %p146, %p147
      %p149 = scmp.ne.s32.totalorder %s137, %s138
      %p150 = scmp.eq.s32.totalorder %s25, 3
      %p151 = por %p149, %p150
      %p153 = scmp.ne.s32.totalorder %s138, %s152
      %p154 = scmp.eq.s32.totalorder %s25, 0
      %p155 = por %p153, %p154
      %s156 = ssub.s32 %s26, %s38
      %p157 = scmp.eq.s32.totalorder %s156, 0
      %s159 = sadd.s32 %s158, 1
      %s160 = scalar_select %p157, %s158, %s159
      %p163 = pneg %p157
      %p164 = scmp.eq.s32.totalorder %s19, 3
      %p165 = por %p163, %p164
      %p166 = scmp.ne.s32.totalorder %s158, %s161
      %p167 = scmp.eq.s32.totalorder %s19, 0
      %p168 = por %p166, %p167
      %p169 = scmp.ne.s32.totalorder %s158, %s161
      %p170 = scmp.eq.s32.totalorder %s24, 3
      %p171 = por %p169, %p170
      %p172 = scmp.ne.s32.totalorder %s161, %s162
      %p173 = scmp.eq.s32.totalorder %s24, 0
      %p174 = por %p172, %p173
      %p175 = scmp.ne.s32.totalorder %s161, %s162
      %p176 = scmp.eq.s32.totalorder %s25, 3
      %p177 = por %p175, %p176
      %p179 = scmp.ne.s32.totalorder %s162, %s178
      %p180 = scmp.eq.s32.totalorder %s25, 0
      %p181 = por %p179, %p180
      %s183 = sadd.s32 %s182, 1
      %p186 = scmp.eq.s32.totalorder %s19, 3
      %p187 = scmp.ne.s32.totalorder %s182, %s184
      %p188 = scmp.eq.s32.totalorder %s19, 0
      %p189 = por %p187, %p188
      %p190 = scmp.ne.s32.totalorder %s182, %s184
      %p191 = scmp.eq.s32.totalorder %s24, 3
      %p192 = por %p190, %p191
      %p193 = scmp.ne.s32.totalorder %s184, %s185
      %p194 = scmp.eq.s32.totalorder %s24, 0
      %p195 = por %p193, %p194
      %p196 = scmp.ne.s32.totalorder %s184, %s185
      %p197 = scmp.eq.s32.totalorder %s25, 3
      %p198 = por %p196, %p197
      %p200 = scmp.ne.s32.totalorder %s185, %s199
      %p201 = scmp.eq.s32.totalorder %s25, 0
      %p202 = por %p200, %p201
      %s204 = sadd.s32 %s203, 1
      %p207 = scmp.eq.s32.totalorder %s19, 3
      %p208 = scmp.ne.s32.totalorder %s203, %s205
      %p209 = scmp.eq.s32.totalorder %s19, 0
      %p210 = por %p208, %p209
      %p211 = scmp.ne.s32.totalorder %s203, %s205
      %p212 = scmp.eq.s32.totalorder %s24, 3
      %p213 = por %p211, %p212
      %p214 = scmp.ne.s32.totalorder %s205, %s206
      %p215 = scmp.eq.s32.totalorder %s24, 0
      %p216 = por %p214, %p215
      %p217 = scmp.ne.s32.totalorder %s205, %s206
      %p218 = scmp.eq.s32.totalorder %s25, 3
      %p219 = por %p217, %p218
      %p221 = scmp.ne.s32.totalorder %s206, %s220
      %p222 = scmp.eq.s32.totalorder %s25, 0
      %p223 = por %p221, %p222
      %s225 = sadd.s32 %s224, 1
      %p228 = scmp.eq.s32.totalorder %s19, 3
      %p229 = scmp.ne.s32.totalorder %s224, %s226
      %p230 = scmp.eq.s32.totalorder %s19, 0
      %p231 = por %p229, %p230
      %p232 = scmp.ne.s32.totalorder %s224, %s226
      %p233 = scmp.eq.s32.totalorder %s24, 3
      %p234 = por %p232, %p233
      %p235 = scmp.ne.s32.totalorder %s226, %s227
      %p236 = scmp.eq.s32.totalorder %s24, 0
      %p237 = por %p235, %p236
      %p238 = scmp.ne.s32.totalorder %s226, %s227
      %p239 = scmp.eq.s32.totalorder %s25, 3
      %p240 = por %p238, %p239
      %p242 = scmp.ne.s32.totalorder %s227, %s241
      %p243 = scmp.eq.s32.totalorder %s25, 0
      %p244 = por %p242, %p243
      %s246 = sadd.s32 %s245, 1
      %p249 = scmp.eq.s32.totalorder %s19, 3
      %p250 = scmp.ne.s32.totalorder %s245, %s247
      %p251 = scmp.eq.s32.totalorder %s19, 0
      %p252 = por %p250, %p251
      %p253 = scmp.ne.s32.totalorder %s245, %s247
      %p254 = scmp.eq.s32.totalorder %s24, 3
      %p255 = por %p253, %p254
      %p256 = scmp.ne.s32.totalorder %s247, %s248
      %p257 = scmp.eq.s32.totalorder %s24, 0
      %p258 = por %p256, %p257
      %p259 = scmp.ne.s32.totalorder %s247, %s248
      %p260 = scmp.eq.s32.totalorder %s25, 3
      %p261 = por %p259, %p260
      %p263 = scmp.ne.s32.totalorder %s248, %s262
      %p264 = scmp.eq.s32.totalorder %s25, 0
      %p265 = por %p263, %p264
      %s267 = sadd.s32 %s266, 1
      %p270 = scmp.eq.s32.totalorder %s19, 3
      %p271 = scmp.ne.s32.totalorder %s266, %s268
      %p272 = scmp.eq.s32.totalorder %s19, 0
      %p273 = por %p271, %p272
      %p274 = scmp.ne.s32.totalorder %s266, %s268
      %p275 = scmp.eq.s32.totalorder %s24, 3
      %p276 = por %p274, %p275
      %p277 = scmp.ne.s32.totalorder %s268, %s269
      %p278 = scmp.eq.s32.totalorder %s24, 0
      %p279 = por %p277, %p278
      %p280 = scmp.ne.s32.totalorder %s268, %s269
      %p281 = scmp.eq.s32.totalorder %s25, 3
      %p282 = por %p280, %p281
      %p284 = scmp.ne.s32.totalorder %s269, %s283
      %p285 = scmp.eq.s32.totalorder %s25, 0
      %p286 = por %p284, %p285
      %s288 = sadd.s32 %s287, 1
      %p291 = scmp.eq.s32.totalorder %s19, 3
      %p292 = scmp.ne.s32.totalorder %s287, %s289
      %p293 = scmp.eq.s32.totalorder %s19, 0
      %p294 = por %p292, %p293
      %p295 = scmp.ne.s32.totalorder %s287, %s289
      %p296 = scmp.eq.s32.totalorder %s24, 3
      %p297 = por %p295, %p296
      %p298 = scmp.ne.s32.totalorder %s289, %s290
      %p299 = scmp.eq.s32.totalorder %s24, 0
      %p300 = por %p298, %p299
      %p301 = scmp.ne.s32.totalorder %s289, %s290
      %p302 = scmp.eq.s32.totalorder %s25, 3
      %p303 = por %p301, %p302
      %p305 = scmp.ne.s32.totalorder %s290, %s304
      %p306 = scmp.eq.s32.totalorder %s25, 0
      %p307 = por %p305, %p306
      %s309 = sadd.s32 %s308, 1
      %p312 = scmp.eq.s32.totalorder %s19, 3
      %p313 = scmp.ne.s32.totalorder %s308, %s310
      %p314 = scmp.eq.s32.totalorder %s19, 0
      %p315 = por %p313, %p314
      %p316 = scmp.ne.s32.totalorder %s308, %s310
      %p317 = scmp.eq.s32.totalorder %s24, 3
      %p318 = por %p316, %p317
      %p319 = scmp.ne.s32.totalorder %s310, %s311
      %p320 = scmp.eq.s32.totalorder %s24, 0
      %p321 = por %p319, %p320
      %p322 = scmp.ne.s32.totalorder %s310, %s311
      %p323 = scmp.eq.s32.totalorder %s25, 3
      %p324 = por %p322, %p323
      %p326 = scmp.ne.s32.totalorder %s311, %s325
      %p327 = scmp.eq.s32.totalorder %s25, 0
      %p328 = por %p326, %p327
      %s329 = ssub.s32 %s26, %s38
      %s330 = ssub.s32 %s27, %s34
      %s331 = sor.u32 %s329, %s330
      %p332 = scmp.eq.s32.totalorder %s331, 0
      %s334 = sadd.s32 %s333, 1
      %s335 = scalar_select %p332, %s333, %s334
      %p338 = pneg %p332
      %p339 = scmp.eq.s32.totalorder %s19, 3
      %p340 = por %p338, %p339
      %p341 = scmp.ne.s32.totalorder %s333, %s336
      %p342 = scmp.eq.s32.totalorder %s19, 0
      %p343 = por %p341, %p342
      %p344 = scmp.ne.s32.totalorder %s333, %s336
      %p345 = scmp.eq.s32.totalorder %s24, 3
      %p346 = por %p344, %p345
      %p347 = scmp.ne.s32.totalorder %s336, %s337
      %p348 = scmp.eq.s32.totalorder %s24, 0
      %p349 = por %p347, %p348
      %p350 = scmp.ne.s32.totalorder %s336, %s337
      %p351 = scmp.eq.s32.totalorder %s25, 3
      %p352 = por %p350, %p351
      %p354 = scmp.ne.s32.totalorder %s337, %s353
      %p355 = scmp.eq.s32.totalorder %s25, 0
      %p356 = por %p354, %p355
      %p357 = scmp.le.s32.totalorder 1, %s19
      %p358 = scmp.lt.s32.totalorder %s19, 5
      %p359 = pnand %p357, %p358
      %p360 = pneg %p359
      // Predicated region
      $region9: #{pointnet_densecls.5} parent=5 // pred_check
        _
      $region10: #{pointnet_densecls.5} parent=5 // pred_check_branch
        %362 = sbr.rel (%p359) target = $region12
      $region11: #{pointnet_densecls.5} parent=5 // pred_region
        %s363 = ssub.s32 %s19, 1
        // Predicated region
        $region13: #{pointnet_densecls.5} parent=11 // pred_check
          %p364 = pneg %p106
        $region14: #{pointnet_densecls.5} parent=11 // pred_check_branch
          %366 = sbr.rel (%p364) target = $region16
        $region15: #{pointnet_densecls.5} parent=11 // pred_region
          _
        $region16: #{pointnet_densecls.5} parent=11 // pred_fallthru
          _
        // Predicated region
        $region17: #{pointnet_densecls.5} parent=11 // pred_check
          %p367 = pneg %p127
        $region18: #{pointnet_densecls.5} parent=11 // pred_check_branch
          %369 = sbr.rel (%p367) target = $region20
        $region19: #{pointnet_densecls.5} parent=11 // pred_region
          _
        $region20: #{pointnet_densecls.5} parent=11 // pred_fallthru
          _
        // Predicated region
        $region21: #{pointnet_densecls.5} parent=11 // pred_check
          %p370 = pneg %p148
        $region22: #{pointnet_densecls.5} parent=11 // pred_check_branch
          %372 = sbr.rel (%p370) target = $region24
        $region23: #{pointnet_densecls.5} parent=11 // pred_region
          _
        $region24: #{pointnet_densecls.5} parent=11 // pred_fallthru
          _
        // Predicated region
        $region25: #{pointnet_densecls.5} parent=11 // pred_check
          %p373 = pneg %p195
        $region26: #{pointnet_densecls.5} parent=11 // pred_check_branch
          %375 = sbr.rel (%p373) target = $region28
        $region27: #{pointnet_densecls.5} parent=11 // pred_region
          _
        $region28: #{pointnet_densecls.5} parent=11 // pred_fallthru
          _
        // Predicated region
        $region29: #{pointnet_densecls.5} parent=11 // pred_check
          %p376 = pneg %p216
        $region30: #{pointnet_densecls.5} parent=11 // pred_check_branch
          %378 = sbr.rel (%p376) target = $region32
        $region31: #{pointnet_densecls.5} parent=11 // pred_region
          _
        $region32: #{pointnet_densecls.5} parent=11 // pred_fallthru
          _
        // Predicated region
        $region33: #{pointnet_densecls.5} parent=11 // pred_check
          %p379 = pneg %p237
        $region34: #{pointnet_densecls.5} parent=11 // pred_check_branch
          %381 = sbr.rel (%p379) target = $region36
        $region35: #{pointnet_densecls.5} parent=11 // pred_region
          _
        $region36: #{pointnet_densecls.5} parent=11 // pred_fallthru
          _
        // Predicated region
        $region37: #{pointnet_densecls.5} parent=11 // pred_check
          %p382 = pneg %p258
        $region38: #{pointnet_densecls.5} parent=11 // pred_check_branch
          %384 = sbr.rel (%p382) target = $region40
        $region39: #{pointnet_densecls.5} parent=11 // pred_region
          _
        $region40: #{pointnet_densecls.5} parent=11 // pred_fallthru
          _
        // Predicated region
        $region41: #{pointnet_densecls.5} parent=11 // pred_check
          %p385 = pneg %p279
        $region42: #{pointnet_densecls.5} parent=11 // pred_check_branch
          %387 = sbr.rel (%p385) target = $region44
        $region43: #{pointnet_densecls.5} parent=11 // pred_region
          _
        $region44: #{pointnet_densecls.5} parent=11 // pred_fallthru
          _
        // Predicated region
        $region45: #{pointnet_densecls.5} parent=11 // pred_check
          %p388 = pneg %p300
        $region46: #{pointnet_densecls.5} parent=11 // pred_check_branch
          %390 = sbr.rel (%p388) target = $region48
        $region47: #{pointnet_densecls.5} parent=11 // pred_region
          _
        $region48: #{pointnet_densecls.5} parent=11 // pred_fallthru
          _
        // Predicated region
        $region49: #{pointnet_densecls.5} parent=11 // pred_check
          %p391 = pneg %p321
        $region50: #{pointnet_densecls.5} parent=11 // pred_check_branch
          %393 = sbr.rel (%p391) target = $region52
        $region51: #{pointnet_densecls.5} parent=11 // pred_region
          _
        $region52: #{pointnet_densecls.5} parent=11 // pred_fallthru
          _
      $region12: #{pointnet_densecls.5} parent=5 // pred_fallthru
        _
      %p394 = scmp.lt.s32.totalorder %s19, 4
      // Predicated region
      $region53: #{pointnet_densecls.5} parent=5 // pred_check
        %p395 = pneg %p394
      $region54: #{pointnet_densecls.5} parent=5 // pred_check_branch
        %397 = sbr.rel (%p395) target = $region56
      $region55: #{pointnet_densecls.5} parent=5 // pred_region
        // Predicated region
        $region57: #{pointnet_densecls.5} parent=55 // pred_check
          %p398 = pneg %p53
        $region58: #{pointnet_densecls.5} parent=55 // pred_check_branch
          %400 = sbr.rel (%p398) target = $region60
        $region59: #{pointnet_densecls.5} parent=55 // pred_region
          %s401 = smul.u32 6, %s27
          %s402 = ssub.s32 8, %s401
          %p403 = scmp.lt.s32.totalorder %s402, 6
          %s404 = scalar_select %p403, %s402, 6
          %s405 = smul.u32 128, %s404
          %p406 = scmp.lt.s32.totalorder %s26, 1
          %s407 = scalar_select %p406, %s26, 1
          %p408 = scmp.lt.s32.totalorder %s401, 7
          %s409 = scalar_select %p408, %s401, 7
          %s410 = smul.addr %s407, 8
          %s411 = sadd.s32 %s409, %s410
          %s412 = smul.addr %s411, 8
          %s413 = scalar_lea.vmem %s0, %s412
          %s414 = smul.u32 6, %s27
          %s415 = ssub.s32 8, %s414
          %p416 = scmp.lt.s32.totalorder %s415, 6
          %s417 = scalar_select %p416, %s415, 6
          %s418 = smul.u32 128, %s417
        $region60: #{pointnet_densecls.5} parent=55 // pred_fallthru
          _
        // Predicated region
        $region61: #{pointnet_densecls.5} parent=55 // pred_check
          %p419 = pneg %p79
        $region62: #{pointnet_densecls.5} parent=55 // pred_check_branch
          %421 = sbr.rel (%p419) target = $region64
        $region63: #{pointnet_densecls.5} parent=55 // pred_region
          %p422 = scmp.lt.s32.totalorder %s26, 1
          %s423 = scalar_select %p422, %s26, 1
          %s424 = smul.addr %s423, 4
          %s425 = scalar_lea.vmem %s1, %s424
        $region64: #{pointnet_densecls.5} parent=55 // pred_fallthru
          _
        // Predicated region
        $region65: #{pointnet_densecls.5} parent=55 // pred_check
          %p426 = pneg %p168
        $region66: #{pointnet_densecls.5} parent=55 // pred_check_branch
          %428 = sbr.rel (%p426) target = $region68
        $region67: #{pointnet_densecls.5} parent=55 // pred_region
          %p429 = scmp.lt.s32.totalorder %s26, 1
          %s430 = scalar_select %p429, %s26, 1
          %s431 = smul.addr %s430, 4
          %s432 = scalar_lea.vmem %s5, %s431
        $region68: #{pointnet_densecls.5} parent=55 // pred_fallthru
          _
      $region56: #{pointnet_densecls.5} parent=5 // pred_fallthru
        _
      %p433 = scmp.le.s32.totalorder 1, %s19
      %p434 = scmp.lt.s32.totalorder %s19, 5
      %p435 = pnand %p433, %p434
      %p436 = pneg %p435
      // Predicated region
      $region69: #{pointnet_densecls.5} parent=5 // pred_check
        _
      $region70: #{pointnet_densecls.5} parent=5 // pred_check_branch
        %438 = sbr.rel (%p435) target = $region72
      $region71: #{pointnet_densecls.5} parent=5 // pred_region
        %s439 = ssub.s32 %s19, 1
        %s440 = smul.u32 6, %s29
        %s441 = ssub.s32 8, %s440
        %p442 = scmp.lt.s32.totalorder %s441, 6
        %s443 = scalar_select %p442, %s441, 6
        %s444 = smul.u32 128, %s443
        %p445 = scmp.lt.s32.totalorder %s28, 1
        %s446 = scalar_select %p445, %s28, 1
        %p447 = scmp.lt.s32.totalorder %s440, 7
        %s448 = scalar_select %p447, %s440, 7
        %s449 = smul.addr %s446, 8
        %s450 = sadd.s32 %s448, %s449
        %s451 = smul.addr %s450, 8
        %s452 = scalar_lea.vmem %s0, %s451
        %p453 = pneg %p59
        %p454 = pneg %p56
        %p455 = scmp.lt.s32.totalorder %s28, 1
        %s456 = scalar_select %p455, %s28, 1
        %s457 = smul.addr %s456, 4
        %s458 = scalar_lea.vmem %s1, %s457
        %p459 = pneg %p85
        %p460 = pneg %p82
        %p461 = pneg %p106
        %p462 = pneg %p103
        %p463 = pneg %p127
        %p464 = pneg %p124
        %p465 = pneg %p148
        %p466 = pneg %p145
        %p467 = scmp.lt.s32.totalorder %s28, 1
        %s468 = scalar_select %p467, %s28, 1
        %s469 = smul.addr %s468, 4
        %s470 = scalar_lea.vmem %s5, %s469
        %p471 = pneg %p174
        %p472 = pneg %p171
        %p473 = pneg %p195
        %p474 = pneg %p192
        %p475 = pneg %p216
        %p476 = pneg %p213
        %p477 = pneg %p237
        %p478 = pneg %p234
        %p479 = pneg %p258
        %p480 = pneg %p255
        %p481 = pneg %p279
        %p482 = pneg %p276
        %p483 = pneg %p300
        %p484 = pneg %p297
        %p485 = pneg %p321
        %p486 = pneg %p318
        %p487 = pneg %p349
        %p488 = pneg %p346
        %s489 = sand.u32 %s336, 1
        %s490 = sand.u32 %s336, 1
        %s491 = smul.addr %s490, 48
        %s492 = scalar_lea.vmem [#allocation2], %s491
        %s493 = smul.u32 6, %s29
        %s494 = ssub.s32 8, %s493
        %p495 = scmp.lt.s32.totalorder %s494, 6
        %s496 = scalar_select %p495, %s494, 6
        %s497 = smul.u32 128, %s496
        %p498 = scmp.lt.s32.totalorder %s28, 1
        %s499 = scalar_select %p498, %s28, 1
        %p500 = scmp.lt.s32.totalorder %s493, 7
        %s501 = scalar_select %p500, %s493, 7
        %s502 = smul.addr %s499, 8
        %s503 = sadd.s32 %s501, %s502
        %s504 = smul.addr %s503, 8
        %s505 = scalar_lea.vmem %s0, %s504
        %s506 = smul.u32 6, %s29
        %s507 = ssub.s32 8, %s506
        %p508 = scmp.lt.s32.totalorder %s507, 6
        %s509 = scalar_select %p508, %s507, 6
        %s510 = smul.u32 128, %s509
        %p511 = scmp.lt.s32.totalorder %s28, 1
        %s512 = scalar_select %p511, %s28, 1
        %s513 = smul.addr %s512, 4
        %s514 = scalar_lea.vmem %s1, %s513
        %p515 = scmp.lt.s32.totalorder %s28, 1
        %s516 = scalar_select %p515, %s28, 1
        %s517 = smul.addr %s516, 4
        %s518 = scalar_lea.vmem %s5, %s517
        %s519 = smul.u32 6, %s29
        %s520 = ssub.s32 8, %s519
        %p521 = scmp.lt.s32.totalorder %s520, 6
        %s522 = scalar_select %p521, %s520, 6
        %s523 = smul.u32 128, %s522
        %v524 = vld [vmem:[%s505] sm:$0xff]
        %v525 = vld [vmem:[%s505 + $0x8] sm:$0xff]
        %v526 = vld [vmem:[%s505 + $0x10] sm:$0xff]
        %v527 = vld [vmem:[%s505 + $0x18] sm:$0xff]
        %v528 = vld [vmem:[%s505 + $0x20] sm:$0xff]
        %v529 = vld [vmem:[%s505 + $0x28] sm:$0xff]
        %v530 = vld [vmem:[%s514] sm:$0x7]
        %v531 = vld [vmem:[%s2] sm:$0x1]
        %533 = vset.pattern.permute.xlu0 0
        %534 = vperm.xlu0 %533, %v524
        %v535 = vpop.permute.xlu0 %534
        %538 = vset.pattern.permute.xlu0 0
        %539 = vperm.xlu0 %538, %v525
        %v540 = vpop.permute.xlu0 %539
        %543 = vset.pattern.permute.xlu0 0
        %544 = vperm.xlu0 %543, %v526
        %v545 = vpop.permute.xlu0 %544
        %548 = vset.pattern.permute.xlu0 0
        %549 = vperm.xlu0 %548, %v527
        %v550 = vpop.permute.xlu0 %549
        %553 = vset.pattern.permute.xlu0 0
        %554 = vperm.xlu0 %553, %v528
        %v555 = vpop.permute.xlu0 %554
        %558 = vset.pattern.permute.xlu0 0
        %559 = vperm.xlu0 %558, %v529
        %v560 = vpop.permute.xlu0 %559
        %v562 = vlaneseq
        %v563 = vshrl.u32 %v562, 7
        %v564 = vsub.s32 0, %v563
        %v565 = vrot.slane %v530, %v564
        %v566 = vmul.f32 %v535, %v565
        %v567 = vmul.f32 %v540, %v565
        %v568 = vmul.f32 %v545, %v565
        %v569 = vmul.f32 %v550, %v565
        %v570 = vmul.f32 %v555, %v565
        %v571 = vmul.f32 %v560, %v565
        %572 = vset.pattern.permute.xlu0 1
        %573 = vperm.xlu0 %572, %v524
        %v574 = vpop.permute.xlu0 %573
        %576 = vset.pattern.permute.xlu0 1
        %577 = vperm.xlu0 %576, %v525
        %v578 = vpop.permute.xlu0 %577
        %580 = vset.pattern.permute.xlu0 1
        %581 = vperm.xlu0 %580, %v526
        %v582 = vpop.permute.xlu0 %581
        %584 = vset.pattern.permute.xlu0 1
        %585 = vperm.xlu0 %584, %v527
        %v586 = vpop.permute.xlu0 %585
        %588 = vset.pattern.permute.xlu0 1
        %589 = vperm.xlu0 %588, %v528
        %v590 = vpop.permute.xlu0 %589
        %592 = vset.pattern.permute.xlu0 1
        %593 = vperm.xlu0 %592, %v529
        %v594 = vpop.permute.xlu0 %593
        %v596 = vlaneseq
        %v597 = vshrl.u32 %v596, 7
        %v598 = vsub.s32 1, %v597
        %v599 = vrot.slane %v530, %v598
        %v600 = vmul.f32 %v574, %v599
        %v601 = vmul.f32 %v578, %v599
        %v602 = vmul.f32 %v582, %v599
        %v603 = vmul.f32 %v586, %v599
        %v604 = vmul.f32 %v590, %v599
        %v605 = vmul.f32 %v594, %v599
        %v606 = vadd.f32 %v566, %v600
        %v607 = vadd.f32 %v567, %v601
        %v608 = vadd.f32 %v568, %v602
        %v609 = vadd.f32 %v569, %v603
        %v610 = vadd.f32 %v570, %v604
        %v611 = vadd.f32 %v571, %v605
        %612 = vset.pattern.permute.xlu0 2
        %613 = vperm.xlu0 %612, %v524
        %v614 = vpop.permute.xlu0 %613
        %616 = vset.pattern.permute.xlu0 2
        %617 = vperm.xlu0 %616, %v525
        %v618 = vpop.permute.xlu0 %617
        %620 = vset.pattern.permute.xlu0 2
        %621 = vperm.xlu0 %620, %v526
        %v622 = vpop.permute.xlu0 %621
        %624 = vset.pattern.permute.xlu0 2
        %625 = vperm.xlu0 %624, %v527
        %v626 = vpop.permute.xlu0 %625
        %628 = vset.pattern.permute.xlu0 2
        %629 = vperm.xlu0 %628, %v528
        %v630 = vpop.permute.xlu0 %629
        %632 = vset.pattern.permute.xlu0 2
        %633 = vperm.xlu0 %632, %v529
        %v634 = vpop.permute.xlu0 %633
        %v636 = vlaneseq
        %v637 = vshrl.u32 %v636, 7
        %v638 = vsub.s32 2, %v637
        %v639 = vrot.slane %v530, %v638
        %v640 = vmul.f32 %v614, %v639
        %v641 = vmul.f32 %v618, %v639
        %v642 = vmul.f32 %v622, %v639
        %v643 = vmul.f32 %v626, %v639
        %v644 = vmul.f32 %v630, %v639
        %v645 = vmul.f32 %v634, %v639
        %v646 = vadd.f32 %v606, %v640
        %v647 = vadd.f32 %v607, %v641
        %v648 = vadd.f32 %v608, %v642
        %v649 = vadd.f32 %v609, %v643
        %v650 = vadd.f32 %v610, %v644
        %v651 = vadd.f32 %v611, %v645
        %v653 = vlaneseq
        %v654 = vshrl.u32 %v653, 7
        %v655 = vsub.s32 0, %v654
        %v656 = vrot.slane %v531, %v655
        %v658 = vadd.f32 %v646, %v656
        %v659 = vadd.f32 %v647, %v656
        %v660 = vadd.f32 %v648, %v656
        %v661 = vadd.f32 %v649, %v656
        %v662 = vadd.f32 %v650, %v656
        %v663 = vadd.f32 %v651, %v656
        %v664 = vmax.f32 %v658, 0.0
        %v665 = vmax.f32 %v659, 0.0
        %v666 = vmax.f32 %v660, 0.0
        %v667 = vmax.f32 %v661, 0.0
        %v668 = vmax.f32 %v662, 0.0
        %v669 = vmax.f32 %v663, 0.0
        %v670 = vld [vmem:[%s3] sm:$0xff]
        %v671 = vld [vmem:[%s3 + $0x8] sm:$0xff]
        %v672 = vld [vmem:[%s3 + $0x10] sm:$0xff]
        %v673 = vld [vmem:[%s3 + $0x18] sm:$0xff]
        %v674 = vld [vmem:[%s3 + $0x20] sm:$0xff]
        %v675 = vld [vmem:[%s3 + $0x28] sm:$0xff]
        %v676 = vld [vmem:[%s3 + $0x30] sm:$0xff]
        %v677 = vld [vmem:[%s3 + $0x38] sm:$0xff]
        %v678 = vld [vmem:[%s4] sm:$0x1]
        %v680 = vlaneseq
        %v681 = vshrl.u32 %v680, 7
        %v682 = vsub.s32 0, %v681
        %v683 = vrot.slane %v678, %v682
        %vm685 = vcmask 523264
        %v687 = vsel %vm685, %v664, 0
        %v690 = vsel %vm685, %v665, 0
        %v693 = vsel %vm685, %v666, 0
        %v696 = vsel %vm685, %v667, 0
        %v699 = vsel %vm685, %v668, 0
        %v702 = vsel %vm685, %v669, 0
        %704 = vmatprep.subr.mxu0 0.0
        %705 = vmatpush1.msra.mxu0 0.0
        %706 = vmatprep.subr.mxu0 0.0
        %707 = vmatpush1.msra.mxu0 0.0
        %708 = vmatprep.subr.mxu0 0.0
        %709 = vmatpush1.msra.mxu0 0.0
        %710 = vmatprep.subr.mxu0 0.0
        %711 = vmatpush1.msra.mxu0 0.0
        %712 = vmatprep.subr.mxu0 0.0
        %713 = vmatpush1.msra.mxu0 0.0
        %714 = vmatprep.subr.mxu0 0.0
        %715 = vmatpush1.msra.mxu0 0.0
        %716 = vmatprep.subr.mxu0 0.0
        %717 = vmatpush1.msra.mxu0 0.0
        %718 = vmatprep.subr.mxu0 0.0
        %719 = vmatpush1.msra.mxu0 0.0
        %720 = vmatprep.subr.mxu0 0.0
        %721 = vmatpush1.msra.mxu0 %v677
        %722 = vmatprep.subr.mxu0 0.0
        %723 = vmatpush1.msra.mxu0 %v676
        %724 = vmatprep.subr.mxu0 0.0
        %725 = vmatpush1.msra.mxu0 %v675
        %726 = vmatprep.subr.mxu0 0.0
        %727 = vmatpush1.msra.mxu0 %v674
        %728 = vmatprep.subr.mxu0 0.0
        %729 = vmatpush1.msra.mxu0 %v673
        %730 = vmatprep.subr.mxu0 0.0
        %731 = vmatpush1.msra.mxu0 %v672
        %732 = vmatprep.subr.mxu0 0.0
        %733 = vmatpush1.msra.mxu0 %v671
        %734 = vmatprep.subr.mxu0 0.0
        %735 = vmatpush1.msra.mxu0 %v670
        %736 = vmatprep.subr.mxu0 0.0
        %737 = vmatpush2.msra.mxu0 0.0
        %738 = vmatprep.subr.mxu0 0.0
        %739 = vmatpush2.msra.mxu0 0.0
        %740 = vmatprep.subr.mxu0 0.0
        %741 = vmatpush2.msra.mxu0 0.0
        %742 = vmatprep.subr.mxu0 0.0
        %743 = vmatpush2.msra.mxu0 0.0
        %744 = vmatprep.subr.mxu0 0.0
        %745 = vmatpush2.msra.mxu0 0.0
        %746 = vmatprep.subr.mxu0 0.0
        %747 = vmatpush2.msra.mxu0 0.0
        %748 = vmatprep.subr.mxu0 0.0
        %749 = vmatpush2.msra.mxu0 0.0
        %750 = vmatprep.subr.mxu0 0.0
        %751 = vmatpush2.msra.mxu0 0.0
        %752 = vmatprep.subr.mxu0 0.0
        %753 = vmatpush2.msra.mxu0 0.0
        %754 = vmatprep.subr.mxu0 0.0
        %755 = vmatpush2.msra.mxu0 0.0
        %756 = vmatprep.subr.mxu0 0.0
        %757 = vmatpush2.msra.mxu0 0.0
        %758 = vmatprep.subr.mxu0 0.0
        %759 = vmatpush2.msra.mxu0 0.0
        %760 = vmatprep.subr.mxu0 0.0
        %761 = vmatpush2.msra.mxu0 0.0
        %762 = vmatprep.subr.mxu0 0.0
        %763 = vmatpush2.msra.mxu0 0.0
        %764 = vmatprep.subr.mxu0 0.0
        %765 = vmatpush2.msra.mxu0 0.0
        %766 = vmatprep.subr.mxu0 0.0
        %767 = vmatpush2.msra.mxu0 0.0
        %768 = vmatprep.mubr.f32.mxu0 0.0
        %769 = vmatmul.mubr.f32.gmra.mxu0 %v687
        %v770 = vpop.f32.mrf.mxu0
        %v771 = vadd.f32 %v683, %v770
        %v772 = vpop.f32.mrf.mxu0
        %773 = vmatprep.mubr.f32.mxu0 0.0
        %774 = vmatmul.mubr.f32.gmra.mxu0 %v690
        %v775 = vpop.f32.mrf.mxu0
        %v776 = vadd.f32 %v683, %v775
        %v777 = vpop.f32.mrf.mxu0
        %778 = vmatprep.mubr.f32.mxu0 0.0
        %779 = vmatmul.mubr.f32.gmra.mxu0 %v693
        %v780 = vpop.f32.mrf.mxu0
        %v781 = vadd.f32 %v683, %v780
        %v782 = vpop.f32.mrf.mxu0
        %783 = vmatprep.mubr.f32.mxu0 0.0
        %784 = vmatmul.mubr.f32.gmra.mxu0 %v696
        %v785 = vpop.f32.mrf.mxu0
        %v786 = vadd.f32 %v683, %v785
        %v787 = vpop.f32.mrf.mxu0
        %788 = vmatprep.mubr.f32.mxu0 0.0
        %789 = vmatmul.mubr.f32.gmra.mxu0 %v699
        %v790 = vpop.f32.mrf.mxu0
        %v791 = vadd.f32 %v683, %v790
        %v792 = vpop.f32.mrf.mxu0
        %793 = vmatprep.mubr.f32.mxu0 0.0
        %794 = vmatmul.mubr.f32.gmra.mxu0 %v702
        %v795 = vpop.f32.mrf.mxu0
        %v796 = vadd.f32 %v683, %v795
        %v797 = vpop.f32.mrf.mxu0
        %798 = vdwg.mxu0
        %v799 = vmax.f32 %v771, 0.0
        %v800 = vmax.f32 %v776, 0.0
        %v801 = vmax.f32 %v781, 0.0
        %v802 = vmax.f32 %v786, 0.0
        %v803 = vmax.f32 %v791, 0.0
        %v804 = vmax.f32 %v796, 0.0
        %v805 = vld [vmem:[%s6] sm:$0xff]
        %v806 = vld [vmem:[%s6 + $0x8] sm:$0xff]
        %v807 = vld [vmem:[%s6 + $0x10] sm:$0xff]
        %v808 = vld [vmem:[%s6 + $0x18] sm:$0xff]
        %v809 = vld [vmem:[%s6 + $0x20] sm:$0xff]
        %v810 = vld [vmem:[%s6 + $0x28] sm:$0xff]
        %v811 = vld [vmem:[%s6 + $0x30] sm:$0xff]
        %v812 = vld [vmem:[%s6 + $0x38] sm:$0xff]
        %v813 = vld [vmem:[%s6 + $0x40] sm:$0xff]
        %v814 = vld [vmem:[%s6 + $0x48] sm:$0xff]
        %v815 = vld [vmem:[%s6 + $0x50] sm:$0xff]
        %v816 = vld [vmem:[%s6 + $0x58] sm:$0xff]
        %v817 = vld [vmem:[%s6 + $0x60] sm:$0xff]
        %v818 = vld [vmem:[%s6 + $0x68] sm:$0xff]
        %v819 = vld [vmem:[%s6 + $0x70] sm:$0xff]
        %v820 = vld [vmem:[%s6 + $0x78] sm:$0xff]
        %v821 = vld [vmem:[%s6 + $0x80] sm:$0xff]
        %v822 = vld [vmem:[%s6 + $0x88] sm:$0xff]
        %v823 = vld [vmem:[%s6 + $0x90] sm:$0xff]
        %v824 = vld [vmem:[%s6 + $0x98] sm:$0xff]
        %v825 = vld [vmem:[%s6 + $0xa0] sm:$0xff]
        %v826 = vld [vmem:[%s6 + $0xa8] sm:$0xff]
        %v827 = vld [vmem:[%s6 + $0xb0] sm:$0xff]
        %v828 = vld [vmem:[%s6 + $0xb8] sm:$0xff]
        %v829 = vld [vmem:[%s6 + $0xc0] sm:$0xff]
        %v830 = vld [vmem:[%s6 + $0xc8] sm:$0xff]
        %v831 = vld [vmem:[%s6 + $0xd0] sm:$0xff]
        %v832 = vld [vmem:[%s6 + $0xd8] sm:$0xff]
        %v833 = vld [vmem:[%s6 + $0xe0] sm:$0xff]
        %v834 = vld [vmem:[%s6 + $0xe8] sm:$0xff]
        %v835 = vld [vmem:[%s6 + $0xf0] sm:$0xff]
        %v836 = vld [vmem:[%s6 + $0xf8] sm:$0xff]
        %v837 = vld [vmem:[%s518] sm:$0xf]
        %v839 = vlaneseq
        %v840 = vshrl.u32 %v839, 7
        %v841 = vsub.s32 0, %v840
        %v842 = vrot.slane %v837, %v841
        %v843 = vlaneseq
        %v844 = vshrl.u32 %v843, 7
        %v845 = vsub.s32 1, %v844
        %v846 = vrot.slane %v837, %v845
        %v847 = vlaneseq
        %v848 = vshrl.u32 %v847, 7
        %v849 = vsub.s32 2, %v848
        %v850 = vrot.slane %v837, %v849
        %v851 = vlaneseq
        %v852 = vshrl.u32 %v851, 7
        %v853 = vsub.s32 3, %v852
        %v854 = vrot.slane %v837, %v853
        %v860 = vsel %vm685, %v799, 0
        %v863 = vsel %vm685, %v800, 0
        %v866 = vsel %vm685, %v801, 0
        %v869 = vsel %vm685, %v802, 0
        %v872 = vsel %vm685, %v803, 0
        %v875 = vsel %vm685, %v804, 0
        %877 = vmatprep.subr.mxu0 0.0
        %878 = vmatpush1.msra.mxu0 0.0
        %879 = vmatprep.subr.mxu0 0.0
        %880 = vmatpush1.msra.mxu0 0.0
        %881 = vmatprep.subr.mxu0 0.0
        %882 = vmatpush1.msra.mxu0 0.0
        %883 = vmatprep.subr.mxu0 0.0
        %884 = vmatpush1.msra.mxu0 0.0
        %885 = vmatprep.subr.mxu0 0.0
        %886 = vmatpush1.msra.mxu0 0.0
        %887 = vmatprep.subr.mxu0 0.0
        %888 = vmatpush1.msra.mxu0 0.0
        %889 = vmatprep.subr.mxu0 0.0
        %890 = vmatpush1.msra.mxu0 0.0
        %891 = vmatprep.subr.mxu0 0.0
        %892 = vmatpush1.msra.mxu0 0.0
        %893 = vmatprep.subr.mxu0 %v834
        %894 = vmatpush1.msra.mxu0 %v833
        %895 = vmatprep.subr.mxu0 %v830
        %896 = vmatpush1.msra.mxu0 %v829
        %897 = vmatprep.subr.mxu0 %v826
        %898 = vmatpush1.msra.mxu0 %v825
        %899 = vmatprep.subr.mxu0 %v822
        %900 = vmatpush1.msra.mxu0 %v821
        %901 = vmatprep.subr.mxu0 %v818
        %902 = vmatpush1.msra.mxu0 %v817
        %903 = vmatprep.subr.mxu0 %v814
        %904 = vmatpush1.msra.mxu0 %v813
        %905 = vmatprep.subr.mxu0 %v810
        %906 = vmatpush1.msra.mxu0 %v809
        %907 = vmatprep.subr.mxu0 %v806
        %908 = vmatpush1.msra.mxu0 %v805
        %909 = vmatprep.subr.mxu0 0.0
        %910 = vmatpush2.msra.mxu0 0.0
        %911 = vmatprep.subr.mxu0 0.0
        %912 = vmatpush2.msra.mxu0 0.0
        %913 = vmatprep.subr.mxu0 0.0
        %914 = vmatpush2.msra.mxu0 0.0
        %915 = vmatprep.subr.mxu0 0.0
        %916 = vmatpush2.msra.mxu0 0.0
        %917 = vmatprep.subr.mxu0 0.0
        %918 = vmatpush2.msra.mxu0 0.0
        %919 = vmatprep.subr.mxu0 0.0
        %920 = vmatpush2.msra.mxu0 0.0
        %921 = vmatprep.subr.mxu0 0.0
        %922 = vmatpush2.msra.mxu0 0.0
        %923 = vmatprep.subr.mxu0 0.0
        %924 = vmatpush2.msra.mxu0 0.0
        %925 = vmatprep.subr.mxu0 0.0
        %926 = vmatpush2.msra.mxu0 0.0
        %927 = vmatprep.subr.mxu0 0.0
        %928 = vmatpush2.msra.mxu0 0.0
        %929 = vmatprep.subr.mxu0 0.0
        %930 = vmatpush2.msra.mxu0 0.0
        %931 = vmatprep.subr.mxu0 0.0
        %932 = vmatpush2.msra.mxu0 0.0
        %933 = vmatprep.subr.mxu0 0.0
        %934 = vmatpush2.msra.mxu0 0.0
        %935 = vmatprep.subr.mxu0 0.0
        %936 = vmatpush2.msra.mxu0 0.0
        %937 = vmatprep.subr.mxu0 0.0
        %938 = vmatpush2.msra.mxu0 0.0
        %939 = vmatprep.subr.mxu0 0.0
        %940 = vmatpush2.msra.mxu0 0.0
        %941 = vmatprep.mubr.f32.mxu0 0.0
        %942 = vmatmul.mubr.f32.gmra.mxu0 %v860
        %v943 = vpop.f32.mrf.mxu0
        %v944 = vadd.f32 %v842, %v943
        %v945 = vpop.f32.mrf.mxu0
        %v946 = vadd.f32 %v846, %v945
        %947 = vmatprep.mubr.f32.mxu0 0.0
        %948 = vmatmul.mubr.f32.gmra.mxu0 %v863
        %v949 = vpop.f32.mrf.mxu0
        %v950 = vadd.f32 %v842, %v949
        %v951 = vpop.f32.mrf.mxu0
        %v952 = vadd.f32 %v846, %v951
        %953 = vmatprep.mubr.f32.mxu0 0.0
        %954 = vmatmul.mubr.f32.gmra.mxu0 %v866
        %v955 = vpop.f32.mrf.mxu0
        %v956 = vadd.f32 %v842, %v955
        %v957 = vpop.f32.mrf.mxu0
        %v958 = vadd.f32 %v846, %v957
        %959 = vmatprep.mubr.f32.mxu0 0.0
        %960 = vmatmul.mubr.f32.gmra.mxu0 %v869
        %v961 = vpop.f32.mrf.mxu0
        %v962 = vadd.f32 %v842, %v961
        %v963 = vpop.f32.mrf.mxu0
        %v964 = vadd.f32 %v846, %v963
        %965 = vmatprep.mubr.f32.mxu0 0.0
        %966 = vmatmul.mubr.f32.gmra.mxu0 %v872
        %v967 = vpop.f32.mrf.mxu0
        %v968 = vadd.f32 %v842, %v967
        %v969 = vpop.f32.mrf.mxu0
        %v970 = vadd.f32 %v846, %v969
        %971 = vmatprep.mubr.f32.mxu0 0.0
        %972 = vmatmul.mubr.f32.gmra.mxu0 %v875
        %v973 = vpop.f32.mrf.mxu0
        %v974 = vadd.f32 %v842, %v973
        %v975 = vpop.f32.mrf.mxu0
        %v976 = vadd.f32 %v846, %v975
        %977 = vdwg.mxu0
        %978 = vmatprep.subr.mxu0 0.0
        %979 = vmatpush1.msra.mxu0 0.0
        %980 = vmatprep.subr.mxu0 0.0
        %981 = vmatpush1.msra.mxu0 0.0
        %982 = vmatprep.subr.mxu0 0.0
        %983 = vmatpush1.msra.mxu0 0.0
        %984 = vmatprep.subr.mxu0 0.0
        %985 = vmatpush1.msra.mxu0 0.0
        %986 = vmatprep.subr.mxu0 0.0
        %987 = vmatpush1.msra.mxu0 0.0
        %988 = vmatprep.subr.mxu0 0.0
        %989 = vmatpush1.msra.mxu0 0.0
        %990 = vmatprep.subr.mxu0 0.0
        %991 = vmatpush1.msra.mxu0 0.0
        %992 = vmatprep.subr.mxu0 0.0
        %993 = vmatpush1.msra.mxu0 0.0
        %994 = vmatprep.subr.mxu0 %v836
        %995 = vmatpush1.msra.mxu0 %v835
        %996 = vmatprep.subr.mxu0 %v832
        %997 = vmatpush1.msra.mxu0 %v831
        %998 = vmatprep.subr.mxu0 %v828
        %999 = vmatpush1.msra.mxu0 %v827
        %1000 = vmatprep.subr.mxu0 %v824
        %1001 = vmatpush1.msra.mxu0 %v823
        %1002 = vmatprep.subr.mxu0 %v820
        %1003 = vmatpush1.msra.mxu0 %v819
        %1004 = vmatprep.subr.mxu0 %v816
        %1005 = vmatpush1.msra.mxu0 %v815
        %1006 = vmatprep.subr.mxu0 %v812
        %1007 = vmatpush1.msra.mxu0 %v811
        %1008 = vmatprep.subr.mxu0 %v808
        %1009 = vmatpush1.msra.mxu0 %v807
        %1010 = vmatprep.subr.mxu0 0.0
        %1011 = vmatpush2.msra.mxu0 0.0
        %1012 = vmatprep.subr.mxu0 0.0
        %1013 = vmatpush2.msra.mxu0 0.0
        %1014 = vmatprep.subr.mxu0 0.0
        %1015 = vmatpush2.msra.mxu0 0.0
        %1016 = vmatprep.subr.mxu0 0.0
        %1017 = vmatpush2.msra.mxu0 0.0
        %1018 = vmatprep.subr.mxu0 0.0
        %1019 = vmatpush2.msra.mxu0 0.0
        %1020 = vmatprep.subr.mxu0 0.0
        %1021 = vmatpush2.msra.mxu0 0.0
        %1022 = vmatprep.subr.mxu0 0.0
        %1023 = vmatpush2.msra.mxu0 0.0
        %1024 = vmatprep.subr.mxu0 0.0
        %1025 = vmatpush2.msra.mxu0 0.0
        %1026 = vmatprep.subr.mxu0 0.0
        %1027 = vmatpush2.msra.mxu0 0.0
        %1028 = vmatprep.subr.mxu0 0.0
        %1029 = vmatpush2.msra.mxu0 0.0
        %1030 = vmatprep.subr.mxu0 0.0
        %1031 = vmatpush2.msra.mxu0 0.0
        %1032 = vmatprep.subr.mxu0 0.0
        %1033 = vmatpush2.msra.mxu0 0.0
        %1034 = vmatprep.subr.mxu0 0.0
        %1035 = vmatpush2.msra.mxu0 0.0
        %1036 = vmatprep.subr.mxu0 0.0
        %1037 = vmatpush2.msra.mxu0 0.0
        %1038 = vmatprep.subr.mxu0 0.0
        %1039 = vmatpush2.msra.mxu0 0.0
        %1040 = vmatprep.subr.mxu0 0.0
        %1041 = vmatpush2.msra.mxu0 0.0
        %1042 = vmatprep.mubr.f32.mxu0 0.0
        %1043 = vmatmul.mubr.f32.gmra.mxu0 %v860
        %v1044 = vpop.f32.mrf.mxu0
        %v1045 = vadd.f32 %v850, %v1044
        %v1046 = vpop.f32.mrf.mxu0
        %v1047 = vadd.f32 %v854, %v1046
        %1048 = vmatprep.mubr.f32.mxu0 0.0
        %1049 = vmatmul.mubr.f32.gmra.mxu0 %v863
        %v1050 = vpop.f32.mrf.mxu0
        %v1051 = vadd.f32 %v850, %v1050
        %v1052 = vpop.f32.mrf.mxu0
        %v1053 = vadd.f32 %v854, %v1052
        %1054 = vmatprep.mubr.f32.mxu0 0.0
        %1055 = vmatmul.mubr.f32.gmra.mxu0 %v866
        %v1056 = vpop.f32.mrf.mxu0
        %v1057 = vadd.f32 %v850, %v1056
        %v1058 = vpop.f32.mrf.mxu0
        %v1059 = vadd.f32 %v854, %v1058
        %1060 = vmatprep.mubr.f32.mxu0 0.0
        %1061 = vmatmul.mubr.f32.gmra.mxu0 %v869
        %v1062 = vpop.f32.mrf.mxu0
        %v1063 = vadd.f32 %v850, %v1062
        %v1064 = vpop.f32.mrf.mxu0
        %v1065 = vadd.f32 %v854, %v1064
        %1066 = vmatprep.mubr.f32.mxu0 0.0
        %1067 = vmatmul.mubr.f32.gmra.mxu0 %v872
        %v1068 = vpop.f32.mrf.mxu0
        %v1069 = vadd.f32 %v850, %v1068
        %v1070 = vpop.f32.mrf.mxu0
        %v1071 = vadd.f32 %v854, %v1070
        %1072 = vmatprep.mubr.f32.mxu0 0.0
        %1073 = vmatmul.mubr.f32.gmra.mxu0 %v875
        %v1074 = vpop.f32.mrf.mxu0
        %v1075 = vadd.f32 %v850, %v1074
        %v1076 = vpop.f32.mrf.mxu0
        %v1077 = vadd.f32 %v854, %v1076
        %1078 = vdwg.mxu0
        %v1079 = vmax.f32 %v944, 0.0
        %v1080 = vmax.f32 %v946, 0.0
        %v1081 = vmax.f32 %v1045, 0.0
        %v1082 = vmax.f32 %v1047, 0.0
        %v1083 = vmax.f32 %v950, 0.0
        %v1084 = vmax.f32 %v952, 0.0
        %v1085 = vmax.f32 %v1051, 0.0
        %v1086 = vmax.f32 %v1053, 0.0
        %v1087 = vmax.f32 %v956, 0.0
        %v1088 = vmax.f32 %v958, 0.0
        %v1089 = vmax.f32 %v1057, 0.0
        %v1090 = vmax.f32 %v1059, 0.0
        %v1091 = vmax.f32 %v962, 0.0
        %v1092 = vmax.f32 %v964, 0.0
        %v1093 = vmax.f32 %v1063, 0.0
        %v1094 = vmax.f32 %v1065, 0.0
        %v1095 = vmax.f32 %v968, 0.0
        %v1096 = vmax.f32 %v970, 0.0
        %v1097 = vmax.f32 %v1069, 0.0
        %v1098 = vmax.f32 %v1071, 0.0
        %v1099 = vmax.f32 %v974, 0.0
        %v1100 = vmax.f32 %v976, 0.0
        %v1101 = vmax.f32 %v1075, 0.0
        %v1102 = vmax.f32 %v1077, 0.0
        %v1103 = vld [vmem:[%s7] sm:$0xff]
        %v1104 = vld [vmem:[%s7 + $0x8] sm:$0xff]
        %v1105 = vld [vmem:[%s7 + $0x10] sm:$0xff]
        %v1106 = vld [vmem:[%s7 + $0x18] sm:$0xff]
        %v1107 = vld [vmem:[%s7 + $0x20] sm:$0xff]
        %v1108 = vld [vmem:[%s7 + $0x28] sm:$0xff]
        %v1109 = vld [vmem:[%s7 + $0x30] sm:$0xff]
        %v1110 = vld [vmem:[%s7 + $0x38] sm:$0xff]
        %v1111 = vld [vmem:[%s7 + $0x40] sm:$0xff]
        %v1112 = vld [vmem:[%s7 + $0x48] sm:$0xff]
        %v1113 = vld [vmem:[%s7 + $0x50] sm:$0xff]
        %v1114 = vld [vmem:[%s7 + $0x58] sm:$0xff]
        %v1115 = vld [vmem:[%s7 + $0x60] sm:$0xff]
        %v1116 = vld [vmem:[%s7 + $0x68] sm:$0xff]
        %v1117 = vld [vmem:[%s7 + $0x70] sm:$0xff]
        %v1118 = vld [vmem:[%s7 + $0x78] sm:$0xff]
        %v1119 = vld [vmem:[%s7 + $0x80] sm:$0xff]
        %v1120 = vld [vmem:[%s7 + $0x88] sm:$0xff]
        %v1121 = vld [vmem:[%s7 + $0x90] sm:$0xff]
        %v1122 = vld [vmem:[%s7 + $0x98] sm:$0xff]
        %v1123 = vld [vmem:[%s7 + $0xa0] sm:$0xff]
        %v1124 = vld [vmem:[%s7 + $0xa8] sm:$0xff]
        %v1125 = vld [vmem:[%s7 + $0xb0] sm:$0xff]
        %v1126 = vld [vmem:[%s7 + $0xb8] sm:$0xff]
        %v1127 = vld [vmem:[%s7 + $0xc0] sm:$0xff]
        %v1128 = vld [vmem:[%s7 + $0xc8] sm:$0xff]
        %v1129 = vld [vmem:[%s7 + $0xd0] sm:$0xff]
        %v1130 = vld [vmem:[%s7 + $0xd8] sm:$0xff]
        %v1131 = vld [vmem:[%s7 + $0xe0] sm:$0xff]
        %v1132 = vld [vmem:[%s7 + $0xe8] sm:$0xff]
        %v1133 = vld [vmem:[%s7 + $0xf0] sm:$0xff]
        %v1134 = vld [vmem:[%s7 + $0xf8] sm:$0xff]
        %v1135 = vld [vmem:[%s7 + $0x100] sm:$0xff]
        %v1136 = vld [vmem:[%s7 + $0x108] sm:$0xff]
        %v1137 = vld [vmem:[%s7 + $0x110] sm:$0xff]
        %v1138 = vld [vmem:[%s7 + $0x118] sm:$0xff]
        %v1139 = vld [vmem:[%s7 + $0x120] sm:$0xff]
        %v1140 = vld [vmem:[%s7 + $0x128] sm:$0xff]
        %v1141 = vld [vmem:[%s7 + $0x130] sm:$0xff]
        %v1142 = vld [vmem:[%s7 + $0x138] sm:$0xff]
        %v1143 = vld [vmem:[%s7 + $0x140] sm:$0xff]
        %v1144 = vld [vmem:[%s7 + $0x148] sm:$0xff]
        %v1145 = vld [vmem:[%s7 + $0x150] sm:$0xff]
        %v1146 = vld [vmem:[%s7 + $0x158] sm:$0xff]
        %v1147 = vld [vmem:[%s7 + $0x160] sm:$0xff]
        %v1148 = vld [vmem:[%s7 + $0x168] sm:$0xff]
        %v1149 = vld [vmem:[%s7 + $0x170] sm:$0xff]
        %v1150 = vld [vmem:[%s7 + $0x178] sm:$0xff]
        %v1151 = vld [vmem:[%s7 + $0x180] sm:$0xff]
        %v1152 = vld [vmem:[%s7 + $0x188] sm:$0xff]
        %v1153 = vld [vmem:[%s7 + $0x190] sm:$0xff]
        %v1154 = vld [vmem:[%s7 + $0x198] sm:$0xff]
        %v1155 = vld [vmem:[%s7 + $0x1a0] sm:$0xff]
        %v1156 = vld [vmem:[%s7 + $0x1a8] sm:$0xff]
        %v1157 = vld [vmem:[%s7 + $0x1b0] sm:$0xff]
        %v1158 = vld [vmem:[%s7 + $0x1b8] sm:$0xff]
        %v1159 = vld [vmem:[%s7 + $0x1c0] sm:$0xff]
        %v1160 = vld [vmem:[%s7 + $0x1c8] sm:$0xff]
        %v1161 = vld [vmem:[%s7 + $0x1d0] sm:$0xff]
        %v1162 = vld [vmem:[%s7 + $0x1d8] sm:$0xff]
        %v1163 = vld [vmem:[%s7 + $0x1e0] sm:$0xff]
        %v1164 = vld [vmem:[%s7 + $0x1e8] sm:$0xff]
        %v1165 = vld [vmem:[%s7 + $0x1f0] sm:$0xff]
        %v1166 = vld [vmem:[%s7 + $0x1f8] sm:$0xff]
        %v1167 = vld [vmem:[%s7 + $0x200] sm:$0xff]
        %v1168 = vld [vmem:[%s7 + $0x208] sm:$0xff]
        %v1169 = vld [vmem:[%s7 + $0x210] sm:$0xff]
        %v1170 = vld [vmem:[%s7 + $0x218] sm:$0xff]
        %v1171 = vld [vmem:[%s7 + $0x220] sm:$0xff]
        %v1172 = vld [vmem:[%s7 + $0x228] sm:$0xff]
        %v1173 = vld [vmem:[%s7 + $0x230] sm:$0xff]
        %v1174 = vld [vmem:[%s7 + $0x238] sm:$0xff]
        %v1175 = vld [vmem:[%s7 + $0x240] sm:$0xff]
        %v1176 = vld [vmem:[%s7 + $0x248] sm:$0xff]
        %v1177 = vld [vmem:[%s7 + $0x250] sm:$0xff]
        %v1178 = vld [vmem:[%s7 + $0x258] sm:$0xff]
        %v1179 = vld [vmem:[%s7 + $0x260] sm:$0xff]
        %v1180 = vld [vmem:[%s7 + $0x268] sm:$0xff]
        %v1181 = vld [vmem:[%s7 + $0x270] sm:$0xff]
        %v1182 = vld [vmem:[%s7 + $0x278] sm:$0xff]
        %v1183 = vld [vmem:[%s7 + $0x280] sm:$0xff]
        %v1184 = vld [vmem:[%s7 + $0x288] sm:$0xff]
        %v1185 = vld [vmem:[%s7 + $0x290] sm:$0xff]
        %v1186 = vld [vmem:[%s7 + $0x298] sm:$0xff]
        %v1187 = vld [vmem:[%s7 + $0x2a0] sm:$0xff]
        %v1188 = vld [vmem:[%s7 + $0x2a8] sm:$0xff]
        %v1189 = vld [vmem:[%s7 + $0x2b0] sm:$0xff]
        %v1190 = vld [vmem:[%s7 + $0x2b8] sm:$0xff]
        %v1191 = vld [vmem:[%s7 + $0x2c0] sm:$0xff]
        %v1192 = vld [vmem:[%s7 + $0x2c8] sm:$0xff]
        %v1193 = vld [vmem:[%s7 + $0x2d0] sm:$0xff]
        %v1194 = vld [vmem:[%s7 + $0x2d8] sm:$0xff]
        %v1195 = vld [vmem:[%s7 + $0x2e0] sm:$0xff]
        %v1196 = vld [vmem:[%s7 + $0x2e8] sm:$0xff]
        %v1197 = vld [vmem:[%s7 + $0x2f0] sm:$0xff]
        %v1198 = vld [vmem:[%s7 + $0x2f8] sm:$0xff]
        %v1199 = vld [vmem:[%s7 + $0x300] sm:$0xff]
        %v1200 = vld [vmem:[%s7 + $0x308] sm:$0xff]
        %v1201 = vld [vmem:[%s7 + $0x310] sm:$0xff]
        %v1202 = vld [vmem:[%s7 + $0x318] sm:$0xff]
        %v1203 = vld [vmem:[%s7 + $0x320] sm:$0xff]
        %v1204 = vld [vmem:[%s7 + $0x328] sm:$0xff]
        %v1205 = vld [vmem:[%s7 + $0x330] sm:$0xff]
        %v1206 = vld [vmem:[%s7 + $0x338] sm:$0xff]
        %v1207 = vld [vmem:[%s7 + $0x340] sm:$0xff]
        %v1208 = vld [vmem:[%s7 + $0x348] sm:$0xff]
        %v1209 = vld [vmem:[%s7 + $0x350] sm:$0xff]
        %v1210 = vld [vmem:[%s7 + $0x358] sm:$0xff]
        %v1211 = vld [vmem:[%s7 + $0x360] sm:$0xff]
        %v1212 = vld [vmem:[%s7 + $0x368] sm:$0xff]
        %v1213 = vld [vmem:[%s7 + $0x370] sm:$0xff]
        %v1214 = vld [vmem:[%s7 + $0x378] sm:$0xff]
        %v1215 = vld [vmem:[%s7 + $0x380] sm:$0xff]
        %v1216 = vld [vmem:[%s7 + $0x388] sm:$0xff]
        %v1217 = vld [vmem:[%s7 + $0x390] sm:$0xff]
        %v1218 = vld [vmem:[%s7 + $0x398] sm:$0xff]
        %v1219 = vld [vmem:[%s7 + $0x3a0] sm:$0xff]
        %v1220 = vld [vmem:[%s7 + $0x3a8] sm:$0xff]
        %v1221 = vld [vmem:[%s7 + $0x3b0] sm:$0xff]
        %v1222 = vld [vmem:[%s7 + $0x3b8] sm:$0xff]
        %v1223 = vld [vmem:[%s7 + $0x3c0] sm:$0xff]
        %v1224 = vld [vmem:[%s7 + $0x3c8] sm:$0xff]
        %v1225 = vld [vmem:[%s7 + $0x3d0] sm:$0xff]
        %v1226 = vld [vmem:[%s7 + $0x3d8] sm:$0xff]
        %v1227 = vld [vmem:[%s7 + $0x3e0] sm:$0xff]
        %v1228 = vld [vmem:[%s7 + $0x3e8] sm:$0xff]
        %v1229 = vld [vmem:[%s7 + $0x3f0] sm:$0xff]
        %v1230 = vld [vmem:[%s7 + $0x3f8] sm:$0xff]
        %v1231 = vld [vmem:[%s8] sm:$0x3]
        %v1233 = vlaneseq
        %v1234 = vshrl.u32 %v1233, 7
        %v1235 = vsub.s32 0, %v1234
        %v1236 = vrot.slane %v1231, %v1235
        %v1237 = vlaneseq
        %v1238 = vshrl.u32 %v1237, 7
        %v1239 = vsub.s32 1, %v1238
        %v1240 = vrot.slane %v1231, %v1239
        %1243 = vmatprep.subr.mxu0 %v1134
        %1244 = vmatpush1.msra.mxu0 %v1133
        %1245 = vmatprep.subr.mxu0 %v1132
        %1246 = vmatpush1.msra.mxu0 %v1131
        %1247 = vmatprep.subr.mxu0 %v1130
        %1248 = vmatpush1.msra.mxu0 %v1129
        %1249 = vmatprep.subr.mxu0 %v1128
        %1250 = vmatpush1.msra.mxu0 %v1127
        %1251 = vmatprep.subr.mxu0 %v1126
        %1252 = vmatpush1.msra.mxu0 %v1125
        %1253 = vmatprep.subr.mxu0 %v1124
        %1254 = vmatpush1.msra.mxu0 %v1123
        %1255 = vmatprep.subr.mxu0 %v1122
        %1256 = vmatpush1.msra.mxu0 %v1121
        %1257 = vmatprep.subr.mxu0 %v1120
        %1258 = vmatpush1.msra.mxu0 %v1119
        %1259 = vmatprep.subr.mxu0 %v1118
        %1260 = vmatpush1.msra.mxu0 %v1117
        %1261 = vmatprep.subr.mxu0 %v1116
        %1262 = vmatpush1.msra.mxu0 %v1115
        %1263 = vmatprep.subr.mxu0 %v1114
        %1264 = vmatpush1.msra.mxu0 %v1113
        %1265 = vmatprep.subr.mxu0 %v1112
        %1266 = vmatpush1.msra.mxu0 %v1111
        %1267 = vmatprep.subr.mxu0 %v1110
        %1268 = vmatpush1.msra.mxu0 %v1109
        %1269 = vmatprep.subr.mxu0 %v1108
        %1270 = vmatpush1.msra.mxu0 %v1107
        %1271 = vmatprep.subr.mxu0 %v1106
        %1272 = vmatpush1.msra.mxu0 %v1105
        %1273 = vmatprep.subr.mxu0 %v1104
        %1274 = vmatpush1.msra.mxu0 %v1103
        %1275 = vmatprep.subr.mxu0 %v1166
        %1276 = vmatpush2.msra.mxu0 %v1165
        %1277 = vmatprep.subr.mxu0 %v1164
        %1278 = vmatpush2.msra.mxu0 %v1163
        %1279 = vmatprep.subr.mxu0 %v1162
        %1280 = vmatpush2.msra.mxu0 %v1161
        %1281 = vmatprep.subr.mxu0 %v1160
        %1282 = vmatpush2.msra.mxu0 %v1159
        %1283 = vmatprep.subr.mxu0 %v1158
        %1284 = vmatpush2.msra.mxu0 %v1157
        %1285 = vmatprep.subr.mxu0 %v1156
        %1286 = vmatpush2.msra.mxu0 %v1155
        %1287 = vmatprep.subr.mxu0 %v1154
        %1288 = vmatpush2.msra.mxu0 %v1153
        %1289 = vmatprep.subr.mxu0 %v1152
        %1290 = vmatpush2.msra.mxu0 %v1151
        %1291 = vmatprep.subr.mxu0 %v1150
        %1292 = vmatpush2.msra.mxu0 %v1149
        %1293 = vmatprep.subr.mxu0 %v1148
        %1294 = vmatpush2.msra.mxu0 %v1147
        %1295 = vmatprep.subr.mxu0 %v1146
        %1296 = vmatpush2.msra.mxu0 %v1145
        %1297 = vmatprep.subr.mxu0 %v1144
        %1298 = vmatpush2.msra.mxu0 %v1143
        %1299 = vmatprep.subr.mxu0 %v1142
        %1300 = vmatpush2.msra.mxu0 %v1141
        %1301 = vmatprep.subr.mxu0 %v1140
        %1302 = vmatpush2.msra.mxu0 %v1139
        %1303 = vmatprep.subr.mxu0 %v1138
        %1304 = vmatpush2.msra.mxu0 %v1137
        %1305 = vmatprep.subr.mxu0 %v1136
        %1306 = vmatpush2.msra.mxu0 %v1135
        %1307 = vmatprep.mubr.f32.mxu0 %v1080
        %1308 = vmatmul.mubr.f32.gmra.mxu0 %v1079
        %v1309 = vpop.f32.mrf.mxu0
        %v1310 = vadd.f32 %v1236, %v1309
        %v1311 = vpop.f32.mrf.mxu0
        %v1312 = vadd.f32 %v1240, %v1311
        %1313 = vmatprep.mubr.f32.mxu0 %v1084
        %1314 = vmatmul.mubr.f32.gmra.mxu0 %v1083
        %v1315 = vpop.f32.mrf.mxu0
        %v1316 = vadd.f32 %v1236, %v1315
        %v1317 = vpop.f32.mrf.mxu0
        %v1318 = vadd.f32 %v1240, %v1317
        %1319 = vmatprep.mubr.f32.mxu0 %v1088
        %1320 = vmatmul.mubr.f32.gmra.mxu0 %v1087
        %v1321 = vpop.f32.mrf.mxu0
        %v1322 = vadd.f32 %v1236, %v1321
        %v1323 = vpop.f32.mrf.mxu0
        %v1324 = vadd.f32 %v1240, %v1323
        %1325 = vmatprep.mubr.f32.mxu0 %v1092
        %1326 = vmatmul.mubr.f32.gmra.mxu0 %v1091
        %v1327 = vpop.f32.mrf.mxu0
        %v1328 = vadd.f32 %v1236, %v1327
        %v1329 = vpop.f32.mrf.mxu0
        %v1330 = vadd.f32 %v1240, %v1329
        %1331 = vmatprep.mubr.f32.mxu0 %v1096
        %1332 = vmatmul.mubr.f32.gmra.mxu0 %v1095
        %v1333 = vpop.f32.mrf.mxu0
        %v1334 = vadd.f32 %v1236, %v1333
        %v1335 = vpop.f32.mrf.mxu0
        %v1336 = vadd.f32 %v1240, %v1335
        %1337 = vmatprep.mubr.f32.mxu0 %v1100
        %1338 = vmatmul.mubr.f32.gmra.mxu0 %v1099
        %v1339 = vpop.f32.mrf.mxu0
        %v1340 = vadd.f32 %v1236, %v1339
        %v1341 = vpop.f32.mrf.mxu0
        %v1342 = vadd.f32 %v1240, %v1341
        %1343 = vdwg.mxu0
        %1344 = vmatprep.subr.mxu0 %v1198
        %1345 = vmatpush1.msra.mxu0 %v1197
        %1346 = vmatprep.subr.mxu0 %v1196
        %1347 = vmatpush1.msra.mxu0 %v1195
        %1348 = vmatprep.subr.mxu0 %v1194
        %1349 = vmatpush1.msra.mxu0 %v1193
        %1350 = vmatprep.subr.mxu0 %v1192
        %1351 = vmatpush1.msra.mxu0 %v1191
        %1352 = vmatprep.subr.mxu0 %v1190
        %1353 = vmatpush1.msra.mxu0 %v1189
        %1354 = vmatprep.subr.mxu0 %v1188
        %1355 = vmatpush1.msra.mxu0 %v1187
        %1356 = vmatprep.subr.mxu0 %v1186
        %1357 = vmatpush1.msra.mxu0 %v1185
        %1358 = vmatprep.subr.mxu0 %v1184
        %1359 = vmatpush1.msra.mxu0 %v1183
        %1360 = vmatprep.subr.mxu0 %v1182
        %1361 = vmatpush1.msra.mxu0 %v1181
        %1362 = vmatprep.subr.mxu0 %v1180
        %1363 = vmatpush1.msra.mxu0 %v1179
        %1364 = vmatprep.subr.mxu0 %v1178
        %1365 = vmatpush1.msra.mxu0 %v1177
        %1366 = vmatprep.subr.mxu0 %v1176
        %1367 = vmatpush1.msra.mxu0 %v1175
        %1368 = vmatprep.subr.mxu0 %v1174
        %1369 = vmatpush1.msra.mxu0 %v1173
        %1370 = vmatprep.subr.mxu0 %v1172
        %1371 = vmatpush1.msra.mxu0 %v1171
        %1372 = vmatprep.subr.mxu0 %v1170
        %1373 = vmatpush1.msra.mxu0 %v1169
        %1374 = vmatprep.subr.mxu0 %v1168
        %1375 = vmatpush1.msra.mxu0 %v1167
        %1376 = vmatprep.subr.mxu0 %v1230
        %1377 = vmatpush2.msra.mxu0 %v1229
        %1378 = vmatprep.subr.mxu0 %v1228
        %1379 = vmatpush2.msra.mxu0 %v1227
        %1380 = vmatprep.subr.mxu0 %v1226
        %1381 = vmatpush2.msra.mxu0 %v1225
        %1382 = vmatprep.subr.mxu0 %v1224
        %1383 = vmatpush2.msra.mxu0 %v1223
        %1384 = vmatprep.subr.mxu0 %v1222
        %1385 = vmatpush2.msra.mxu0 %v1221
        %1386 = vmatprep.subr.mxu0 %v1220
        %1387 = vmatpush2.msra.mxu0 %v1219
        %1388 = vmatprep.subr.mxu0 %v1218
        %1389 = vmatpush2.msra.mxu0 %v1217
        %1390 = vmatprep.subr.mxu0 %v1216
        %1391 = vmatpush2.msra.mxu0 %v1215
        %1392 = vmatprep.subr.mxu0 %v1214
        %1393 = vmatpush2.msra.mxu0 %v1213
        %1394 = vmatprep.subr.mxu0 %v1212
        %1395 = vmatpush2.msra.mxu0 %v1211
        %1396 = vmatprep.subr.mxu0 %v1210
        %1397 = vmatpush2.msra.mxu0 %v1209
        %1398 = vmatprep.subr.mxu0 %v1208
        %1399 = vmatpush2.msra.mxu0 %v1207
        %1400 = vmatprep.subr.mxu0 %v1206
        %1401 = vmatpush2.msra.mxu0 %v1205
        %1402 = vmatprep.subr.mxu0 %v1204
        %1403 = vmatpush2.msra.mxu0 %v1203
        %1404 = vmatprep.subr.mxu0 %v1202
        %1405 = vmatpush2.msra.mxu0 %v1201
        %1406 = vmatprep.subr.mxu0 %v1200
        %1407 = vmatpush2.msra.mxu0 %v1199
        %1408 = vmatprep.mubr.f32.mxu0 %v1082
        %1409 = vmatmul.mubr.f32.gmra.mxu0 %v1081
        %v1410 = vpop.f32.mrf.mxu0
        %v1411 = vadd.f32 %v1310, %v1410
        %v1412 = vpop.f32.mrf.mxu0
        %v1413 = vadd.f32 %v1312, %v1412
        %1414 = vmatprep.mubr.f32.mxu0 %v1086
        %1415 = vmatmul.mubr.f32.gmra.mxu0 %v1085
        %v1416 = vpop.f32.mrf.mxu0
        %v1417 = vadd.f32 %v1316, %v1416
        %v1418 = vpop.f32.mrf.mxu0
        %v1419 = vadd.f32 %v1318, %v1418
        %1420 = vmatprep.mubr.f32.mxu0 %v1090
        %1421 = vmatmul.mubr.f32.gmra.mxu0 %v1089
        %v1422 = vpop.f32.mrf.mxu0
        %v1423 = vadd.f32 %v1322, %v1422
        %v1424 = vpop.f32.mrf.mxu0
        %v1425 = vadd.f32 %v1324, %v1424
        %1426 = vmatprep.mubr.f32.mxu0 %v1094
        %1427 = vmatmul.mubr.f32.gmra.mxu0 %v1093
        %v1428 = vpop.f32.mrf.mxu0
        %v1429 = vadd.f32 %v1328, %v1428
        %v1430 = vpop.f32.mrf.mxu0
        %v1431 = vadd.f32 %v1330, %v1430
        %1432 = vmatprep.mubr.f32.mxu0 %v1098
        %1433 = vmatmul.mubr.f32.gmra.mxu0 %v1097
        %v1434 = vpop.f32.mrf.mxu0
        %v1435 = vadd.f32 %v1334, %v1434
        %v1436 = vpop.f32.mrf.mxu0
        %v1437 = vadd.f32 %v1336, %v1436
        %1438 = vmatprep.mubr.f32.mxu0 %v1102
        %1439 = vmatmul.mubr.f32.gmra.mxu0 %v1101
        %v1440 = vpop.f32.mrf.mxu0
        %v1441 = vadd.f32 %v1340, %v1440
        %v1442 = vpop.f32.mrf.mxu0
        %v1443 = vadd.f32 %v1342, %v1442
        %1444 = vdwg.mxu0
        %v1445 = vmax.f32 %v1411, 0.0
        %v1446 = vmax.f32 %v1413, 0.0
        %v1447 = vmax.f32 %v1417, 0.0
        %v1448 = vmax.f32 %v1419, 0.0
        %v1449 = vmax.f32 %v1423, 0.0
        %v1450 = vmax.f32 %v1425, 0.0
        %v1451 = vmax.f32 %v1429, 0.0
        %v1452 = vmax.f32 %v1431, 0.0
        %v1453 = vmax.f32 %v1435, 0.0
        %v1454 = vmax.f32 %v1437, 0.0
        %v1455 = vmax.f32 %v1441, 0.0
        %v1456 = vmax.f32 %v1443, 0.0
        %v1457 = vld [vmem:[%s9] sm:$0xff]
        %v1458 = vld [vmem:[%s9 + $0x8] sm:$0xff]
        %v1459 = vld [vmem:[%s9 + $0x10] sm:$0xff]
        %v1460 = vld [vmem:[%s9 + $0x18] sm:$0xff]
        %v1461 = vld [vmem:[%s9 + $0x20] sm:$0xff]
        %v1462 = vld [vmem:[%s9 + $0x28] sm:$0xff]
        %v1463 = vld [vmem:[%s9 + $0x30] sm:$0xff]
        %v1464 = vld [vmem:[%s9 + $0x38] sm:$0xff]
        %v1465 = vld [vmem:[%s9 + $0x40] sm:$0xff]
        %v1466 = vld [vmem:[%s9 + $0x48] sm:$0xff]
        %v1467 = vld [vmem:[%s9 + $0x50] sm:$0xff]
        %v1468 = vld [vmem:[%s9 + $0x58] sm:$0xff]
        %v1469 = vld [vmem:[%s9 + $0x60] sm:$0xff]
        %v1470 = vld [vmem:[%s9 + $0x68] sm:$0xff]
        %v1471 = vld [vmem:[%s9 + $0x70] sm:$0xff]
        %v1472 = vld [vmem:[%s9 + $0x78] sm:$0xff]
        %v1473 = vld [vmem:[%s9 + $0x80] sm:$0xff]
        %v1474 = vld [vmem:[%s9 + $0x88] sm:$0xff]
        %v1475 = vld [vmem:[%s9 + $0x90] sm:$0xff]
        %v1476 = vld [vmem:[%s9 + $0x98] sm:$0xff]
        %v1477 = vld [vmem:[%s9 + $0xa0] sm:$0xff]
        %v1478 = vld [vmem:[%s9 + $0xa8] sm:$0xff]
        %v1479 = vld [vmem:[%s9 + $0xb0] sm:$0xff]
        %v1480 = vld [vmem:[%s9 + $0xb8] sm:$0xff]
        %v1481 = vld [vmem:[%s9 + $0xc0] sm:$0xff]
        %v1482 = vld [vmem:[%s9 + $0xc8] sm:$0xff]
        %v1483 = vld [vmem:[%s9 + $0xd0] sm:$0xff]
        %v1484 = vld [vmem:[%s9 + $0xd8] sm:$0xff]
        %v1485 = vld [vmem:[%s9 + $0xe0] sm:$0xff]
        %v1486 = vld [vmem:[%s9 + $0xe8] sm:$0xff]
        %v1487 = vld [vmem:[%s9 + $0xf0] sm:$0xff]
        %v1488 = vld [vmem:[%s9 + $0xf8] sm:$0xff]
        %v1489 = vld [vmem:[%s10] sm:$0x1]
        %v1491 = vlaneseq
        %v1492 = vshrl.u32 %v1491, 7
        %v1493 = vsub.s32 0, %v1492
        %v1494 = vrot.slane %v1489, %v1493
        %1496 = vmatprep.subr.mxu0 0.0
        %1497 = vmatpush1.msra.mxu0 %v1472
        %1498 = vmatprep.subr.mxu0 0.0
        %1499 = vmatpush1.msra.mxu0 %v1471
        %1500 = vmatprep.subr.mxu0 0.0
        %1501 = vmatpush1.msra.mxu0 %v1470
        %1502 = vmatprep.subr.mxu0 0.0
        %1503 = vmatpush1.msra.mxu0 %v1469
        %1504 = vmatprep.subr.mxu0 0.0
        %1505 = vmatpush1.msra.mxu0 %v1468
        %1506 = vmatprep.subr.mxu0 0.0
        %1507 = vmatpush1.msra.mxu0 %v1467
        %1508 = vmatprep.subr.mxu0 0.0
        %1509 = vmatpush1.msra.mxu0 %v1466
        %1510 = vmatprep.subr.mxu0 0.0
        %1511 = vmatpush1.msra.mxu0 %v1465
        %1512 = vmatprep.subr.mxu0 0.0
        %1513 = vmatpush1.msra.mxu0 %v1464
        %1514 = vmatprep.subr.mxu0 0.0
        %1515 = vmatpush1.msra.mxu0 %v1463
        %1516 = vmatprep.subr.mxu0 0.0
        %1517 = vmatpush1.msra.mxu0 %v1462
        %1518 = vmatprep.subr.mxu0 0.0
        %1519 = vmatpush1.msra.mxu0 %v1461
        %1520 = vmatprep.subr.mxu0 0.0
        %1521 = vmatpush1.msra.mxu0 %v1460
        %1522 = vmatprep.subr.mxu0 0.0
        %1523 = vmatpush1.msra.mxu0 %v1459
        %1524 = vmatprep.subr.mxu0 0.0
        %1525 = vmatpush1.msra.mxu0 %v1458
        %1526 = vmatprep.subr.mxu0 0.0
        %1527 = vmatpush1.msra.mxu0 %v1457
        %1528 = vmatprep.subr.mxu0 0.0
        %1529 = vmatpush2.msra.mxu0 %v1488
        %1530 = vmatprep.subr.mxu0 0.0
        %1531 = vmatpush2.msra.mxu0 %v1487
        %1532 = vmatprep.subr.mxu0 0.0
        %1533 = vmatpush2.msra.mxu0 %v1486
        %1534 = vmatprep.subr.mxu0 0.0
        %1535 = vmatpush2.msra.mxu0 %v1485
        %1536 = vmatprep.subr.mxu0 0.0
        %1537 = vmatpush2.msra.mxu0 %v1484
        %1538 = vmatprep.subr.mxu0 0.0
        %1539 = vmatpush2.msra.mxu0 %v1483
        %1540 = vmatprep.subr.mxu0 0.0
        %1541 = vmatpush2.msra.mxu0 %v1482
        %1542 = vmatprep.subr.mxu0 0.0
        %1543 = vmatpush2.msra.mxu0 %v1481
        %1544 = vmatprep.subr.mxu0 0.0
        %1545 = vmatpush2.msra.mxu0 %v1480
        %1546 = vmatprep.subr.mxu0 0.0
        %1547 = vmatpush2.msra.mxu0 %v1479
        %1548 = vmatprep.subr.mxu0 0.0
        %1549 = vmatpush2.msra.mxu0 %v1478
        %1550 = vmatprep.subr.mxu0 0.0
        %1551 = vmatpush2.msra.mxu0 %v1477
        %1552 = vmatprep.subr.mxu0 0.0
        %1553 = vmatpush2.msra.mxu0 %v1476
        %1554 = vmatprep.subr.mxu0 0.0
        %1555 = vmatpush2.msra.mxu0 %v1475
        %1556 = vmatprep.subr.mxu0 0.0
        %1557 = vmatpush2.msra.mxu0 %v1474
        %1558 = vmatprep.subr.mxu0 0.0
        %1559 = vmatpush2.msra.mxu0 %v1473
        %1560 = vmatprep.mubr.f32.mxu0 %v1446
        %1561 = vmatmul.mubr.f32.gmra.mxu0 %v1445
        %v1562 = vpop.f32.mrf.mxu0
        %v1563 = vadd.f32 %v1494, %v1562
        %v1564 = vpop.f32.mrf.mxu0
        %1565 = vmatprep.mubr.f32.mxu0 %v1448
        %1566 = vmatmul.mubr.f32.gmra.mxu0 %v1447
        %v1567 = vpop.f32.mrf.mxu0
        %v1568 = vadd.f32 %v1494, %v1567
        %v1569 = vpop.f32.mrf.mxu0
        %1570 = vmatprep.mubr.f32.mxu0 %v1450
        %1571 = vmatmul.mubr.f32.gmra.mxu0 %v1449
        %v1572 = vpop.f32.mrf.mxu0
        %v1573 = vadd.f32 %v1494, %v1572
        %v1574 = vpop.f32.mrf.mxu0
        %1575 = vmatprep.mubr.f32.mxu0 %v1452
        %1576 = vmatmul.mubr.f32.gmra.mxu0 %v1451
        %v1577 = vpop.f32.mrf.mxu0
        %v1578 = vadd.f32 %v1494, %v1577
        %v1579 = vpop.f32.mrf.mxu0
        %1580 = vmatprep.mubr.f32.mxu0 %v1454
        %1581 = vmatmul.mubr.f32.gmra.mxu0 %v1453
        %v1582 = vpop.f32.mrf.mxu0
        %v1583 = vadd.f32 %v1494, %v1582
        %v1584 = vpop.f32.mrf.mxu0
        %1585 = vmatprep.mubr.f32.mxu0 %v1456
        %1586 = vmatmul.mubr.f32.gmra.mxu0 %v1455
        %v1587 = vpop.f32.mrf.mxu0
        %v1588 = vadd.f32 %v1494, %v1587
        %v1589 = vpop.f32.mrf.mxu0
        %1590 = vdwg.mxu0
        %v1591 = vmax.f32 %v1563, 0.0
        %v1592 = vmax.f32 %v1568, 0.0
        %v1593 = vmax.f32 %v1573, 0.0
        %v1594 = vmax.f32 %v1578, 0.0
        %v1595 = vmax.f32 %v1583, 0.0
        %v1596 = vmax.f32 %v1588, 0.0
        %v1597 = vld [vmem:[%s11] sm:$0xff]
        %v1598 = vld [vmem:[%s11 + $0x8] sm:$0xff]
        %v1599 = vld [vmem:[%s11 + $0x10] sm:$0xff]
        %v1600 = vld [vmem:[%s11 + $0x18] sm:$0xff]
        %v1601 = vld [vmem:[%s11 + $0x20] sm:$0xff]
        %v1602 = vld [vmem:[%s11 + $0x28] sm:$0xff]
        %v1603 = vld [vmem:[%s11 + $0x30] sm:$0xff]
        %v1604 = vld [vmem:[%s11 + $0x38] sm:$0xff]
        %v1605 = vld [vmem:[%s11 + $0x40] sm:$0xff]
        %v1606 = vld [vmem:[%s11 + $0x48] sm:$0xff]
        %v1607 = vld [vmem:[%s11 + $0x50] sm:$0xff]
        %v1608 = vld [vmem:[%s11 + $0x58] sm:$0xff]
        %v1609 = vld [vmem:[%s11 + $0x60] sm:$0xff]
        %v1610 = vld [vmem:[%s11 + $0x68] sm:$0xff]
        %v1611 = vld [vmem:[%s11 + $0x70] sm:$0xff]
        %v1612 = vld [vmem:[%s11 + $0x78] sm:$0xff]
        %v1613 = vld [vmem:[%s12] sm:$0x1]
        %v1615 = vlaneseq
        %v1616 = vshrl.u32 %v1615, 7
        %v1617 = vsub.s32 0, %v1616
        %v1618 = vrot.slane %v1613, %v1617
        %1620 = vmatprep.subr.mxu0 0.0
        %1621 = vmatpush1.msra.mxu0 %v1612
        %1622 = vmatprep.subr.mxu0 0.0
        %1623 = vmatpush1.msra.mxu0 %v1611
        %1624 = vmatprep.subr.mxu0 0.0
        %1625 = vmatpush1.msra.mxu0 %v1610
        %1626 = vmatprep.subr.mxu0 0.0
        %1627 = vmatpush1.msra.mxu0 %v1609
        %1628 = vmatprep.subr.mxu0 0.0
        %1629 = vmatpush1.msra.mxu0 %v1608
        %1630 = vmatprep.subr.mxu0 0.0
        %1631 = vmatpush1.msra.mxu0 %v1607
        %1632 = vmatprep.subr.mxu0 0.0
        %1633 = vmatpush1.msra.mxu0 %v1606
        %1634 = vmatprep.subr.mxu0 0.0
        %1635 = vmatpush1.msra.mxu0 %v1605
        %1636 = vmatprep.subr.mxu0 0.0
        %1637 = vmatpush1.msra.mxu0 %v1604
        %1638 = vmatprep.subr.mxu0 0.0
        %1639 = vmatpush1.msra.mxu0 %v1603
        %1640 = vmatprep.subr.mxu0 0.0
        %1641 = vmatpush1.msra.mxu0 %v1602
        %1642 = vmatprep.subr.mxu0 0.0
        %1643 = vmatpush1.msra.mxu0 %v1601
        %1644 = vmatprep.subr.mxu0 0.0
        %1645 = vmatpush1.msra.mxu0 %v1600
        %1646 = vmatprep.subr.mxu0 0.0
        %1647 = vmatpush1.msra.mxu0 %v1599
        %1648 = vmatprep.subr.mxu0 0.0
        %1649 = vmatpush1.msra.mxu0 %v1598
        %1650 = vmatprep.subr.mxu0 0.0
        %1651 = vmatpush1.msra.mxu0 %v1597
        %1652 = vmatprep.subr.mxu0 0.0
        %1653 = vmatpush2.msra.mxu0 0.0
        %1654 = vmatprep.subr.mxu0 0.0
        %1655 = vmatpush2.msra.mxu0 0.0
        %1656 = vmatprep.subr.mxu0 0.0
        %1657 = vmatpush2.msra.mxu0 0.0
        %1658 = vmatprep.subr.mxu0 0.0
        %1659 = vmatpush2.msra.mxu0 0.0
        %1660 = vmatprep.subr.mxu0 0.0
        %1661 = vmatpush2.msra.mxu0 0.0
        %1662 = vmatprep.subr.mxu0 0.0
        %1663 = vmatpush2.msra.mxu0 0.0
        %1664 = vmatprep.subr.mxu0 0.0
        %1665 = vmatpush2.msra.mxu0 0.0
        %1666 = vmatprep.subr.mxu0 0.0
        %1667 = vmatpush2.msra.mxu0 0.0
        %1668 = vmatprep.subr.mxu0 0.0
        %1669 = vmatpush2.msra.mxu0 0.0
        %1670 = vmatprep.subr.mxu0 0.0
        %1671 = vmatpush2.msra.mxu0 0.0
        %1672 = vmatprep.subr.mxu0 0.0
        %1673 = vmatpush2.msra.mxu0 0.0
        %1674 = vmatprep.subr.mxu0 0.0
        %1675 = vmatpush2.msra.mxu0 0.0
        %1676 = vmatprep.subr.mxu0 0.0
        %1677 = vmatpush2.msra.mxu0 0.0
        %1678 = vmatprep.subr.mxu0 0.0
        %1679 = vmatpush2.msra.mxu0 0.0
        %1680 = vmatprep.subr.mxu0 0.0
        %1681 = vmatpush2.msra.mxu0 0.0
        %1682 = vmatprep.subr.mxu0 0.0
        %1683 = vmatpush2.msra.mxu0 0.0
        %1684 = vmatprep.mubr.f32.mxu0 0.0
        %1685 = vmatmul.mubr.f32.gmra.mxu0 %v1591
        %v1686 = vpop.f32.mrf.mxu0
        %v1687 = vadd.f32 %v1618, %v1686
        %v1688 = vpop.f32.mrf.mxu0
        %1689 = vmatprep.mubr.f32.mxu0 0.0
        %1690 = vmatmul.mubr.f32.gmra.mxu0 %v1592
        %v1691 = vpop.f32.mrf.mxu0
        %v1692 = vadd.f32 %v1618, %v1691
        %v1693 = vpop.f32.mrf.mxu0
        %1694 = vmatprep.mubr.f32.mxu0 0.0
        %1695 = vmatmul.mubr.f32.gmra.mxu0 %v1593
        %v1696 = vpop.f32.mrf.mxu0
        %v1697 = vadd.f32 %v1618, %v1696
        %v1698 = vpop.f32.mrf.mxu0
        %1699 = vmatprep.mubr.f32.mxu0 0.0
        %1700 = vmatmul.mubr.f32.gmra.mxu0 %v1594
        %v1701 = vpop.f32.mrf.mxu0
        %v1702 = vadd.f32 %v1618, %v1701
        %v1703 = vpop.f32.mrf.mxu0
        %1704 = vmatprep.mubr.f32.mxu0 0.0
        %1705 = vmatmul.mubr.f32.gmra.mxu0 %v1595
        %v1706 = vpop.f32.mrf.mxu0
        %v1707 = vadd.f32 %v1618, %v1706
        %v1708 = vpop.f32.mrf.mxu0
        %1709 = vmatprep.mubr.f32.mxu0 0.0
        %1710 = vmatmul.mubr.f32.gmra.mxu0 %v1596
        %v1711 = vpop.f32.mrf.mxu0
        %v1712 = vadd.f32 %v1618, %v1711
        %v1713 = vpop.f32.mrf.mxu0
        %1714 = vdwg.mxu0
        %1721 = vrot.lane.b32.xlu0 %v1687, 127
        %v1722 = vpop.permute.xlu0 %1721
        %1723 = vrot.lane.b32.xlu0 %v1692, 127
        %v1724 = vpop.permute.xlu0 %1723
        %1725 = vrot.lane.b32.xlu0 %v1697, 127
        %v1726 = vpop.permute.xlu0 %1725
        %1727 = vrot.lane.b32.xlu0 %v1702, 127
        %v1728 = vpop.permute.xlu0 %1727
        %1729 = vrot.lane.b32.xlu0 %v1707, 127
        %v1730 = vpop.permute.xlu0 %1729
        %1731 = vrot.lane.b32.xlu0 %v1712, 127
        %v1732 = vpop.permute.xlu0 %1731
        %v1739 = vmax.f32 %v1687, %v1722
        %v1740 = vmax.f32 %v1692, %v1724
        %v1741 = vmax.f32 %v1697, %v1726
        %v1742 = vmax.f32 %v1702, %v1728
        %v1743 = vmax.f32 %v1707, %v1730
        %v1744 = vmax.f32 %v1712, %v1732
        %v1745 = vsub.f32 %v1687, %v1739
        %v1746 = vsub.f32 %v1692, %v1740
        %v1747 = vsub.f32 %v1697, %v1741
        %v1748 = vsub.f32 %v1702, %v1742
        %v1749 = vsub.f32 %v1707, %v1743
        %v1750 = vsub.f32 %v1712, %v1744
        %v1751 = vmul.f32 %v1745, 1.442695
        %v1752 = vpow.pop %v1751
        %v1753 = vmul.f32 %v1746, 1.442695
        %v1754 = vpow.pop %v1753
        %v1755 = vmul.f32 %v1747, 1.442695
        %v1756 = vpow.pop %v1755
        %v1757 = vmul.f32 %v1748, 1.442695
        %v1758 = vpow.pop %v1757
        %v1759 = vmul.f32 %v1749, 1.442695
        %v1760 = vpow.pop %v1759
        %v1761 = vmul.f32 %v1750, 1.442695
        %v1762 = vpow.pop %v1761
        %1769 = vrot.lane.b32.xlu0 %v1739, 1
        %v1770 = vpop.permute.xlu0 %1769
        %1771 = vrot.lane.b32.xlu0 %v1740, 1
        %v1772 = vpop.permute.xlu0 %1771
        %1773 = vrot.lane.b32.xlu0 %v1741, 1
        %v1774 = vpop.permute.xlu0 %1773
        %1775 = vrot.lane.b32.xlu0 %v1742, 1
        %v1776 = vpop.permute.xlu0 %1775
        %1777 = vrot.lane.b32.xlu0 %v1743, 1
        %v1778 = vpop.permute.xlu0 %1777
        %1779 = vrot.lane.b32.xlu0 %v1744, 1
        %v1780 = vpop.permute.xlu0 %1779
        %v1787 = vsub.f32 %v1687, %v1770
        %v1788 = vsub.f32 %v1692, %v1772
        %v1789 = vsub.f32 %v1697, %v1774
        %v1790 = vsub.f32 %v1702, %v1776
        %v1791 = vsub.f32 %v1707, %v1778
        %v1792 = vsub.f32 %v1712, %v1780
        %v1793 = vmul.f32 %v1787, 1.442695
        %v1794 = vpow.pop %v1793
        %v1795 = vmul.f32 %v1788, 1.442695
        %v1796 = vpow.pop %v1795
        %v1797 = vmul.f32 %v1789, 1.442695
        %v1798 = vpow.pop %v1797
        %v1799 = vmul.f32 %v1790, 1.442695
        %v1800 = vpow.pop %v1799
        %v1801 = vmul.f32 %v1791, 1.442695
        %v1802 = vpow.pop %v1801
        %v1803 = vmul.f32 %v1792, 1.442695
        %v1804 = vpow.pop %v1803
        %1811 = vrot.lane.b32.xlu0 %v1794, 127
        %v1812 = vpop.permute.xlu0 %1811
        %1813 = vrot.lane.b32.xlu0 %v1796, 127
        %v1814 = vpop.permute.xlu0 %1813
        %1815 = vrot.lane.b32.xlu0 %v1798, 127
        %v1816 = vpop.permute.xlu0 %1815
        %1817 = vrot.lane.b32.xlu0 %v1800, 127
        %v1818 = vpop.permute.xlu0 %1817
        %1819 = vrot.lane.b32.xlu0 %v1802, 127
        %v1820 = vpop.permute.xlu0 %1819
        %1821 = vrot.lane.b32.xlu0 %v1804, 127
        %v1822 = vpop.permute.xlu0 %1821
        %v1829 = vadd.f32 %v1752, %v1812
        %v1830 = vadd.f32 %v1754, %v1814
        %v1831 = vadd.f32 %v1756, %v1816
        %v1832 = vadd.f32 %v1758, %v1818
        %v1833 = vadd.f32 %v1760, %v1820
        %v1834 = vadd.f32 %v1762, %v1822
        %v1835 = vlog2.pop %v1829
        %v1836 = vmul.f32 %v1835, 0.6931472
        %v1837 = vlog2.pop %v1830
        %v1838 = vmul.f32 %v1837, 0.6931472
        %v1839 = vlog2.pop %v1831
        %v1840 = vmul.f32 %v1839, 0.6931472
        %v1841 = vlog2.pop %v1832
        %v1842 = vmul.f32 %v1841, 0.6931472
        %v1843 = vlog2.pop %v1833
        %v1844 = vmul.f32 %v1843, 0.6931472
        %v1845 = vlog2.pop %v1834
        %v1846 = vmul.f32 %v1845, 0.6931472
        %v1847 = vadd.f32 %v1739, %v1836
        %v1848 = vadd.f32 %v1740, %v1838
        %v1849 = vadd.f32 %v1741, %v1840
        %v1850 = vadd.f32 %v1742, %v1842
        %v1851 = vadd.f32 %v1743, %v1844
        %v1852 = vadd.f32 %v1744, %v1846
        %1854 = vset.pattern.permute.xlu0 0
        %1855 = vperm.xlu0 %1854, %v1847
        %v1856 = vpop.permute.xlu0 %1855
        %1859 = vset.pattern.permute.xlu0 0
        %1860 = vperm.xlu0 %1859, %v1848
        %v1861 = vpop.permute.xlu0 %1860
        %1864 = vset.pattern.permute.xlu0 0
        %1865 = vperm.xlu0 %1864, %v1849
        %v1866 = vpop.permute.xlu0 %1865
        %1869 = vset.pattern.permute.xlu0 0
        %1870 = vperm.xlu0 %1869, %v1850
        %v1871 = vpop.permute.xlu0 %1870
        %1874 = vset.pattern.permute.xlu0 0
        %1875 = vperm.xlu0 %1874, %v1851
        %v1876 = vpop.permute.xlu0 %1875
        %1879 = vset.pattern.permute.xlu0 0
        %1880 = vperm.xlu0 %1879, %v1852
        %v1881 = vpop.permute.xlu0 %1880
        %v1883 = vsub.f32 %v1687, %v1856
        %v1884 = vsub.f32 %v1692, %v1861
        %v1885 = vsub.f32 %v1697, %v1866
        %v1886 = vsub.f32 %v1702, %v1871
        %v1887 = vsub.f32 %v1707, %v1876
        %v1888 = vsub.f32 %v1712, %v1881
        %vm1889 = vcmask 15360
        %1890 = vst.msk [vmem:[%s492] sm:$0xff] %vm1889, %v1883
        %1891 = vst.msk [vmem:[%s492 + $0x8] sm:$0xff] %vm1889, %v1884
        %1892 = vst.msk [vmem:[%s492 + $0x10] sm:$0xff] %vm1889, %v1885
        %1893 = vst.msk [vmem:[%s492 + $0x18] sm:$0xff] %vm1889, %v1886
        %1894 = vst.msk [vmem:[%s492 + $0x20] sm:$0xff] %vm1889, %v1887
        %1895 = vst.msk [vmem:[%s492 + $0x28] sm:$0xff] %vm1889, %v1888
        %s1896 = sand.u32 %s336, 1
        %s1897 = sand.u32 %s336, 1
        %s1898 = smul.addr %s1897, 48
        %s1899 = scalar_lea.vmem [#allocation2], %s1898
        // Predicated region
        $region73: #{pointnet_densecls.5} parent=71 // pred_check
          %p1900 = pneg %p346
        $region74: #{pointnet_densecls.5} parent=71 // pred_check_branch
          %1902 = sbr.rel (%p1900) target = $region76
        $region75: #{pointnet_densecls.5} parent=71 // pred_region
          %s1903 = smul.u32 6, %s29
          %s1904 = ssub.s32 8, %s1903
          %p1905 = scmp.lt.s32.totalorder %s1904, 6
          %s1906 = scalar_select %p1905, %s1904, 6
          %s1907 = smul.u32 128, %s1906
          %p1908 = scmp.ne.s32.totalorder 0, %s1907
          %s1909 = smul.addr %s28, 8
          %s1910 = sadd.s32 %s1903, %s1909
          %s1911 = smul.addr %s1910, 8
          %s1912 = scalar_lea.vmem %s13, %s1911
          // Predicated region
          $region77: #{pointnet_densecls.5} parent=75 // pred_check
            %p1913 = pneg %p1908
          $region78: #{pointnet_densecls.5} parent=75 // pred_check_branch
            %1915 = sbr.rel (%p1913) target = $region80
          $region79: #{pointnet_densecls.5} parent=75 // pred_region
            // Predicated region
            $region81: #{pointnet_densecls.5} parent=79 // pred_check
              _
            $region82: #{pointnet_densecls.5} parent=79 // pred_check_branch
              %1917 = sbr.rel (0) target = $region84
            $region83: #{pointnet_densecls.5} parent=79 // pred_region
              // Predicated region
              $region103: #{pointnet_densecls.5} parent=83 // pred_check
                _
              $region104: #{pointnet_densecls.5} parent=83 // pred_check_branch
                %1978 = sbr.rel (0) target = $region106
              $region105: #{pointnet_densecls.5} parent=83 // pred_region
                %s1979 = sdiv.u32.pop %s1906, 6
                %s1980 = srem.u32.pop %s1906, 6
                // While loop
                $region107: #{pointnet_densecls.5} parent=105 // loop_pre_header
                  _
                $region108: #{pointnet_densecls.5} parent=105 // loop_header
                  %s1982 = sphi 0, %s1984
                  %p1983 = scmp.ge.s32.totalorder %s1982, %s1979
                  %s1987 = sphi 0, %s2004
                  %s1988 = sphi %s1899, %s2007
                  %s1989 = sphi %s1912, %s2008
                $region109: #{pointnet_densecls.5} parent=105 // loop_header_branch
                  %1986 = sbr.rel (%p1983) target = $region113
                $region110: #{pointnet_densecls.5} parent=105 // loop_body
                  %v1990 = vld [vmem:[%s1988] sm:$0xff]
                  %1991 = vst [vmem:[%s1989] sm:$0xff] %v1990
                  %v1992 = vld [vmem:[%s1988 + $0x8] sm:$0xff]
                  %1993 = vst [vmem:[%s1989 + $0x8] sm:$0xff] %v1992
                  %v1994 = vld [vmem:[%s1988 + $0x10] sm:$0xff]
                  %1995 = vst [vmem:[%s1989 + $0x10] sm:$0xff] %v1994
                  %v1996 = vld [vmem:[%s1988 + $0x18] sm:$0xff]
                  %1997 = vst [vmem:[%s1989 + $0x18] sm:$0xff] %v1996
                  %v1998 = vld [vmem:[%s1988 + $0x20] sm:$0xff]
                  %1999 = vst [vmem:[%s1989 + $0x20] sm:$0xff] %v1998
                  %v2000 = vld [vmem:[%s1988 + $0x28] sm:$0xff]
                  %2001 = vst [vmem:[%s1989 + $0x28] sm:$0xff] %v2000
                  %s2002 = sadd.s32 1, %s1987
                  %p2003 = scmp.ge.s32.totalorder %s2002, %s1979
                  %s2004 = scalar_select %p2003, 0, %s2002
                  %s2005 = smul.u32 %s2004, 48
                  %s2006 = smul.u32 %s2004, 48
                  %s2007 = scalar_lea.vmem %s1899, %s2005 [#allocation2]
                  %s2008 = scalar_lea.vmem %s1912, %s2006
                $region111: #{pointnet_densecls.5} parent=105 // loop_footer
                  %s1984 = sadd.s32 %s1982, 1
                $region112: #{pointnet_densecls.5} parent=105 // loop_footer_branch
                  %1981 = sbr.rel target = $region108
                $region113: #{pointnet_densecls.5} parent=105 // loop_exit
                  _
                %s2009 = sdiv.u32.pop %s1906, 6
                %s2010 = srem.u32.pop %s1906, 6
                %s2011 = smul.u32 %s2009, 6
                %s2012 = smul.u32 8, %s2011
                %s2013 = scalar_lea.vmem %s1899, %s2012 [#allocation2]
                %s2014 = smul.u32 8, %s2011
                %s2015 = scalar_lea.vmem %s1912, %s2014
                // While loop
                $region114: #{pointnet_densecls.5} parent=105 // loop_pre_header
                  _
                $region115: #{pointnet_densecls.5} parent=105 // loop_header
                  %s2017 = sphi 0, %s2019
                  %p2018 = scmp.ge.s32.totalorder %s2017, %s2010
                  %s2022 = sphi 0, %s2029
                  %s2023 = sphi %s2013, %s2032
                  %s2024 = sphi %s2015, %s2033
                $region116: #{pointnet_densecls.5} parent=105 // loop_header_branch
                  %2021 = sbr.rel (%p2018) target = $region120
                $region117: #{pointnet_densecls.5} parent=105 // loop_body
                  %v2025 = vld [vmem:[%s2023] sm:$0xff]
                  %2026 = vst [vmem:[%s2024] sm:$0xff] %v2025
                  %s2027 = sadd.s32 1, %s2022
                  %p2028 = scmp.ge.s32.totalorder %s2027, %s2010
                  %s2029 = scalar_select %p2028, 0, %s2027
                  %s2030 = smul.u32 %s2029, 8
                  %s2031 = smul.u32 %s2029, 8
                  %s2032 = scalar_lea.vmem %s2013, %s2030 [#allocation2]
                  %s2033 = scalar_lea.vmem %s2015, %s2031
                $region118: #{pointnet_densecls.5} parent=105 // loop_footer
                  %s2019 = sadd.s32 %s2017, 1
                $region119: #{pointnet_densecls.5} parent=105 // loop_footer_branch
                  %2016 = sbr.rel target = $region115
                $region120: #{pointnet_densecls.5} parent=105 // loop_exit
                  _
              $region106: #{pointnet_densecls.5} parent=83 // pred_fallthru
                _
              // Predicated region
              $region121: #{pointnet_densecls.5} parent=83 // pred_check
                _
              $region122: #{pointnet_densecls.5} parent=83 // pred_check_branch
                %2035 = sbr.rel target = $region124
              $region123: #{pointnet_densecls.5} parent=83 // pred_region
                _
              $region124: #{pointnet_densecls.5} parent=83 // pred_fallthru
                _
            $region84: #{pointnet_densecls.5} parent=79 // pred_fallthru
              _
            // Predicated region
            $region85: #{pointnet_densecls.5} parent=79 // pred_check
              _
            $region86: #{pointnet_densecls.5} parent=79 // pred_check_branch
              %1919 = sbr.rel target = $region88
            $region87: #{pointnet_densecls.5} parent=79 // pred_region
              %s1921 = ssub.s32 256, 1
              %s1922 = sdiv.u32.pop %s1906, 6
              %s1923 = srem.u32.pop %s1906, 6
              // While loop
              $region89: #{pointnet_densecls.5} parent=87 // loop_pre_header
                _
              $region90: #{pointnet_densecls.5} parent=87 // loop_header
                %s1925 = sphi 0, %s1927
                %p1926 = scmp.ge.s32.totalorder %s1925, %s1922
                %s1930 = sphi 0, %s1947
                %s1931 = sphi %s1899, %s1950
                %s1932 = sphi %s1912, %s1951
              $region91: #{pointnet_densecls.5} parent=87 // loop_header_branch
                %1929 = sbr.rel (%p1926) target = $region95
              $region92: #{pointnet_densecls.5} parent=87 // loop_body
                %v1933 = vld [vmem:[%s1931] sm:%s1921]
                %1934 = vst [vmem:[%s1932] sm:%s1921] %v1933
                %v1935 = vld [vmem:[%s1931 + $0x8] sm:%s1921]
                %1936 = vst [vmem:[%s1932 + $0x8] sm:%s1921] %v1935
                %v1937 = vld [vmem:[%s1931 + $0x10] sm:%s1921]
                %1938 = vst [vmem:[%s1932 + $0x10] sm:%s1921] %v1937
                %v1939 = vld [vmem:[%s1931 + $0x18] sm:%s1921]
                %1940 = vst [vmem:[%s1932 + $0x18] sm:%s1921] %v1939
                %v1941 = vld [vmem:[%s1931 + $0x20] sm:%s1921]
                %1942 = vst [vmem:[%s1932 + $0x20] sm:%s1921] %v1941
                %v1943 = vld [vmem:[%s1931 + $0x28] sm:%s1921]
                %1944 = vst [vmem:[%s1932 + $0x28] sm:%s1921] %v1943
                %s1945 = sadd.s32 1, %s1930
                %p1946 = scmp.ge.s32.totalorder %s1945, %s1922
                %s1947 = scalar_select %p1946, 0, %s1945
                %s1948 = smul.u32 %s1947, 48
                %s1949 = smul.u32 %s1947, 48
                %s1950 = scalar_lea.vmem %s1899, %s1948 [#allocation2]
                %s1951 = scalar_lea.vmem %s1912, %s1949
              $region93: #{pointnet_densecls.5} parent=87 // loop_footer
                %s1927 = sadd.s32 %s1925, 1
              $region94: #{pointnet_densecls.5} parent=87 // loop_footer_branch
                %1924 = sbr.rel target = $region90
              $region95: #{pointnet_densecls.5} parent=87 // loop_exit
                _
              %s1952 = sdiv.u32.pop %s1906, 6
              %s1953 = srem.u32.pop %s1906, 6
              %s1954 = smul.u32 %s1952, 6
              %s1955 = smul.u32 8, %s1954
              %s1956 = scalar_lea.vmem %s1899, %s1955 [#allocation2]
              %s1957 = smul.u32 8, %s1954
              %s1958 = scalar_lea.vmem %s1912, %s1957
              // While loop
              $region96: #{pointnet_densecls.5} parent=87 // loop_pre_header
                _
              $region97: #{pointnet_densecls.5} parent=87 // loop_header
                %s1960 = sphi 0, %s1962
                %p1961 = scmp.ge.s32.totalorder %s1960, %s1953
                %s1965 = sphi 0, %s1972
                %s1966 = sphi %s1956, %s1975
                %s1967 = sphi %s1958, %s1976
              $region98: #{pointnet_densecls.5} parent=87 // loop_header_branch
                %1964 = sbr.rel (%p1961) target = $region102
              $region99: #{pointnet_densecls.5} parent=87 // loop_body
                %v1968 = vld [vmem:[%s1966] sm:%s1921]
                %1969 = vst [vmem:[%s1967] sm:%s1921] %v1968
                %s1970 = sadd.s32 1, %s1965
                %p1971 = scmp.ge.s32.totalorder %s1970, %s1953
                %s1972 = scalar_select %p1971, 0, %s1970
                %s1973 = smul.u32 %s1972, 8
                %s1974 = smul.u32 %s1972, 8
                %s1975 = scalar_lea.vmem %s1956, %s1973 [#allocation2]
                %s1976 = scalar_lea.vmem %s1958, %s1974
              $region100: #{pointnet_densecls.5} parent=87 // loop_footer
                %s1962 = sadd.s32 %s1960, 1
              $region101: #{pointnet_densecls.5} parent=87 // loop_footer_branch
                %1959 = sbr.rel target = $region97
              $region102: #{pointnet_densecls.5} parent=87 // loop_exit
                _
            $region88: #{pointnet_densecls.5} parent=79 // pred_fallthru
              _
          $region80: #{pointnet_densecls.5} parent=75 // pred_fallthru
            _
          %2036 = vnop
        $region76: #{pointnet_densecls.5} parent=71 // pred_fallthru
          _
      $region72: #{pointnet_densecls.5} parent=5 // pred_fallthru
        _
      %p2037 = scmp.le.s32.totalorder 2, %s19
      // Predicated region
      $region125: #{pointnet_densecls.5} parent=5 // pred_check
        %p2038 = pneg %p2037
      $region126: #{pointnet_densecls.5} parent=5 // pred_check_branch
        %2040 = sbr.rel (%p2038) target = $region128
      $region127: #{pointnet_densecls.5} parent=5 // pred_region
        %s2041 = ssub.s32 %s19, 2
        // Predicated region
        $region129: #{pointnet_densecls.5} parent=127 // pred_check
          %p2042 = pneg %p352
        $region130: #{pointnet_densecls.5} parent=127 // pred_check_branch
          %2044 = sbr.rel (%p2042) target = $region132
        $region131: #{pointnet_densecls.5} parent=127 // pred_region
          %s2045 = sand.u32 %s337, 1
          %s2046 = sand.u32 %s337, 1
          %s2047 = smul.addr %s2046, 48
          %s2048 = scalar_lea.vmem [#allocation2], %s2047
        $region132: #{pointnet_densecls.5} parent=127 // pred_fallthru
          _
      $region128: #{pointnet_densecls.5} parent=5 // pred_fallthru
        _
    $region6: #{pointnet_densecls.5} parent=1 // loop_footer
      %s23 = sadd.s32 1, %s19
    $region7: #{pointnet_densecls.5} parent=1 // loop_footer_branch
      %18 = sbr.rel target = $region3
    $region8: #{pointnet_densecls.5} parent=1 // loop_exit
      _

</llo_original>
